<compile_context>
chip_gen: v7x
topology: tpu7x:2x2x1
jax: 0.10.0
libtpu: 0.0.40
codegen_flags: <defaults>
</compile_context>

<pallas_src>
import functools
import math

import jax
import jax.numpy as jnp
from jax.experimental import pallas as pl
from jax.experimental.pallas import tpu as pltpu


def _fused_resnet_kernel(xflat_ref, w1_ref, b1_ref, w2_ref, b2_ref, mask_ref,
                         out_ref, slab1_ref, hbuf_ref, slab2_ref, *,
                         Cin, hid, CW, off1, off2, OFF1, OFF2, PH):
    """One batch element: y = conv2(relu(conv1(x))) * (0.001*rb) [folded] + x."""
    # ---- conv1 im2col: shifted, lane-dense, full-width row copies ---------------
    for t, off in enumerate(off1):
        slab1_ref[t * Cin:(t + 1) * Cin, :] = (
            xflat_ref[0, :, off:off + CW].astype(jnp.bfloat16))

    # ---- conv1: one MXU matmul (bf16 x bf16 -> f32) + bias + ReLU ---------------
    h = jnp.dot(w1_ref[...], slab1_ref[...],
                preferred_element_type=jnp.float32)               # (hid, CW)
    # The mask zeroes padded-stride columns so they behave as conv2's zero padding.
    h = jnp.maximum(h + b1_ref[...], 0.0) * mask_ref[...]

    # ---- place h into its flat padded VMEM buffer (never hits HBM) --------------
    # Interior fully overwritten every step; only the small halo is re-zeroed.
    if OFF2 > 0:
        hbuf_ref[:, :OFF2] = jnp.zeros((hid, OFF2), jnp.bfloat16)
    if PH - OFF2 - CW > 0:
        hbuf_ref[:, OFF2 + CW:] = jnp.zeros((hid, PH - OFF2 - CW), jnp.bfloat16)
    hbuf_ref[:, OFF2:OFF2 + CW] = h.astype(jnp.bfloat16)

    # ---- conv2 im2col from the VMEM-resident flat h -----------------------------
    for t, off in enumerate(off2):
        slab2_ref[t * hid:(t + 1) * hid, :] = hbuf_ref[:, off:off + CW]

    # ---- conv2 (weights/bias pre-scaled by 0.001*rb) + exact f32 residual -------
    y = jnp.dot(w2_ref[...], slab2_ref[...],
                preferred_element_type=jnp.float32)               # (Cout, CW)
    skip = xflat_ref[0, :, OFF1:OFF1 + CW]                        # (Cin, CW), f32
    out_ref[0] = (y + b2_ref[...] + skip).astype(out_ref.dtype)


@functools.partial(jax.jit, static_argnums=(2, 3))
def resnet_forward_pallas(x_ncdhw, params, k1, k2):
    N, Cin, D, H, W = x_ncdhw.shape
    hid = params['w1'].shape[0]
    Cout = params['w2'].shape[0]
    assert Cout == Cin, "residual connection requires out_channels == in_channels"

    kmax = max(k1, k2)
    lo1 = (k1 - 1) // 2
    lo2 = (k2 - 1) // 2

    # Flat padded-strided coordinate system: pos = d*SD + h*SH + w.
    # Constraints: SH >= W+kmax-1 and SD >= (H+kmax-1)*SH (no aliasing of voxels
    # inside any conv window), SD % SH == 0 (clean wrapper reshape),
    # CW = D*SD multiple of 128 (lane-dense blocks and stores).
    lane_mult = 128 // math.gcd(D, 128)
    SH = W + kmax - 1
    step = math.lcm(SH, lane_mult)
    SD = -(-((H + kmax - 1) * SH) // step) * step
    CW = D * SD
    assert SH >= W + kmax - 1 and SD >= (H + kmax - 1) * SH
    assert SD % SH == 0 and CW % 128 == 0

    K1, K2 = k1 ** 3 * Cin, k2 ** 3 * hid
    OFF1 = lo1 * (SD + SH + 1)           # flat offset of voxel (0,0,0) in xflat
    OFF2 = lo2 * (SD + SH + 1)           # flat offset of voxel (0,0,0) in hbuf
    maxoff1 = (k1 - 1) * (SD + SH + 1)
    maxoff2 = (k2 - 1) * (SD + SH + 1)
    Dx = -(-(maxoff1 + CW) // SD)
    PF = Dx * SD                         # xflat length (lane axis)
    PH = -(-(maxoff2 + CW) // 128) * 128  # hbuf length (lane axis)

    # Embed the zero-padded input in the flat coordinate system: one pad +
    # reshape, NO transpose (input stays channel-major / NCDHW ordered).
    pads = ((0, 0), (0, 0),
            (lo1, Dx - D - lo1),
            (lo1, SD // SH - H - lo1),
            (lo1, SH - W - lo1))
    assert all(p >= 0 for _, p in pads)
    xflat = jnp.pad(x_ncdhw.astype(jnp.float32), pads).reshape(N, Cin, PF)

    # Validity mask over the CW flat positions (1 where (h,w) is a real voxel).
    pos = jnp.arange(CW, dtype=jnp.int32)
    valid = ((pos % SH) < W) & (((pos // SH) % (SD // SH)) < H)
    mask = valid.astype(jnp.float32).reshape(1, CW)

    # Weights as im2col matrices (C_out, k^3*C_in); fold 0.001*res_bias into conv2.
    scale = 0.001 * params['rb'][0]
    w1m = jnp.transpose(params['w1'], (0, 2, 3, 4, 1)).reshape(hid, K1)
    w2m = jnp.transpose(params['w2'], (0, 2, 3, 4, 1)).reshape(Cout, K2)
    w1m = w1m.astype(jnp.bfloat16)
    w2m = (w2m * scale).astype(jnp.bfloat16)
    b1 = params['b1'].reshape(hid, 1).astype(jnp.float32)
    b2 = (params['b2'] * scale).reshape(Cout, 1).astype(jnp.float32)

    off1 = tuple(kd * SD + kh * SH + kw
                 for kd in range(k1) for kh in range(k1) for kw in range(k1))
    off2 = tuple(kd * SD + kh * SH + kw
                 for kd in range(k2) for kh in range(k2) for kw in range(k2))

    kernel = functools.partial(
        _fused_resnet_kernel, Cin=Cin, hid=hid, CW=CW,
        off1=off1, off2=off2, OFF1=OFF1, OFF2=OFF2, PH=PH)

    out_flat = pl.pallas_call(
        kernel,
        out_shape=jax.ShapeDtypeStruct((N, Cout, CW), jnp.float32),
        grid=(N,),
        in_specs=[
            pl.BlockSpec((1, Cin, PF), lambda n: (n, 0, 0)),
            pl.BlockSpec((hid, K1), lambda n: (0, 0)),
            pl.BlockSpec((hid, 1), lambda n: (0, 0)),
            pl.BlockSpec((Cout, K2), lambda n: (0, 0)),
            pl.BlockSpec((Cout, 1), lambda n: (0, 0)),
            pl.BlockSpec((1, CW), lambda n: (0, 0)),
        ],
        out_specs=pl.BlockSpec((1, Cout, CW), lambda n: (n, 0, 0)),
        scratch_shapes=[
            pltpu.VMEM((K1, CW), jnp.bfloat16),    # conv1 im2col slab
            pltpu.VMEM((hid, PH), jnp.bfloat16),   # flat zero-padded h
            pltpu.VMEM((K2, CW), jnp.bfloat16),    # conv2 im2col slab
        ],
        compiler_params=pltpu.CompilerParams(
            dimension_semantics=("parallel",)),
    )(xflat, w1m, b1, w2m, b2, mask)

    # (N, Cout, CW) is already channel-major: un-flatten and drop the
    # padded-stride columns.  Result is NCDHW directly -- no transpose.
    y = out_flat.reshape(N, Cout, D, SD // SH, SH)[:, :, :, :H, :W]
    return y


def init_params(key, in_ch, hid_ch, out_ch, k1, k2):
    """Deterministic synthetic init mirroring the PyTorch module's shapes."""
    ks = jax.random.split(key, 5)

    def conv_w(k, cout, cin, ksz):
        bound = 1.0 / math.sqrt(cin * ksz ** 3)
        return jax.random.uniform(k, (cout, cin, ksz, ksz, ksz), jnp.float32,
                                  -bound, bound)

    return dict(
        w1=conv_w(ks[0], hid_ch, in_ch, k1),                         # OIDHW
        b1=jax.random.uniform(ks[1], (hid_ch,), jnp.float32, -0.1, 0.1),
        w2=conv_w(ks[2], out_ch, hid_ch, k2),                        # OIDHW
        b2=jax.random.uniform(ks[3], (out_ch,), jnp.float32, -0.1, 0.1),
        rb=jax.random.normal(ks[4], (1,), jnp.float32) * 0.1 + 1.0,  # self.bias
    )


def resnet_forward_ref(x, params, k1, k2):
    """Pure-JAX reference matching the PyTorch forward (NCDHW)."""
    def conv(v, w, b, k):
        lo = (k - 1) // 2
        hi = k - 1 - lo
        y = jax.lax.conv_general_dilated(
            v, w, window_strides=(1, 1, 1), padding=[(lo, hi)] * 3,
            dimension_numbers=('NCDHW', 'OIDHW', 'NCDHW'))
        return y + b[None, :, None, None, None]

    h = jnp.maximum(conv(x, params['w1'], params['b1'], k1), 0.0)
    y = conv(h, params['w2'], params['b2'], k2)
    return 0.001 * params['rb'][0] * y + x


if __name__ == "__main__":
    # Small shapes consistent with the module; the residual requires Cout == Cin.
    N, Cin, Ch, Cout = 2, 4, 8, 4
    D = H = W = 8
    k1, k2 = 3, 3

    key = jax.random.PRNGKey(0)
    kp, kx = jax.random.split(key)
    params = init_params(kp, Cin, Ch, Cout, k1, k2)
    x = jax.random.normal(kx, (N, Cin, D, H, W), jnp.float32)        # PyTorch NCDHW

    out = jax.block_until_ready(resnet_forward_pallas(x, params, k1, k2))
    ref = jax.block_until_ready(resnet_forward_ref(x, params, k1, k2))

    assert out.shape == ref.shape == (N, Cout, D, H, W)
    err = float(jnp.max(jnp.abs(out - ref)))
    assert err < 1e-3, f"max abs err {err}"
    print("KERNEL_OK")
</pallas_src>

<mosaic_0001>
module attributes {stable_mosaic.version = 11 : i64} {
  func.func @_fused_resnet_kernel(%arg0: i32, %arg1: memref<1x4x1760xf32, #tpu.memory_space<vmem>>, %arg2: memref<8x108xbf16, #tpu.memory_space<vmem>>, %arg3: memref<8x1xf32, #tpu.memory_space<vmem>>, %arg4: memref<4x216xbf16, #tpu.memory_space<vmem>>, %arg5: memref<4x1xf32, #tpu.memory_space<vmem>>, %arg6: memref<1x1280xf32, #tpu.memory_space<vmem>>, %arg7: memref<1x4x1280xf32, #tpu.memory_space<vmem>>, %arg8: memref<108x1280xbf16, #tpu.memory_space<vmem>>, %arg9: memref<8x1664xbf16, #tpu.memory_space<vmem>>, %arg10: memref<216x1280xbf16, #tpu.memory_space<vmem>>) attributes {dimension_semantics = [#tpu.dimension_semantics<parallel>], iteration_bounds = array<i64: 2>, scalar_prefetch = 0 : i64, scratch_operands = 3 : i64, tpu.core_type = #tpu.core_type<tc>, window_params = [{transform_indices = @transform_0, window_bounds = array<i64: 1, 4, 1760>}, {pipeline_mode = #tpu.pipeline_mode<synchronous>, transform_indices = @transform_1, window_bounds = array<i64: 8, 108>}, {pipeline_mode = #tpu.pipeline_mode<synchronous>, transform_indices = @transform_2, window_bounds = array<i64: 8, 1>}, {pipeline_mode = #tpu.pipeline_mode<synchronous>, transform_indices = @transform_3, window_bounds = array<i64: 4, 216>}, {pipeline_mode = #tpu.pipeline_mode<synchronous>, transform_indices = @transform_4, window_bounds = array<i64: 4, 1>}, {pipeline_mode = #tpu.pipeline_mode<synchronous>, transform_indices = @transform_5, window_bounds = array<i64: 1, 1280>}, {transform_indices = @transform_6, window_bounds = array<i64: 1, 4, 1280>}]} {
    %c0 = arith.constant 0 : index
    %c0_0 = arith.constant 0 : index
    %c0_1 = arith.constant 0 : index
    %0 = vector.load %arg1[%c0, %c0_0, %c0_1] : memref<1x4x1760xf32, #tpu.memory_space<vmem>>, vector<1x4x1280xf32>
    %1 = vector.shape_cast %0 : vector<1x4x1280xf32> to vector<4x1280xf32>
    %2 = arith.truncf %1 : vector<4x1280xf32> to vector<4x1280xbf16>
    %c0_2 = arith.constant 0 : index
    %c0_3 = arith.constant 0 : index
    %3 = vector.load %arg8[%c0_2, %c0_3] : memref<108x1280xbf16, #tpu.memory_space<vmem>>, vector<4x1280xbf16>
    tpu.vector_store %arg8[%c0_2, %c0_3], %2 {strides = array<i32>} : memref<108x1280xbf16, #tpu.memory_space<vmem>>, vector<4x1280xbf16>,
    %c0_4 = arith.constant 0 : index
    %c0_5 = arith.constant 0 : index
    %c1 = arith.constant 1 : index
    %4 = vector.load %arg1[%c0_4, %c0_5, %c1] : memref<1x4x1760xf32, #tpu.memory_space<vmem>>, vector<1x4x1280xf32>
    %5 = vector.shape_cast %4 : vector<1x4x1280xf32> to vector<4x1280xf32>
    %6 = arith.truncf %5 : vector<4x1280xf32> to vector<4x1280xbf16>
    %c4 = arith.constant 4 : index
    %c0_6 = arith.constant 0 : index
    %7 = vector.load %arg8[%c4, %c0_6] : memref<108x1280xbf16, #tpu.memory_space<vmem>>, vector<4x1280xbf16>
    tpu.vector_store %arg8[%c4, %c0_6], %6 {strides = array<i32>} : memref<108x1280xbf16, #tpu.memory_space<vmem>>, vector<4x1280xbf16>,
    %c0_7 = arith.constant 0 : index
    %c0_8 = arith.constant 0 : index
    %c2 = arith.constant 2 : index
    %8 = vector.load %arg1[%c0_7, %c0_8, %c2] : memref<1x4x1760xf32, #tpu.memory_space<vmem>>, vector<1x4x1280xf32>
    %9 = vector.shape_cast %8 : vector<1x4x1280xf32> to vector<4x1280xf32>
    %10 = arith.truncf %9 : vector<4x1280xf32> to vector<4x1280xbf16>
    %c8 = arith.constant 8 : index
    %c0_9 = arith.constant 0 : index
    %11 = vector.load %arg8[%c8, %c0_9] : memref<108x1280xbf16, #tpu.memory_space<vmem>>, vector<4x1280xbf16>
    tpu.vector_store %arg8[%c8, %c0_9], %10 {strides = array<i32>} : memref<108x1280xbf16, #tpu.memory_space<vmem>>, vector<4x1280xbf16>,
    %c0_10 = arith.constant 0 : index
    %c0_11 = arith.constant 0 : index
    %c10 = arith.constant 10 : index
    %12 = vector.load %arg1[%c0_10, %c0_11, %c10] : memref<1x4x1760xf32, #tpu.memory_space<vmem>>, vector<1x4x1280xf32>
    %13 = vector.shape_cast %12 : vector<1x4x1280xf32> to vector<4x1280xf32>
    %14 = arith.truncf %13 : vector<4x1280xf32> to vector<4x1280xbf16>
    %c12 = arith.constant 12 : index
    %c0_12 = arith.constant 0 : index
    %15 = vector.load %arg8[%c12, %c0_12] : memref<108x1280xbf16, #tpu.memory_space<vmem>>, vector<4x1280xbf16>
    tpu.vector_store %arg8[%c12, %c0_12], %14 {strides = array<i32>} : memref<108x1280xbf16, #tpu.memory_space<vmem>>, vector<4x1280xbf16>,
    %c0_13 = arith.constant 0 : index
    %c0_14 = arith.constant 0 : index
    %c11 = arith.constant 11 : index
    %16 = vector.load %arg1[%c0_13, %c0_14, %c11] : memref<1x4x1760xf32, #tpu.memory_space<vmem>>, vector<1x4x1280xf32>
    %17 = vector.shape_cast %16 : vector<1x4x1280xf32> to vector<4x1280xf32>
    %18 = arith.truncf %17 : vector<4x1280xf32> to vector<4x1280xbf16>
    %c16 = arith.constant 16 : index
    %c0_15 = arith.constant 0 : index
    %19 = vector.load %arg8[%c16, %c0_15] : memref<108x1280xbf16, #tpu.memory_space<vmem>>, vector<4x1280xbf16>
    tpu.vector_store %arg8[%c16, %c0_15], %18 {strides = array<i32>} : memref<108x1280xbf16, #tpu.memory_space<vmem>>, vector<4x1280xbf16>,
    %c0_16 = arith.constant 0 : index
    %c0_17 = arith.constant 0 : index
    %c12_18 = arith.constant 12 : index
    %20 = vector.load %arg1[%c0_16, %c0_17, %c12_18] : memref<1x4x1760xf32, #tpu.memory_space<vmem>>, vector<1x4x1280xf32>
    %21 = vector.shape_cast %20 : vector<1x4x1280xf32> to vector<4x1280xf32>
    %22 = arith.truncf %21 : vector<4x1280xf32> to vector<4x1280xbf16>
    %c20 = arith.constant 20 : index
    %c0_19 = arith.constant 0 : index
    %23 = vector.load %arg8[%c20, %c0_19] : memref<108x1280xbf16, #tpu.memory_space<vmem>>, vector<4x1280xbf16>
    tpu.vector_store %arg8[%c20, %c0_19], %22 {strides = array<i32>} : memref<108x1280xbf16, #tpu.memory_space<vmem>>, vector<4x1280xbf16>,
    %c0_20 = arith.constant 0 : index
    %c0_21 = arith.constant 0 : index
    %c20_22 = arith.constant 20 : index
    %24 = vector.load %arg1[%c0_20, %c0_21, %c20_22] : memref<1x4x1760xf32, #tpu.memory_space<vmem>>, vector<1x4x1280xf32>
    %25 = vector.shape_cast %24 : vector<1x4x1280xf32> to vector<4x1280xf32>
    %26 = arith.truncf %25 : vector<4x1280xf32> to vector<4x1280xbf16>
    %c24 = arith.constant 24 : index
    %c0_23 = arith.constant 0 : index
    %27 = vector.load %arg8[%c24, %c0_23] : memref<108x1280xbf16, #tpu.memory_space<vmem>>, vector<4x1280xbf16>
    tpu.vector_store %arg8[%c24, %c0_23], %26 {strides = array<i32>} : memref<108x1280xbf16, #tpu.memory_space<vmem>>, vector<4x1280xbf16>,
    %c0_24 = arith.constant 0 : index
    %c0_25 = arith.constant 0 : index
    %c21 = arith.constant 21 : index
    %28 = vector.load %arg1[%c0_24, %c0_25, %c21] : memref<1x4x1760xf32, #tpu.memory_space<vmem>>, vector<1x4x1280xf32>
    %29 = vector.shape_cast %28 : vector<1x4x1280xf32> to vector<4x1280xf32>
    %30 = arith.truncf %29 : vector<4x1280xf32> to vector<4x1280xbf16>
    %c28 = arith.constant 28 : index
    %c0_26 = arith.constant 0 : index
    %31 = vector.load %arg8[%c28, %c0_26] : memref<108x1280xbf16, #tpu.memory_space<vmem>>, vector<4x1280xbf16>
    tpu.vector_store %arg8[%c28, %c0_26], %30 {strides = array<i32>} : memref<108x1280xbf16, #tpu.memory_space<vmem>>, vector<4x1280xbf16>,
    %c0_27 = arith.constant 0 : index
    %c0_28 = arith.constant 0 : index
    %c22 = arith.constant 22 : index
    %32 = vector.load %arg1[%c0_27, %c0_28, %c22] : memref<1x4x1760xf32, #tpu.memory_space<vmem>>, vector<1x4x1280xf32>
    %33 = vector.shape_cast %32 : vector<1x4x1280xf32> to vector<4x1280xf32>
    %34 = arith.truncf %33 : vector<4x1280xf32> to vector<4x1280xbf16>
    %c32 = arith.constant 32 : index
    %c0_29 = arith.constant 0 : index
    %35 = vector.load %arg8[%c32, %c0_29] : memref<108x1280xbf16, #tpu.memory_space<vmem>>, vector<4x1280xbf16>
    tpu.vector_store %arg8[%c32, %c0_29], %34 {strides = array<i32>} : memref<108x1280xbf16, #tpu.memory_space<vmem>>, vector<4x1280xbf16>,
    %c0_30 = arith.constant 0 : index
    %c0_31 = arith.constant 0 : index
    %c160 = arith.constant 160 : index
    %36 = vector.load %arg1[%c0_30, %c0_31, %c160] : memref<1x4x1760xf32, #tpu.memory_space<vmem>>, vector<1x4x1280xf32>
    %37 = vector.shape_cast %36 : vector<1x4x1280xf32> to vector<4x1280xf32>
    %38 = arith.truncf %37 : vector<4x1280xf32> to vector<4x1280xbf16>
    %c36 = arith.constant 36 : index
    %c0_32 = arith.constant 0 : index
    %39 = vector.load %arg8[%c36, %c0_32] : memref<108x1280xbf16, #tpu.memory_space<vmem>>, vector<4x1280xbf16>
    tpu.vector_store %arg8[%c36, %c0_32], %38 {strides = array<i32>} : memref<108x1280xbf16, #tpu.memory_space<vmem>>, vector<4x1280xbf16>,
    %c0_33 = arith.constant 0 : index
    %c0_34 = arith.constant 0 : index
    %c161 = arith.constant 161 : index
    %40 = vector.load %arg1[%c0_33, %c0_34, %c161] : memref<1x4x1760xf32, #tpu.memory_space<vmem>>, vector<1x4x1280xf32>
    %41 = vector.shape_cast %40 : vector<1x4x1280xf32> to vector<4x1280xf32>
    %42 = arith.truncf %41 : vector<4x1280xf32> to vector<4x1280xbf16>
    %c40 = arith.constant 40 : index
    %c0_35 = arith.constant 0 : index
    %43 = vector.load %arg8[%c40, %c0_35] : memref<108x1280xbf16, #tpu.memory_space<vmem>>, vector<4x1280xbf16>
    tpu.vector_store %arg8[%c40, %c0_35], %42 {strides = array<i32>} : memref<108x1280xbf16, #tpu.memory_space<vmem>>, vector<4x1280xbf16>,
    %c0_36 = arith.constant 0 : index
    %c0_37 = arith.constant 0 : index
    %c162 = arith.constant 162 : index
    %44 = vector.load %arg1[%c0_36, %c0_37, %c162] : memref<1x4x1760xf32, #tpu.memory_space<vmem>>, vector<1x4x1280xf32>
    %45 = vector.shape_cast %44 : vector<1x4x1280xf32> to vector<4x1280xf32>
    %46 = arith.truncf %45 : vector<4x1280xf32> to vector<4x1280xbf16>
    %c44 = arith.constant 44 : index
    %c0_38 = arith.constant 0 : index
    %47 = vector.load %arg8[%c44, %c0_38] : memref<108x1280xbf16, #tpu.memory_space<vmem>>, vector<4x1280xbf16>
    tpu.vector_store %arg8[%c44, %c0_38], %46 {strides = array<i32>} : memref<108x1280xbf16, #tpu.memory_space<vmem>>, vector<4x1280xbf16>,
    %c0_39 = arith.constant 0 : index
    %c0_40 = arith.constant 0 : index
    %c170 = arith.constant 170 : index
    %48 = vector.load %arg1[%c0_39, %c0_40, %c170] : memref<1x4x1760xf32, #tpu.memory_space<vmem>>, vector<1x4x1280xf32>
    %49 = vector.shape_cast %48 : vector<1x4x1280xf32> to vector<4x1280xf32>
    %50 = arith.truncf %49 : vector<4x1280xf32> to vector<4x1280xbf16>
    %c48 = arith.constant 48 : index
    %c0_41 = arith.constant 0 : index
    %51 = vector.load %arg8[%c48, %c0_41] : memref<108x1280xbf16, #tpu.memory_space<vmem>>, vector<4x1280xbf16>
    tpu.vector_store %arg8[%c48, %c0_41], %50 {strides = array<i32>} : memref<108x1280xbf16, #tpu.memory_space<vmem>>, vector<4x1280xbf16>,
    %c0_42 = arith.constant 0 : index
    %c0_43 = arith.constant 0 : index
    %c171 = arith.constant 171 : index
    %52 = vector.load %arg1[%c0_42, %c0_43, %c171] : memref<1x4x1760xf32, #tpu.memory_space<vmem>>, vector<1x4x1280xf32>
    %53 = vector.shape_cast %52 : vector<1x4x1280xf32> to vector<4x1280xf32>
    %54 = arith.truncf %53 : vector<4x1280xf32> to vector<4x1280xbf16>
    %c52 = arith.constant 52 : index
    %c0_44 = arith.constant 0 : index
    %55 = vector.load %arg8[%c52, %c0_44] : memref<108x1280xbf16, #tpu.memory_space<vmem>>, vector<4x1280xbf16>
    tpu.vector_store %arg8[%c52, %c0_44], %54 {strides = array<i32>} : memref<108x1280xbf16, #tpu.memory_space<vmem>>, vector<4x1280xbf16>,
    %c0_45 = arith.constant 0 : index
    %c0_46 = arith.constant 0 : index
    %c172 = arith.constant 172 : index
    %56 = vector.load %arg1[%c0_45, %c0_46, %c172] : memref<1x4x1760xf32, #tpu.memory_space<vmem>>, vector<1x4x1280xf32>
    %57 = vector.shape_cast %56 : vector<1x4x1280xf32> to vector<4x1280xf32>
    %58 = arith.truncf %57 : vector<4x1280xf32> to vector<4x1280xbf16>
    %c56 = arith.constant 56 : index
    %c0_47 = arith.constant 0 : index
    %59 = vector.load %arg8[%c56, %c0_47] : memref<108x1280xbf16, #tpu.memory_space<vmem>>, vector<4x1280xbf16>
    tpu.vector_store %arg8[%c56, %c0_47], %58 {strides = array<i32>} : memref<108x1280xbf16, #tpu.memory_space<vmem>>, vector<4x1280xbf16>,
    %c0_48 = arith.constant 0 : index
    %c0_49 = arith.constant 0 : index
    %c180 = arith.constant 180 : index
    %60 = vector.load %arg1[%c0_48, %c0_49, %c180] : memref<1x4x1760xf32, #tpu.memory_space<vmem>>, vector<1x4x1280xf32>
    %61 = vector.shape_cast %60 : vector<1x4x1280xf32> to vector<4x1280xf32>
    %62 = arith.truncf %61 : vector<4x1280xf32> to vector<4x1280xbf16>
    %c60 = arith.constant 60 : index
    %c0_50 = arith.constant 0 : index
    %63 = vector.load %arg8[%c60, %c0_50] : memref<108x1280xbf16, #tpu.memory_space<vmem>>, vector<4x1280xbf16>
    tpu.vector_store %arg8[%c60, %c0_50], %62 {strides = array<i32>} : memref<108x1280xbf16, #tpu.memory_space<vmem>>, vector<4x1280xbf16>,
    %c0_51 = arith.constant 0 : index
    %c0_52 = arith.constant 0 : index
    %c181 = arith.constant 181 : index
    %64 = vector.load %arg1[%c0_51, %c0_52, %c181] : memref<1x4x1760xf32, #tpu.memory_space<vmem>>, vector<1x4x1280xf32>
    %65 = vector.shape_cast %64 : vector<1x4x1280xf32> to vector<4x1280xf32>
    %66 = arith.truncf %65 : vector<4x1280xf32> to vector<4x1280xbf16>
    %c64 = arith.constant 64 : index
    %c0_53 = arith.constant 0 : index
    %67 = vector.load %arg8[%c64, %c0_53] : memref<108x1280xbf16, #tpu.memory_space<vmem>>, vector<4x1280xbf16>
    tpu.vector_store %arg8[%c64, %c0_53], %66 {strides = array<i32>} : memref<108x1280xbf16, #tpu.memory_space<vmem>>, vector<4x1280xbf16>,
    %c0_54 = arith.constant 0 : index
    %c0_55 = arith.constant 0 : index
    %c182 = arith.constant 182 : index
    %68 = vector.load %arg1[%c0_54, %c0_55, %c182] : memref<1x4x1760xf32, #tpu.memory_space<vmem>>, vector<1x4x1280xf32>
    %69 = vector.shape_cast %68 : vector<1x4x1280xf32> to vector<4x1280xf32>
    %70 = arith.truncf %69 : vector<4x1280xf32> to vector<4x1280xbf16>
    %c68 = arith.constant 68 : index
    %c0_56 = arith.constant 0 : index
    %71 = vector.load %arg8[%c68, %c0_56] : memref<108x1280xbf16, #tpu.memory_space<vmem>>, vector<4x1280xbf16>
    tpu.vector_store %arg8[%c68, %c0_56], %70 {strides = array<i32>} : memref<108x1280xbf16, #tpu.memory_space<vmem>>, vector<4x1280xbf16>,
    %c0_57 = arith.constant 0 : index
    %c0_58 = arith.constant 0 : index
    %c320 = arith.constant 320 : index
    %72 = vector.load %arg1[%c0_57, %c0_58, %c320] : memref<1x4x1760xf32, #tpu.memory_space<vmem>>, vector<1x4x1280xf32>
    %73 = vector.shape_cast %72 : vector<1x4x1280xf32> to vector<4x1280xf32>
    %74 = arith.truncf %73 : vector<4x1280xf32> to vector<4x1280xbf16>
    %c72 = arith.constant 72 : index
    %c0_59 = arith.constant 0 : index
    %75 = vector.load %arg8[%c72, %c0_59] : memref<108x1280xbf16, #tpu.memory_space<vmem>>, vector<4x1280xbf16>
    tpu.vector_store %arg8[%c72, %c0_59], %74 {strides = array<i32>} : memref<108x1280xbf16, #tpu.memory_space<vmem>>, vector<4x1280xbf16>,
    %c0_60 = arith.constant 0 : index
    %c0_61 = arith.constant 0 : index
    %c321 = arith.constant 321 : index
    %76 = vector.load %arg1[%c0_60, %c0_61, %c321] : memref<1x4x1760xf32, #tpu.memory_space<vmem>>, vector<1x4x1280xf32>
    %77 = vector.shape_cast %76 : vector<1x4x1280xf32> to vector<4x1280xf32>
    %78 = arith.truncf %77 : vector<4x1280xf32> to vector<4x1280xbf16>
    %c76 = arith.constant 76 : index
    %c0_62 = arith.constant 0 : index
    %79 = vector.load %arg8[%c76, %c0_62] : memref<108x1280xbf16, #tpu.memory_space<vmem>>, vector<4x1280xbf16>
    tpu.vector_store %arg8[%c76, %c0_62], %78 {strides = array<i32>} : memref<108x1280xbf16, #tpu.memory_space<vmem>>, vector<4x1280xbf16>,
    %c0_63 = arith.constant 0 : index
    %c0_64 = arith.constant 0 : index
    %c322 = arith.constant 322 : index
    %80 = vector.load %arg1[%c0_63, %c0_64, %c322] : memref<1x4x1760xf32, #tpu.memory_space<vmem>>, vector<1x4x1280xf32>
    %81 = vector.shape_cast %80 : vector<1x4x1280xf32> to vector<4x1280xf32>
    %82 = arith.truncf %81 : vector<4x1280xf32> to vector<4x1280xbf16>
    %c80 = arith.constant 80 : index
    %c0_65 = arith.constant 0 : index
    %83 = vector.load %arg8[%c80, %c0_65] : memref<108x1280xbf16, #tpu.memory_space<vmem>>, vector<4x1280xbf16>
    tpu.vector_store %arg8[%c80, %c0_65], %82 {strides = array<i32>} : memref<108x1280xbf16, #tpu.memory_space<vmem>>, vector<4x1280xbf16>,
    %c0_66 = arith.constant 0 : index
    %c0_67 = arith.constant 0 : index
    %c330 = arith.constant 330 : index
    %84 = vector.load %arg1[%c0_66, %c0_67, %c330] : memref<1x4x1760xf32, #tpu.memory_space<vmem>>, vector<1x4x1280xf32>
    %85 = vector.shape_cast %84 : vector<1x4x1280xf32> to vector<4x1280xf32>
    %86 = arith.truncf %85 : vector<4x1280xf32> to vector<4x1280xbf16>
    %c84 = arith.constant 84 : index
    %c0_68 = arith.constant 0 : index
    %87 = vector.load %arg8[%c84, %c0_68] : memref<108x1280xbf16, #tpu.memory_space<vmem>>, vector<4x1280xbf16>
    tpu.vector_store %arg8[%c84, %c0_68], %86 {strides = array<i32>} : memref<108x1280xbf16, #tpu.memory_space<vmem>>, vector<4x1280xbf16>,
    %c0_69 = arith.constant 0 : index
    %c0_70 = arith.constant 0 : index
    %c331 = arith.constant 331 : index
    %88 = vector.load %arg1[%c0_69, %c0_70, %c331] : memref<1x4x1760xf32, #tpu.memory_space<vmem>>, vector<1x4x1280xf32>
    %89 = vector.shape_cast %88 : vector<1x4x1280xf32> to vector<4x1280xf32>
    %90 = arith.truncf %89 : vector<4x1280xf32> to vector<4x1280xbf16>
    %c88 = arith.constant 88 : index
    %c0_71 = arith.constant 0 : index
    %91 = vector.load %arg8[%c88, %c0_71] : memref<108x1280xbf16, #tpu.memory_space<vmem>>, vector<4x1280xbf16>
    tpu.vector_store %arg8[%c88, %c0_71], %90 {strides = array<i32>} : memref<108x1280xbf16, #tpu.memory_space<vmem>>, vector<4x1280xbf16>,
    %c0_72 = arith.constant 0 : index
    %c0_73 = arith.constant 0 : index
    %c332 = arith.constant 332 : index
    %92 = vector.load %arg1[%c0_72, %c0_73, %c332] : memref<1x4x1760xf32, #tpu.memory_space<vmem>>, vector<1x4x1280xf32>
    %93 = vector.shape_cast %92 : vector<1x4x1280xf32> to vector<4x1280xf32>
    %94 = arith.truncf %93 : vector<4x1280xf32> to vector<4x1280xbf16>
    %c92 = arith.constant 92 : index
    %c0_74 = arith.constant 0 : index
    %95 = vector.load %arg8[%c92, %c0_74] : memref<108x1280xbf16, #tpu.memory_space<vmem>>, vector<4x1280xbf16>
    tpu.vector_store %arg8[%c92, %c0_74], %94 {strides = array<i32>} : memref<108x1280xbf16, #tpu.memory_space<vmem>>, vector<4x1280xbf16>,
    %c0_75 = arith.constant 0 : index
    %c0_76 = arith.constant 0 : index
    %c340 = arith.constant 340 : index
    %96 = vector.load %arg1[%c0_75, %c0_76, %c340] : memref<1x4x1760xf32, #tpu.memory_space<vmem>>, vector<1x4x1280xf32>
    %97 = vector.shape_cast %96 : vector<1x4x1280xf32> to vector<4x1280xf32>
    %98 = arith.truncf %97 : vector<4x1280xf32> to vector<4x1280xbf16>
    %c96 = arith.constant 96 : index
    %c0_77 = arith.constant 0 : index
    %99 = vector.load %arg8[%c96, %c0_77] : memref<108x1280xbf16, #tpu.memory_space<vmem>>, vector<4x1280xbf16>
    tpu.vector_store %arg8[%c96, %c0_77], %98 {strides = array<i32>} : memref<108x1280xbf16, #tpu.memory_space<vmem>>, vector<4x1280xbf16>,
    %c0_78 = arith.constant 0 : index
    %c0_79 = arith.constant 0 : index
    %c341 = arith.constant 341 : index
    %100 = vector.load %arg1[%c0_78, %c0_79, %c341] : memref<1x4x1760xf32, #tpu.memory_space<vmem>>, vector<1x4x1280xf32>
    %101 = vector.shape_cast %100 : vector<1x4x1280xf32> to vector<4x1280xf32>
    %102 = arith.truncf %101 : vector<4x1280xf32> to vector<4x1280xbf16>
    %c100 = arith.constant 100 : index
    %c0_80 = arith.constant 0 : index
    %103 = vector.load %arg8[%c100, %c0_80] : memref<108x1280xbf16, #tpu.memory_space<vmem>>, vector<4x1280xbf16>
    tpu.vector_store %arg8[%c100, %c0_80], %102 {strides = array<i32>} : memref<108x1280xbf16, #tpu.memory_space<vmem>>, vector<4x1280xbf16>,
    %c0_81 = arith.constant 0 : index
    %c0_82 = arith.constant 0 : index
    %c342 = arith.constant 342 : index
    %104 = vector.load %arg1[%c0_81, %c0_82, %c342] : memref<1x4x1760xf32, #tpu.memory_space<vmem>>, vector<1x4x1280xf32>
    %105 = vector.shape_cast %104 : vector<1x4x1280xf32> to vector<4x1280xf32>
    %106 = arith.truncf %105 : vector<4x1280xf32> to vector<4x1280xbf16>
    %c104 = arith.constant 104 : index
    %c0_83 = arith.constant 0 : index
    %107 = vector.load %arg8[%c104, %c0_83] : memref<108x1280xbf16, #tpu.memory_space<vmem>>, vector<4x1280xbf16>
    tpu.vector_store %arg8[%c104, %c0_83], %106 {strides = array<i32>} : memref<108x1280xbf16, #tpu.memory_space<vmem>>, vector<4x1280xbf16>,
    %c0_84 = arith.constant 0 : index
    %c0_85 = arith.constant 0 : index
    %108 = vector.load %arg2[%c0_84, %c0_85] : memref<8x108xbf16, #tpu.memory_space<vmem>>, vector<8x108xbf16>
    %c0_86 = arith.constant 0 : index
    %c0_87 = arith.constant 0 : index
    %109 = vector.load %arg8[%c0_86, %c0_87] : memref<108x1280xbf16, #tpu.memory_space<vmem>>, vector<108x1280xbf16>
    %cst = arith.constant dense<0.000000e+00> : vector<8x1280xf32>
    %110 = tpu.matmul %108, %109, %cst {dimension_numbers = #tpu.dot_dimension_numbers<[1], [0], [0], [1], [0, 0, 1, 1], [], []>} : vector<8x108xbf16>, vector<108x1280xbf16>, vector<8x1280xf32> -> vector<8x1280xf32>
    %c0_88 = arith.constant 0 : index
    %c0_89 = arith.constant 0 : index
    %111 = vector.load %arg3[%c0_88, %c0_89] : memref<8x1xf32, #tpu.memory_space<vmem>>, vector<8x1xf32>
    %112 = vector.broadcast %111 : vector<8x1xf32> to vector<8x1280xf32>
    %113 = arith.addf %110, %112 : vector<8x1280xf32>
    %cst_90 = arith.constant 0.000000e+00 : f32
    %114 = vector.broadcast %cst_90 : f32 to vector<8x1280xf32>
    %115 = arith.maximumf %113, %114 : vector<8x1280xf32>
    %c0_91 = arith.constant 0 : index
    %c0_92 = arith.constant 0 : index
    %116 = vector.load %arg6[%c0_91, %c0_92] : memref<1x1280xf32, #tpu.memory_space<vmem>>, vector<1x1280xf32>
    %117 = vector.broadcast %116 : vector<1x1280xf32> to vector<8x1280xf32>
    %118 = arith.mulf %115, %117 : vector<8x1280xf32>
    %cst_93 = arith.constant 0.000000e+00 : bf16
    %119 = vector.broadcast %cst_93 : bf16 to vector<8x171xbf16>
    %c0_94 = arith.constant 0 : index
    %c0_95 = arith.constant 0 : index
    %120 = vector.load %arg9[%c0_94, %c0_95] : memref<8x1664xbf16, #tpu.memory_space<vmem>>, vector<8x171xbf16>
    tpu.vector_store %arg9[%c0_94, %c0_95], %119 {strides = array<i32>} : memref<8x1664xbf16, #tpu.memory_space<vmem>>, vector<8x171xbf16>,
    %cst_96 = arith.constant 0.000000e+00 : bf16
    %121 = vector.broadcast %cst_96 : bf16 to vector<8x213xbf16>
    %c0_97 = arith.constant 0 : index
    %c1451 = arith.constant 1451 : index
    %122 = vector.load %arg9[%c0_97, %c1451] : memref<8x1664xbf16, #tpu.memory_space<vmem>>, vector<8x213xbf16>
    tpu.vector_store %arg9[%c0_97, %c1451], %121 {strides = array<i32>} : memref<8x1664xbf16, #tpu.memory_space<vmem>>, vector<8x213xbf16>,
    %123 = arith.truncf %118 : vector<8x1280xf32> to vector<8x1280xbf16>
    %c0_98 = arith.constant 0 : index
    %c171_99 = arith.constant 171 : index
    %124 = vector.load %arg9[%c0_98, %c171_99] : memref<8x1664xbf16, #tpu.memory_space<vmem>>, vector<8x1280xbf16>
    tpu.vector_store %arg9[%c0_98, %c171_99], %123 {strides = array<i32>} : memref<8x1664xbf16, #tpu.memory_space<vmem>>, vector<8x1280xbf16>,
    %c0_100 = arith.constant 0 : index
    %c0_101 = arith.constant 0 : index
    %125 = vector.load %arg9[%c0_100, %c0_101] : memref<8x1664xbf16, #tpu.memory_space<vmem>>, vector<8x1280xbf16>
    %c0_102 = arith.constant 0 : index
    %c0_103 = arith.constant 0 : index
    %126 = vector.load %arg10[%c0_102, %c0_103] : memref<216x1280xbf16, #tpu.memory_space<vmem>>, vector<8x1280xbf16>
    tpu.vector_store %arg10[%c0_102, %c0_103], %125 {strides = array<i32>} : memref<216x1280xbf16, #tpu.memory_space<vmem>>, vector<8x1280xbf16>,
    %c0_104 = arith.constant 0 : index
    %c1_105 = arith.constant 1 : index
    %127 = vector.load %arg9[%c0_104, %c1_105] : memref<8x1664xbf16, #tpu.memory_space<vmem>>, vector<8x1280xbf16>
    %c8_106 = arith.constant 8 : index
    %c0_107 = arith.constant 0 : index
    %128 = vector.load %arg10[%c8_106, %c0_107] : memref<216x1280xbf16, #tpu.memory_space<vmem>>, vector<8x1280xbf16>
    tpu.vector_store %arg10[%c8_106, %c0_107], %127 {strides = array<i32>} : memref<216x1280xbf16, #tpu.memory_space<vmem>>, vector<8x1280xbf16>,
    %c0_108 = arith.constant 0 : index
    %c2_109 = arith.constant 2 : index
    %129 = vector.load %arg9[%c0_108, %c2_109] : memref<8x1664xbf16, #tpu.memory_space<vmem>>, vector<8x1280xbf16>
    %c16_110 = arith.constant 16 : index
    %c0_111 = arith.constant 0 : index
    %130 = vector.load %arg10[%c16_110, %c0_111] : memref<216x1280xbf16, #tpu.memory_space<vmem>>, vector<8x1280xbf16>
    tpu.vector_store %arg10[%c16_110, %c0_111], %129 {strides = array<i32>} : memref<216x1280xbf16, #tpu.memory_space<vmem>>, vector<8x1280xbf16>,
    %c0_112 = arith.constant 0 : index
    %c10_113 = arith.constant 10 : index
    %131 = vector.load %arg9[%c0_112, %c10_113] : memref<8x1664xbf16, #tpu.memory_space<vmem>>, vector<8x1280xbf16>
    %c24_114 = arith.constant 24 : index
    %c0_115 = arith.constant 0 : index
    %132 = vector.load %arg10[%c24_114, %c0_115] : memref<216x1280xbf16, #tpu.memory_space<vmem>>, vector<8x1280xbf16>
    tpu.vector_store %arg10[%c24_114, %c0_115], %131 {strides = array<i32>} : memref<216x1280xbf16, #tpu.memory_space<vmem>>, vector<8x1280xbf16>,
    %c0_116 = arith.constant 0 : index
    %c11_117 = arith.constant 11 : index
    %133 = vector.load %arg9[%c0_116, %c11_117] : memref<8x1664xbf16, #tpu.memory_space<vmem>>, vector<8x1280xbf16>
    %c32_118 = arith.constant 32 : index
    %c0_119 = arith.constant 0 : index
    %134 = vector.load %arg10[%c32_118, %c0_119] : memref<216x1280xbf16, #tpu.memory_space<vmem>>, vector<8x1280xbf16>
    tpu.vector_store %arg10[%c32_118, %c0_119], %133 {strides = array<i32>} : memref<216x1280xbf16, #tpu.memory_space<vmem>>, vector<8x1280xbf16>,
    %c0_120 = arith.constant 0 : index
    %c12_121 = arith.constant 12 : index
    %135 = vector.load %arg9[%c0_120, %c12_121] : memref<8x1664xbf16, #tpu.memory_space<vmem>>, vector<8x1280xbf16>
    %c40_122 = arith.constant 40 : index
    %c0_123 = arith.constant 0 : index
    %136 = vector.load %arg10[%c40_122, %c0_123] : memref<216x1280xbf16, #tpu.memory_space<vmem>>, vector<8x1280xbf16>
    tpu.vector_store %arg10[%c40_122, %c0_123], %135 {strides = array<i32>} : memref<216x1280xbf16, #tpu.memory_space<vmem>>, vector<8x1280xbf16>,
    %c0_124 = arith.constant 0 : index
    %c20_125 = arith.constant 20 : index
    %137 = vector.load %arg9[%c0_124, %c20_125] : memref<8x1664xbf16, #tpu.memory_space<vmem>>, vector<8x1280xbf16>
    %c48_126 = arith.constant 48 : index
    %c0_127 = arith.constant 0 : index
    %138 = vector.load %arg10[%c48_126, %c0_127] : memref<216x1280xbf16, #tpu.memory_space<vmem>>, vector<8x1280xbf16>
    tpu.vector_store %arg10[%c48_126, %c0_127], %137 {strides = array<i32>} : memref<216x1280xbf16, #tpu.memory_space<vmem>>, vector<8x1280xbf16>,
    %c0_128 = arith.constant 0 : index
    %c21_129 = arith.constant 21 : index
    %139 = vector.load %arg9[%c0_128, %c21_129] : memref<8x1664xbf16, #tpu.memory_space<vmem>>, vector<8x1280xbf16>
    %c56_130 = arith.constant 56 : index
    %c0_131 = arith.constant 0 : index
    %140 = vector.load %arg10[%c56_130, %c0_131] : memref<216x1280xbf16, #tpu.memory_space<vmem>>, vector<8x1280xbf16>
    tpu.vector_store %arg10[%c56_130, %c0_131], %139 {strides = array<i32>} : memref<216x1280xbf16, #tpu.memory_space<vmem>>, vector<8x1280xbf16>,
    %c0_132 = arith.constant 0 : index
    %c22_133 = arith.constant 22 : index
    %141 = vector.load %arg9[%c0_132, %c22_133] : memref<8x1664xbf16, #tpu.memory_space<vmem>>, vector<8x1280xbf16>
    %c64_134 = arith.constant 64 : index
    %c0_135 = arith.constant 0 : index
    %142 = vector.load %arg10[%c64_134, %c0_135] : memref<216x1280xbf16, #tpu.memory_space<vmem>>, vector<8x1280xbf16>
    tpu.vector_store %arg10[%c64_134, %c0_135], %141 {strides = array<i32>} : memref<216x1280xbf16, #tpu.memory_space<vmem>>, vector<8x1280xbf16>,
    %c0_136 = arith.constant 0 : index
    %c160_137 = arith.constant 160 : index
    %143 = vector.load %arg9[%c0_136, %c160_137] : memref<8x1664xbf16, #tpu.memory_space<vmem>>, vector<8x1280xbf16>
    %c72_138 = arith.constant 72 : index
    %c0_139 = arith.constant 0 : index
    %144 = vector.load %arg10[%c72_138, %c0_139] : memref<216x1280xbf16, #tpu.memory_space<vmem>>, vector<8x1280xbf16>
    tpu.vector_store %arg10[%c72_138, %c0_139], %143 {strides = array<i32>} : memref<216x1280xbf16, #tpu.memory_space<vmem>>, vector<8x1280xbf16>,
    %c0_140 = arith.constant 0 : index
    %c161_141 = arith.constant 161 : index
    %145 = vector.load %arg9[%c0_140, %c161_141] : memref<8x1664xbf16, #tpu.memory_space<vmem>>, vector<8x1280xbf16>
    %c80_142 = arith.constant 80 : index
    %c0_143 = arith.constant 0 : index
    %146 = vector.load %arg10[%c80_142, %c0_143] : memref<216x1280xbf16, #tpu.memory_space<vmem>>, vector<8x1280xbf16>
    tpu.vector_store %arg10[%c80_142, %c0_143], %145 {strides = array<i32>} : memref<216x1280xbf16, #tpu.memory_space<vmem>>, vector<8x1280xbf16>,
    %c0_144 = arith.constant 0 : index
    %c162_145 = arith.constant 162 : index
    %147 = vector.load %arg9[%c0_144, %c162_145] : memref<8x1664xbf16, #tpu.memory_space<vmem>>, vector<8x1280xbf16>
    %c88_146 = arith.constant 88 : index
    %c0_147 = arith.constant 0 : index
    %148 = vector.load %arg10[%c88_146, %c0_147] : memref<216x1280xbf16, #tpu.memory_space<vmem>>, vector<8x1280xbf16>
    tpu.vector_store %arg10[%c88_146, %c0_147], %147 {strides = array<i32>} : memref<216x1280xbf16, #tpu.memory_space<vmem>>, vector<8x1280xbf16>,
    %c0_148 = arith.constant 0 : index
    %c170_149 = arith.constant 170 : index
    %149 = vector.load %arg9[%c0_148, %c170_149] : memref<8x1664xbf16, #tpu.memory_space<vmem>>, vector<8x1280xbf16>
    %c96_150 = arith.constant 96 : index
    %c0_151 = arith.constant 0 : index
    %150 = vector.load %arg10[%c96_150, %c0_151] : memref<216x1280xbf16, #tpu.memory_space<vmem>>, vector<8x1280xbf16>
    tpu.vector_store %arg10[%c96_150, %c0_151], %149 {strides = array<i32>} : memref<216x1280xbf16, #tpu.memory_space<vmem>>, vector<8x1280xbf16>,
    %c0_152 = arith.constant 0 : index
    %c171_153 = arith.constant 171 : index
    %151 = vector.load %arg9[%c0_152, %c171_153] : memref<8x1664xbf16, #tpu.memory_space<vmem>>, vector<8x1280xbf16>
    %c104_154 = arith.constant 104 : index
    %c0_155 = arith.constant 0 : index
    %152 = vector.load %arg10[%c104_154, %c0_155] : memref<216x1280xbf16, #tpu.memory_space<vmem>>, vector<8x1280xbf16>
    tpu.vector_store %arg10[%c104_154, %c0_155], %151 {strides = array<i32>} : memref<216x1280xbf16, #tpu.memory_space<vmem>>, vector<8x1280xbf16>,
    %c0_156 = arith.constant 0 : index
    %c172_157 = arith.constant 172 : index
    %153 = vector.load %arg9[%c0_156, %c172_157] : memref<8x1664xbf16, #tpu.memory_space<vmem>>, vector<8x1280xbf16>
    %c112 = arith.constant 112 : index
    %c0_158 = arith.constant 0 : index
    %154 = vector.load %arg10[%c112, %c0_158] : memref<216x1280xbf16, #tpu.memory_space<vmem>>, vector<8x1280xbf16>
    tpu.vector_store %arg10[%c112, %c0_158], %153 {strides = array<i32>} : memref<216x1280xbf16, #tpu.memory_space<vmem>>, vector<8x1280xbf16>,
    %c0_159 = arith.constant 0 : index
    %c180_160 = arith.constant 180 : index
    %155 = vector.load %arg9[%c0_159, %c180_160] : memref<8x1664xbf16, #tpu.memory_space<vmem>>, vector<8x1280xbf16>
    %c120 = arith.constant 120 : index
    %c0_161 = arith.constant 0 : index
    %156 = vector.load %arg10[%c120, %c0_161] : memref<216x1280xbf16, #tpu.memory_space<vmem>>, vector<8x1280xbf16>
    tpu.vector_store %arg10[%c120, %c0_161], %155 {strides = array<i32>} : memref<216x1280xbf16, #tpu.memory_space<vmem>>, vector<8x1280xbf16>,
    %c0_162 = arith.constant 0 : index
    %c181_163 = arith.constant 181 : index
    %157 = vector.load %arg9[%c0_162, %c181_163] : memref<8x1664xbf16, #tpu.memory_space<vmem>>, vector<8x1280xbf16>
    %c128 = arith.constant 128 : index
    %c0_164 = arith.constant 0 : index
    %158 = vector.load %arg10[%c128, %c0_164] : memref<216x1280xbf16, #tpu.memory_space<vmem>>, vector<8x1280xbf16>
    tpu.vector_store %arg10[%c128, %c0_164], %157 {strides = array<i32>} : memref<216x1280xbf16, #tpu.memory_space<vmem>>, vector<8x1280xbf16>,
    %c0_165 = arith.constant 0 : index
    %c182_166 = arith.constant 182 : index
    %159 = vector.load %arg9[%c0_165, %c182_166] : memref<8x1664xbf16, #tpu.memory_space<vmem>>, vector<8x1280xbf16>
    %c136 = arith.constant 136 : index
    %c0_167 = arith.constant 0 : index
    %160 = vector.load %arg10[%c136, %c0_167] : memref<216x1280xbf16, #tpu.memory_space<vmem>>, vector<8x1280xbf16>
    tpu.vector_store %arg10[%c136, %c0_167], %159 {strides = array<i32>} : memref<216x1280xbf16, #tpu.memory_space<vmem>>, vector<8x1280xbf16>,
    %c0_168 = arith.constant 0 : index
    %c320_169 = arith.constant 320 : index
    %161 = vector.load %arg9[%c0_168, %c320_169] : memref<8x1664xbf16, #tpu.memory_space<vmem>>, vector<8x1280xbf16>
    %c144 = arith.constant 144 : index
    %c0_170 = arith.constant 0 : index
    %162 = vector.load %arg10[%c144, %c0_170] : memref<216x1280xbf16, #tpu.memory_space<vmem>>, vector<8x1280xbf16>
    tpu.vector_store %arg10[%c144, %c0_170], %161 {strides = array<i32>} : memref<216x1280xbf16, #tpu.memory_space<vmem>>, vector<8x1280xbf16>,
    %c0_171 = arith.constant 0 : index
    %c321_172 = arith.constant 321 : index
    %163 = vector.load %arg9[%c0_171, %c321_172] : memref<8x1664xbf16, #tpu.memory_space<vmem>>, vector<8x1280xbf16>
    %c152 = arith.constant 152 : index
    %c0_173 = arith.constant 0 : index
    %164 = vector.load %arg10[%c152, %c0_173] : memref<216x1280xbf16, #tpu.memory_space<vmem>>, vector<8x1280xbf16>
    tpu.vector_store %arg10[%c152, %c0_173], %163 {strides = array<i32>} : memref<216x1280xbf16, #tpu.memory_space<vmem>>, vector<8x1280xbf16>,
    %c0_174 = arith.constant 0 : index
    %c322_175 = arith.constant 322 : index
    %165 = vector.load %arg9[%c0_174, %c322_175] : memref<8x1664xbf16, #tpu.memory_space<vmem>>, vector<8x1280xbf16>
    %c160_176 = arith.constant 160 : index
    %c0_177 = arith.constant 0 : index
    %166 = vector.load %arg10[%c160_176, %c0_177] : memref<216x1280xbf16, #tpu.memory_space<vmem>>, vector<8x1280xbf16>
    tpu.vector_store %arg10[%c160_176, %c0_177], %165 {strides = array<i32>} : memref<216x1280xbf16, #tpu.memory_space<vmem>>, vector<8x1280xbf16>,
    %c0_178 = arith.constant 0 : index
    %c330_179 = arith.constant 330 : index
    %167 = vector.load %arg9[%c0_178, %c330_179] : memref<8x1664xbf16, #tpu.memory_space<vmem>>, vector<8x1280xbf16>
    %c168 = arith.constant 168 : index
    %c0_180 = arith.constant 0 : index
    %168 = vector.load %arg10[%c168, %c0_180] : memref<216x1280xbf16, #tpu.memory_space<vmem>>, vector<8x1280xbf16>
    tpu.vector_store %arg10[%c168, %c0_180], %167 {strides = array<i32>} : memref<216x1280xbf16, #tpu.memory_space<vmem>>, vector<8x1280xbf16>,
    %c0_181 = arith.constant 0 : index
    %c331_182 = arith.constant 331 : index
    %169 = vector.load %arg9[%c0_181, %c331_182] : memref<8x1664xbf16, #tpu.memory_space<vmem>>, vector<8x1280xbf16>
    %c176 = arith.constant 176 : index
    %c0_183 = arith.constant 0 : index
    %170 = vector.load %arg10[%c176, %c0_183] : memref<216x1280xbf16, #tpu.memory_space<vmem>>, vector<8x1280xbf16>
    tpu.vector_store %arg10[%c176, %c0_183], %169 {strides = array<i32>} : memref<216x1280xbf16, #tpu.memory_space<vmem>>, vector<8x1280xbf16>,
    %c0_184 = arith.constant 0 : index
    %c332_185 = arith.constant 332 : index
    %171 = vector.load %arg9[%c0_184, %c332_185] : memref<8x1664xbf16, #tpu.memory_space<vmem>>, vector<8x1280xbf16>
    %c184 = arith.constant 184 : index
    %c0_186 = arith.constant 0 : index
    %172 = vector.load %arg10[%c184, %c0_186] : memref<216x1280xbf16, #tpu.memory_space<vmem>>, vector<8x1280xbf16>
    tpu.vector_store %arg10[%c184, %c0_186], %171 {strides = array<i32>} : memref<216x1280xbf16, #tpu.memory_space<vmem>>, vector<8x1280xbf16>,
    %c0_187 = arith.constant 0 : index
    %c340_188 = arith.constant 340 : index
    %173 = vector.load %arg9[%c0_187, %c340_188] : memref<8x1664xbf16, #tpu.memory_space<vmem>>, vector<8x1280xbf16>
    %c192 = arith.constant 192 : index
    %c0_189 = arith.constant 0 : index
    %174 = vector.load %arg10[%c192, %c0_189] : memref<216x1280xbf16, #tpu.memory_space<vmem>>, vector<8x1280xbf16>
    tpu.vector_store %arg10[%c192, %c0_189], %173 {strides = array<i32>} : memref<216x1280xbf16, #tpu.memory_space<vmem>>, vector<8x1280xbf16>,
    %c0_190 = arith.constant 0 : index
    %c341_191 = arith.constant 341 : index
    %175 = vector.load %arg9[%c0_190, %c341_191] : memref<8x1664xbf16, #tpu.memory_space<vmem>>, vector<8x1280xbf16>
    %c200 = arith.constant 200 : index
    %c0_192 = arith.constant 0 : index
    %176 = vector.load %arg10[%c200, %c0_192] : memref<216x1280xbf16, #tpu.memory_space<vmem>>, vector<8x1280xbf16>
    tpu.vector_store %arg10[%c200, %c0_192], %175 {strides = array<i32>} : memref<216x1280xbf16, #tpu.memory_space<vmem>>, vector<8x1280xbf16>,
    %c0_193 = arith.constant 0 : index
    %c342_194 = arith.constant 342 : index
    %177 = vector.load %arg9[%c0_193, %c342_194] : memref<8x1664xbf16, #tpu.memory_space<vmem>>, vector<8x1280xbf16>
    %c208 = arith.constant 208 : index
    %c0_195 = arith.constant 0 : index
    %178 = vector.load %arg10[%c208, %c0_195] : memref<216x1280xbf16, #tpu.memory_space<vmem>>, vector<8x1280xbf16>
    tpu.vector_store %arg10[%c208, %c0_195], %177 {strides = array<i32>} : memref<216x1280xbf16, #tpu.memory_space<vmem>>, vector<8x1280xbf16>,
    %c0_196 = arith.constant 0 : index
    %c0_197 = arith.constant 0 : index
    %179 = vector.load %arg4[%c0_196, %c0_197] : memref<4x216xbf16, #tpu.memory_space<vmem>>, vector<4x216xbf16>
    %c0_198 = arith.constant 0 : index
    %c0_199 = arith.constant 0 : index
    %180 = vector.load %arg10[%c0_198, %c0_199] : memref<216x1280xbf16, #tpu.memory_space<vmem>>, vector<216x1280xbf16>
    %cst_200 = arith.constant dense<0.000000e+00> : vector<4x1280xf32>
    %181 = tpu.matmul %179, %180, %cst_200 {dimension_numbers = #tpu.dot_dimension_numbers<[1], [0], [0], [1], [0, 0, 1, 1], [], []>} : vector<4x216xbf16>, vector<216x1280xbf16>, vector<4x1280xf32> -> vector<4x1280xf32>
    %c0_201 = arith.constant 0 : index
    %c0_202 = arith.constant 0 : index
    %c171_203 = arith.constant 171 : index
    %182 = vector.load %arg1[%c0_201, %c0_202, %c171_203] : memref<1x4x1760xf32, #tpu.memory_space<vmem>>, vector<1x4x1280xf32>
    %183 = vector.shape_cast %182 : vector<1x4x1280xf32> to vector<4x1280xf32>
    %c0_204 = arith.constant 0 : index
    %c0_205 = arith.constant 0 : index
    %184 = vector.load %arg5[%c0_204, %c0_205] : memref<4x1xf32, #tpu.memory_space<vmem>>, vector<4x1xf32>
    %185 = vector.broadcast %184 : vector<4x1xf32> to vector<4x1280xf32>
    %186 = arith.addf %181, %185 : vector<4x1280xf32>
    %187 = arith.addf %186, %183 : vector<4x1280xf32>
    %c0_206 = arith.constant 0 : index
    %c0_207 = arith.constant 0 : index
    %c0_208 = arith.constant 0 : index
    %188 = vector.load %arg7[%c0_206, %c0_207, %c0_208] : memref<1x4x1280xf32, #tpu.memory_space<vmem>>, vector<1x4x1280xf32>
    %189 = vector.shape_cast %188 : vector<1x4x1280xf32> to vector<4x1280xf32>
    %190 = vector.shape_cast %187 : vector<4x1280xf32> to vector<1x4x1280xf32>
    tpu.vector_store %arg7[%c0_206, %c0_207, %c0_208], %190 {strides = array<i32>} : memref<1x4x1280xf32, #tpu.memory_space<vmem>>, vector<1x4x1280xf32>,
    return
  }
  func.func @transform_0(%arg0: i32) -> (i32, i32, i32) {
    %c0_i32 = arith.constant 0 : i32
    %c0_i32_0 = arith.constant 0 : i32
    %c0_i32_1 = arith.constant 0 : i32
    return %arg0, %c0_i32, %c0_i32_0 : i32, i32, i32
  }
  func.func @transform_1(%arg0: i32) -> (i32, i32) {
    %c0_i32 = arith.constant 0 : i32
    %c0_i32_0 = arith.constant 0 : i32
    %c0_i32_1 = arith.constant 0 : i32
    return %c0_i32, %c0_i32_0 : i32, i32
  }
  func.func @transform_2(%arg0: i32) -> (i32, i32) {
    %c0_i32 = arith.constant 0 : i32
    %c0_i32_0 = arith.constant 0 : i32
    %c0_i32_1 = arith.constant 0 : i32
    return %c0_i32, %c0_i32_0 : i32, i32
  }
  func.func @transform_3(%arg0: i32) -> (i32, i32) {
    %c0_i32 = arith.constant 0 : i32
    %c0_i32_0 = arith.constant 0 : i32
    %c0_i32_1 = arith.constant 0 : i32
    return %c0_i32, %c0_i32_0 : i32, i32
  }
  func.func @transform_4(%arg0: i32) -> (i32, i32) {
    %c0_i32 = arith.constant 0 : i32
    %c0_i32_0 = arith.constant 0 : i32
    %c0_i32_1 = arith.constant 0 : i32
    return %c0_i32, %c0_i32_0 : i32, i32
  }
  func.func @transform_5(%arg0: i32) -> (i32, i32) {
    %c0_i32 = arith.constant 0 : i32
    %c0_i32_0 = arith.constant 0 : i32
    %c0_i32_1 = arith.constant 0 : i32
    return %c0_i32, %c0_i32_0 : i32, i32
  }
  func.func @transform_6(%arg0: i32) -> (i32, i32, i32) {
    %c0_i32 = arith.constant 0 : i32
    %c0_i32_0 = arith.constant 0 : i32
    %c0_i32_1 = arith.constant 0 : i32
    return %arg0, %c0_i32, %c0_i32_0 : i32, i32, i32
  }
}

</mosaic_0001>

<llo_original>
// kernel: resnet_forward_pallas.1
$region0: #{resnet_forward_pallas.1}
  #allocation0 [shape = 'u32[]', space=smem, size = 0x4, offset = 0x4, fixed_abs, tag = 'smem constant byte address 0x4 - core index']
  #allocation1 [shape = 'u32[144,128]{1,0:T(1,128)}', space=vmem, size = 0x12000, scoped, tag = 'internal scratch']
  #allocation2 [shape = 'bf16[108,1280]{1,0:T(8,128)(2,1)}', space=vmem, size = 0x46000, scoped, tag = 'scratch operand']
  #allocation3 [shape = 'bf16[8,1664]{1,0:T(8,128)(2,1)}', space=vmem, size = 0x6800, scoped, tag = 'scratch operand']
  #allocation4 [shape = 'bf16[216,1280]{1,0:T(8,128)(2,1)}', space=vmem, size = 0x87000, scoped, tag = 'scratch operand']
  %s0 = inlined_call_operand.vmem [shape: f32[2,4,1760], index: 0, kind: input, shape index: {}]
  %s1 = inlined_call_operand.vmem [shape: bf16[8,108], index: 1, kind: input, shape index: {}]
  %s2 = inlined_call_operand.vmem [shape: f32[8,1], index: 2, kind: input, shape index: {}]
  %s3 = inlined_call_operand.vmem [shape: bf16[4,216], index: 3, kind: input, shape index: {}]
  %s4 = inlined_call_operand.vmem [shape: f32[4,1], index: 4, kind: input, shape index: {}]
  %s5 = inlined_call_operand.vmem [shape: f32[1,1280], index: 5, kind: input, shape index: {}]
  %s6 = inlined_call_operand.vmem [shape: f32[2,4,1280], index: 6, kind: output, shape index: {}]
  %s7 = sld [smem:[#allocation0]]
  $region57: #{resnet_forward_pallas.1} parent=0
    _
  %s9 = ssub.s32 1, %s7
  %s10 = scalar_select 0, %s9, %s7
  loop: start=0, step=1, limit=4
  $region2: #{resnet_forward_pallas.1} parent=0 // loop_pre_header
    _
  $region3: #{resnet_forward_pallas.1} parent=0 // loop_header
    %s12 = sphi 0, %s16
    %p13 = scmp.ge.s32.totalorder %s12, 4
    %s22 = sphi 0, %s24
    %s25 = sphi 0, %s22
    %s26 = sphi 0, %s25
    %s42 = sphi 0, %s26
    %s46 = sphi 0, %s46
    %s48 = sphi 0, %s46
    %s49 = sphi 0, %s48
    %s63 = sphi 0, %s49
    %s67 = sphi 0, %s67
    %s69 = sphi 0, %s67
    %s70 = sphi 0, %s69
    %s84 = sphi 0, %s70
    %s88 = sphi 0, %s88
    %s90 = sphi 0, %s88
    %s91 = sphi 0, %s90
    %s105 = sphi 0, %s91
    %s109 = sphi 0, %s109
    %s111 = sphi 0, %s109
    %s112 = sphi 0, %s111
    %s126 = sphi 0, %s112
    %s130 = sphi 0, %s130
    %s132 = sphi 0, %s130
    %s133 = sphi 0, %s132
    %s147 = sphi 0, %s133
    %s153 = sphi 0, %s155
    %s156 = sphi 0, %s153
    %s157 = sphi 0, %s156
    %s173 = sphi 0, %s157
  $region4: #{resnet_forward_pallas.1} parent=0 // loop_header_branch
    %15 = sbr.rel (%p13) target = $region8
  $region5: #{resnet_forward_pallas.1} parent=0 // loop_body
    %s17 = ssub.s32 %s12, 1
    %s18 = ssub.s32 %s12, 2
    %s19 = sadd.s32 %s12, 1
    %s20 = ssub.s32 %s12, %s19
    %p21 = scmp.eq.s32.totalorder %s20, 0
    %s23 = sadd.s32 %s22, 1
    %s24 = scalar_select %p21, %s22, %s23
    %p27 = pneg %p21
    %p28 = scmp.eq.s32.totalorder %s12, 1
    %p29 = por %p27, %p28
    %p30 = scmp.ne.s32.totalorder %s22, %s25
    %p31 = scmp.eq.s32.totalorder %s12, 0
    %p32 = por %p30, %p31
    %p33 = scmp.ne.s32.totalorder %s22, %s25
    %p34 = scmp.eq.s32.totalorder %s17, 1
    %p35 = por %p33, %p34
    %p36 = scmp.ne.s32.totalorder %s25, %s26
    %p37 = scmp.eq.s32.totalorder %s17, 0
    %p38 = por %p36, %p37
    %p39 = scmp.ne.s32.totalorder %s25, %s26
    %p40 = scmp.eq.s32.totalorder %s18, 1
    %p41 = por %p39, %p40
    %p43 = scmp.ne.s32.totalorder %s26, %s42
    %p44 = scmp.eq.s32.totalorder %s18, 0
    %p45 = por %p43, %p44
    %s47 = sadd.s32 %s46, 1
    %p50 = scmp.eq.s32.totalorder %s12, 1
    %p51 = scmp.ne.s32.totalorder %s46, %s48
    %p52 = scmp.eq.s32.totalorder %s12, 0
    %p53 = por %p51, %p52
    %p54 = scmp.ne.s32.totalorder %s46, %s48
    %p55 = scmp.eq.s32.totalorder %s17, 1
    %p56 = por %p54, %p55
    %p57 = scmp.ne.s32.totalorder %s48, %s49
    %p58 = scmp.eq.s32.totalorder %s17, 0
    %p59 = por %p57, %p58
    %p60 = scmp.ne.s32.totalorder %s48, %s49
    %p61 = scmp.eq.s32.totalorder %s18, 1
    %p62 = por %p60, %p61
    %p64 = scmp.ne.s32.totalorder %s49, %s63
    %p65 = scmp.eq.s32.totalorder %s18, 0
    %p66 = por %p64, %p65
    %s68 = sadd.s32 %s67, 1
    %p71 = scmp.eq.s32.totalorder %s12, 1
    %p72 = scmp.ne.s32.totalorder %s67, %s69
    %p73 = scmp.eq.s32.totalorder %s12, 0
    %p74 = por %p72, %p73
    %p75 = scmp.ne.s32.totalorder %s67, %s69
    %p76 = scmp.eq.s32.totalorder %s17, 1
    %p77 = por %p75, %p76
    %p78 = scmp.ne.s32.totalorder %s69, %s70
    %p79 = scmp.eq.s32.totalorder %s17, 0
    %p80 = por %p78, %p79
    %p81 = scmp.ne.s32.totalorder %s69, %s70
    %p82 = scmp.eq.s32.totalorder %s18, 1
    %p83 = por %p81, %p82
    %p85 = scmp.ne.s32.totalorder %s70, %s84
    %p86 = scmp.eq.s32.totalorder %s18, 0
    %p87 = por %p85, %p86
    %s89 = sadd.s32 %s88, 1
    %p92 = scmp.eq.s32.totalorder %s12, 1
    %p93 = scmp.ne.s32.totalorder %s88, %s90
    %p94 = scmp.eq.s32.totalorder %s12, 0
    %p95 = por %p93, %p94
    %p96 = scmp.ne.s32.totalorder %s88, %s90
    %p97 = scmp.eq.s32.totalorder %s17, 1
    %p98 = por %p96, %p97
    %p99 = scmp.ne.s32.totalorder %s90, %s91
    %p100 = scmp.eq.s32.totalorder %s17, 0
    %p101 = por %p99, %p100
    %p102 = scmp.ne.s32.totalorder %s90, %s91
    %p103 = scmp.eq.s32.totalorder %s18, 1
    %p104 = por %p102, %p103
    %p106 = scmp.ne.s32.totalorder %s91, %s105
    %p107 = scmp.eq.s32.totalorder %s18, 0
    %p108 = por %p106, %p107
    %s110 = sadd.s32 %s109, 1
    %p113 = scmp.eq.s32.totalorder %s12, 1
    %p114 = scmp.ne.s32.totalorder %s109, %s111
    %p115 = scmp.eq.s32.totalorder %s12, 0
    %p116 = por %p114, %p115
    %p117 = scmp.ne.s32.totalorder %s109, %s111
    %p118 = scmp.eq.s32.totalorder %s17, 1
    %p119 = por %p117, %p118
    %p120 = scmp.ne.s32.totalorder %s111, %s112
    %p121 = scmp.eq.s32.totalorder %s17, 0
    %p122 = por %p120, %p121
    %p123 = scmp.ne.s32.totalorder %s111, %s112
    %p124 = scmp.eq.s32.totalorder %s18, 1
    %p125 = por %p123, %p124
    %p127 = scmp.ne.s32.totalorder %s112, %s126
    %p128 = scmp.eq.s32.totalorder %s18, 0
    %p129 = por %p127, %p128
    %s131 = sadd.s32 %s130, 1
    %p134 = scmp.eq.s32.totalorder %s12, 1
    %p135 = scmp.ne.s32.totalorder %s130, %s132
    %p136 = scmp.eq.s32.totalorder %s12, 0
    %p137 = por %p135, %p136
    %p138 = scmp.ne.s32.totalorder %s130, %s132
    %p139 = scmp.eq.s32.totalorder %s17, 1
    %p140 = por %p138, %p139
    %p141 = scmp.ne.s32.totalorder %s132, %s133
    %p142 = scmp.eq.s32.totalorder %s17, 0
    %p143 = por %p141, %p142
    %p144 = scmp.ne.s32.totalorder %s132, %s133
    %p145 = scmp.eq.s32.totalorder %s18, 1
    %p146 = por %p144, %p145
    %p148 = scmp.ne.s32.totalorder %s133, %s147
    %p149 = scmp.eq.s32.totalorder %s18, 0
    %p150 = por %p148, %p149
    %s151 = ssub.s32 %s12, %s19
    %p152 = scmp.eq.s32.totalorder %s151, 0
    %s154 = sadd.s32 %s153, 1
    %s155 = scalar_select %p152, %s153, %s154
    %p158 = pneg %p152
    %p159 = scmp.eq.s32.totalorder %s12, 1
    %p160 = por %p158, %p159
    %p161 = scmp.ne.s32.totalorder %s153, %s156
    %p162 = scmp.eq.s32.totalorder %s12, 0
    %p163 = por %p161, %p162
    %p164 = scmp.ne.s32.totalorder %s153, %s156
    %p165 = scmp.eq.s32.totalorder %s17, 1
    %p166 = por %p164, %p165
    %p167 = scmp.ne.s32.totalorder %s156, %s157
    %p168 = scmp.eq.s32.totalorder %s17, 0
    %p169 = por %p167, %p168
    %p170 = scmp.ne.s32.totalorder %s156, %s157
    %p171 = scmp.eq.s32.totalorder %s18, 1
    %p172 = por %p170, %p171
    %p174 = scmp.ne.s32.totalorder %s157, %s173
    %p175 = scmp.eq.s32.totalorder %s18, 0
    %p176 = por %p174, %p175
    %p177 = scmp.le.s32.totalorder 1, %s12
    %p178 = scmp.lt.s32.totalorder %s12, 3
    %p179 = pnand %p177, %p178
    %p180 = pneg %p179
    // Predicated region
    $region9: #{resnet_forward_pallas.1} parent=5 // pred_check
      _
    $region10: #{resnet_forward_pallas.1} parent=5 // pred_check_branch
      %182 = sbr.rel (%p179) target = $region12
    $region11: #{resnet_forward_pallas.1} parent=5 // pred_region
      %s183 = ssub.s32 %s12, 1
      // Predicated region
      $region13: #{resnet_forward_pallas.1} parent=11 // pred_check
        %p184 = pneg %p59
      $region14: #{resnet_forward_pallas.1} parent=11 // pred_check_branch
        %186 = sbr.rel (%p184) target = $region16
      $region15: #{resnet_forward_pallas.1} parent=11 // pred_region
        _
      $region16: #{resnet_forward_pallas.1} parent=11 // pred_fallthru
        _
      // Predicated region
      $region17: #{resnet_forward_pallas.1} parent=11 // pred_check
        %p187 = pneg %p80
      $region18: #{resnet_forward_pallas.1} parent=11 // pred_check_branch
        %189 = sbr.rel (%p187) target = $region20
      $region19: #{resnet_forward_pallas.1} parent=11 // pred_region
        _
      $region20: #{resnet_forward_pallas.1} parent=11 // pred_fallthru
        _
      // Predicated region
      $region21: #{resnet_forward_pallas.1} parent=11 // pred_check
        %p190 = pneg %p101
      $region22: #{resnet_forward_pallas.1} parent=11 // pred_check_branch
        %192 = sbr.rel (%p190) target = $region24
      $region23: #{resnet_forward_pallas.1} parent=11 // pred_region
        _
      $region24: #{resnet_forward_pallas.1} parent=11 // pred_fallthru
        _
      // Predicated region
      $region25: #{resnet_forward_pallas.1} parent=11 // pred_check
        %p193 = pneg %p122
      $region26: #{resnet_forward_pallas.1} parent=11 // pred_check_branch
        %195 = sbr.rel (%p193) target = $region28
      $region27: #{resnet_forward_pallas.1} parent=11 // pred_region
        _
      $region28: #{resnet_forward_pallas.1} parent=11 // pred_fallthru
        _
      // Predicated region
      $region29: #{resnet_forward_pallas.1} parent=11 // pred_check
        %p196 = pneg %p143
      $region30: #{resnet_forward_pallas.1} parent=11 // pred_check_branch
        %198 = sbr.rel (%p196) target = $region32
      $region31: #{resnet_forward_pallas.1} parent=11 // pred_region
        _
      $region32: #{resnet_forward_pallas.1} parent=11 // pred_fallthru
        _
    $region12: #{resnet_forward_pallas.1} parent=5 // pred_fallthru
      _
    %p199 = scmp.lt.s32.totalorder %s12, 2
    // Predicated region
    $region33: #{resnet_forward_pallas.1} parent=5 // pred_check
      %p200 = pneg %p199
    $region34: #{resnet_forward_pallas.1} parent=5 // pred_check_branch
      %202 = sbr.rel (%p200) target = $region36
    $region35: #{resnet_forward_pallas.1} parent=5 // pred_region
      // Predicated region
      $region37: #{resnet_forward_pallas.1} parent=35 // pred_check
        %p203 = pneg %p32
      $region38: #{resnet_forward_pallas.1} parent=35 // pred_check_branch
        %205 = sbr.rel (%p203) target = $region40
      $region39: #{resnet_forward_pallas.1} parent=35 // pred_region
        %p206 = scmp.lt.s32.totalorder %s12, 1
        %s207 = scalar_select %p206, %s12, 1
        %s208 = smul.addr %s207, 14
        %s209 = smul.addr %s208, 4
        %s210 = scalar_lea.vmem %s0, %s209
      $region40: #{resnet_forward_pallas.1} parent=35 // pred_fallthru
        _
    $region36: #{resnet_forward_pallas.1} parent=5 // pred_fallthru
      _
    %p211 = scmp.le.s32.totalorder 1, %s12
    %p212 = scmp.lt.s32.totalorder %s12, 3
    %p213 = pnand %p211, %p212
    %p214 = pneg %p213
    // Predicated region
    $region41: #{resnet_forward_pallas.1} parent=5 // pred_check
      _
    $region42: #{resnet_forward_pallas.1} parent=5 // pred_check_branch
      %216 = sbr.rel (%p213) target = $region44
    $region43: #{resnet_forward_pallas.1} parent=5 // pred_region
      %s217 = ssub.s32 %s12, 1
      %p218 = scmp.lt.s32.totalorder %s17, 1
      %s219 = scalar_select %p218, %s17, 1
      %s220 = smul.addr %s219, 14
      %s221 = smul.addr %s220, 4
      %s222 = scalar_lea.vmem %s0, %s221
      %p223 = pneg %p38
      %p224 = pneg %p35
      %p225 = pneg %p59
      %p226 = pneg %p56
      %p227 = pneg %p80
      %p228 = pneg %p77
      %p229 = pneg %p101
      %p230 = pneg %p98
      %p231 = pneg %p122
      %p232 = pneg %p119
      %p233 = pneg %p143
      %p234 = pneg %p140
      %p235 = pneg %p169
      %p236 = pneg %p166
      %p237 = scmp.lt.s32.totalorder %s17, 1
      %s238 = scalar_select %p237, %s17, 1
      %s239 = smul.addr %s238, 10
      %s240 = smul.addr %s239, 4
      %s241 = scalar_lea.vmem %s6, %s240
      %p242 = scmp.lt.s32.totalorder %s17, 1
      %s243 = scalar_select %p242, %s17, 1
      %s244 = smul.addr %s243, 14
      %s245 = smul.addr %s244, 4
      %s246 = scalar_lea.vmem %s0, %s245
      %p247 = scmp.lt.s32.totalorder %s17, 1
      %s248 = scalar_select %p247, %s17, 1
      %s249 = smul.addr %s248, 10
      %s250 = smul.addr %s249, 4
      %s251 = scalar_lea.vmem %s6, %s250
      %v253 = vld [vmem:[%s246] sm:$0xff]
      %v254 = vld [vmem:[%s246 + $0x8] sm:$0xff]
      %v255 = vld [vmem:[%s246 + $0x10] sm:$0xff]
      %v256 = vld [vmem:[%s246 + $0x18] sm:$0xff]
      %v257 = vld [vmem:[%s246 + $0x20] sm:$0xff]
      %v263 = vcombine.high %v253, %v253
      %v264 = vcombine.high %v254, %v254
      %v265 = vcombine.high %v255, %v255
      %v266 = vcombine.high %v256, %v256
      %v267 = vcombine.high %v257, %v257
      %v273 = vpack.c.bf16 %v253, %v253
      %v274 = vpack.c.bf16 %v263, %v263
      %v275 = vpack.c.bf16 %v254, %v254
      %v276 = vpack.c.bf16 %v264, %v264
      %v277 = vpack.c.bf16 %v255, %v255
      %v278 = vpack.c.bf16 %v265, %v265
      %v279 = vpack.c.bf16 %v256, %v256
      %v280 = vpack.c.bf16 %v266, %v266
      %v281 = vpack.c.bf16 %v257, %v257
      %v282 = vpack.c.bf16 %v267, %v267
      %v293 = vunpack.c.l.b16 %v273
      %v294 = vunpack.c.l.b16 %v274
      %v295 = vunpack.c.l.b16 %v275
      %v296 = vunpack.c.l.b16 %v276
      %v297 = vunpack.c.l.b16 %v277
      %v298 = vunpack.c.l.b16 %v278
      %v299 = vunpack.c.l.b16 %v279
      %v300 = vunpack.c.l.b16 %v280
      %v301 = vunpack.c.l.b16 %v281
      %v302 = vunpack.c.l.b16 %v282
      %v303 = vpack.c.b16 %v294, %v293
      %v304 = vpack.c.b16 %v296, %v295
      %v305 = vpack.c.b16 %v298, %v297
      %v306 = vpack.c.b16 %v300, %v299
      %v307 = vpack.c.b16 %v302, %v301
      %313 = vst [vmem:[#allocation2] sm:$0x33] %v303
      %314 = vst [vmem:[#allocation2 + $0x8] sm:$0x33] %v304
      %315 = vst [vmem:[#allocation2 + $0x10] sm:$0x33] %v305
      %316 = vst [vmem:[#allocation2 + $0x18] sm:$0x33] %v306
      %317 = vst [vmem:[#allocation2 + $0x20] sm:$0x33] %v307
      %v318 = vld [vmem:[%s246] sm:$0xff]
      %v319 = vld [vmem:[%s246 + $0x8] sm:$0xff]
      %v320 = vld [vmem:[%s246 + $0x10] sm:$0xff]
      %v321 = vld [vmem:[%s246 + $0x18] sm:$0xff]
      %v322 = vld [vmem:[%s246 + $0x20] sm:$0xff]
      %v323 = vld [vmem:[%s246 + $0x28] sm:$0xf]
      %v329 = vcombine.high %v318, %v318
      %v330 = vcombine.high %v319, %v319
      %v331 = vcombine.high %v320, %v320
      %v332 = vcombine.high %v321, %v321
      %v333 = vcombine.high %v322, %v322
      %v339 = vpack.c.bf16 %v318, %v318
      %v340 = vpack.c.bf16 %v329, %v329
      %v341 = vpack.c.bf16 %v319, %v319
      %v342 = vpack.c.bf16 %v330, %v330
      %v343 = vpack.c.bf16 %v320, %v320
      %v344 = vpack.c.bf16 %v331, %v331
      %v345 = vpack.c.bf16 %v321, %v321
      %v346 = vpack.c.bf16 %v332, %v332
      %v347 = vpack.c.bf16 %v322, %v322
      %v348 = vpack.c.bf16 %v333, %v333
      %v349 = vpack.c.bf16 %v323, %v323
      %v361 = vunpack.c.l.b16 %v339
      %v362 = vunpack.c.l.b16 %v340
      %v363 = vunpack.c.l.b16 %v341
      %v364 = vunpack.c.l.b16 %v342
      %v365 = vunpack.c.l.b16 %v343
      %v366 = vunpack.c.l.b16 %v344
      %v367 = vunpack.c.l.b16 %v345
      %v368 = vunpack.c.l.b16 %v346
      %v369 = vunpack.c.l.b16 %v347
      %v370 = vunpack.c.l.b16 %v348
      %v371 = vunpack.c.l.b16 %v349
      %v372 = vpack.c.b16 %v362, %v361
      %v373 = vpack.c.b16 %v364, %v363
      %v374 = vpack.c.b16 %v366, %v365
      %v375 = vpack.c.b16 %v368, %v367
      %v376 = vpack.c.b16 %v370, %v369
      %v377 = vpack.c.b16 %v371, %v371
      %v378 = vrot.slane %v372, 6
      %v379 = vrot.slane %v373, 6
      %v380 = vrot.slane %v374, 6
      %v381 = vrot.slane %v375, 6
      %v382 = vrot.slane %v376, 6
      %v383 = vrot.slane %v377, 6
      %384 = vrot.lane.b32.xlu0 %v378, 127
      %v385 = vpop.permute.xlu0 %384
      %386 = vrot.lane.b32.xlu0 %v379, 127
      %v387 = vpop.permute.xlu0 %386
      %388 = vrot.lane.b32.xlu0 %v380, 127
      %v389 = vpop.permute.xlu0 %388
      %390 = vrot.lane.b32.xlu0 %v381, 127
      %v391 = vpop.permute.xlu0 %390
      %392 = vrot.lane.b32.xlu0 %v382, 127
      %v393 = vpop.permute.xlu0 %392
      %394 = vrot.lane.b32.xlu0 %v383, 127
      %v395 = vpop.permute.xlu0 %394
      %v396 = vrot.slane %v385, 4
      %v397 = vrot.slane %v387, 4
      %v398 = vrot.slane %v389, 4
      %v399 = vrot.slane %v391, 4
      %v400 = vrot.slane %v393, 4
      %v401 = vrot.slane %v395, 4
      %vm402 = vcmask 1043456
      %v403 = vsel %vm402, %v396, %v397
      %vm404 = vcmask 1039360
      %v405 = vsel %vm404, %v385, %v403
      %v406 = vsel %vm402, %v397, %v398
      %v407 = vsel %vm404, %v387, %v406
      %v408 = vsel %vm402, %v398, %v399
      %v409 = vsel %vm404, %v389, %v408
      %v410 = vsel %vm402, %v399, %v400
      %v411 = vsel %vm404, %v391, %v410
      %v412 = vsel %vm402, %v400, %v401
      %v413 = vsel %vm404, %v393, %v412
      %419 = vst [vmem:[#allocation2] sm:$0xcc] %v405
      %420 = vst [vmem:[#allocation2 + $0x8] sm:$0xcc] %v407
      %421 = vst [vmem:[#allocation2 + $0x10] sm:$0xcc] %v409
      %422 = vst [vmem:[#allocation2 + $0x18] sm:$0xcc] %v411
      %423 = vst [vmem:[#allocation2 + $0x20] sm:$0xcc] %v413
      %v424 = vld [vmem:[%s246] sm:$0xff]
      %v425 = vld [vmem:[%s246 + $0x8] sm:$0xff]
      %v426 = vld [vmem:[%s246 + $0x10] sm:$0xff]
      %v427 = vld [vmem:[%s246 + $0x18] sm:$0xff]
      %v428 = vld [vmem:[%s246 + $0x20] sm:$0xff]
      %v429 = vld [vmem:[%s246 + $0x28] sm:$0xf]
      %v435 = vcombine.high %v424, %v424
      %v436 = vcombine.high %v425, %v425
      %v437 = vcombine.high %v426, %v426
      %v438 = vcombine.high %v427, %v427
      %v439 = vcombine.high %v428, %v428
      %v445 = vpack.c.bf16 %v424, %v424
      %v446 = vpack.c.bf16 %v435, %v435
      %v447 = vpack.c.bf16 %v425, %v425
      %v448 = vpack.c.bf16 %v436, %v436
      %v449 = vpack.c.bf16 %v426, %v426
      %v450 = vpack.c.bf16 %v437, %v437
      %v451 = vpack.c.bf16 %v427, %v427
      %v452 = vpack.c.bf16 %v438, %v438
      %v453 = vpack.c.bf16 %v428, %v428
      %v454 = vpack.c.bf16 %v439, %v439
      %v455 = vpack.c.bf16 %v429, %v429
      %v467 = vunpack.c.l.b16 %v445
      %v468 = vunpack.c.l.b16 %v446
      %v469 = vunpack.c.l.b16 %v447
      %v470 = vunpack.c.l.b16 %v448
      %v471 = vunpack.c.l.b16 %v449
      %v472 = vunpack.c.l.b16 %v450
      %v473 = vunpack.c.l.b16 %v451
      %v474 = vunpack.c.l.b16 %v452
      %v475 = vunpack.c.l.b16 %v453
      %v476 = vunpack.c.l.b16 %v454
      %v477 = vunpack.c.l.b16 %v455
      %v478 = vpack.c.b16 %v468, %v467
      %v479 = vpack.c.b16 %v470, %v469
      %v480 = vpack.c.b16 %v472, %v471
      %v481 = vpack.c.b16 %v474, %v473
      %v482 = vpack.c.b16 %v476, %v475
      %v483 = vpack.c.b16 %v477, %v477
      %484 = vrot.lane.b32.xlu0 %v478, 126
      %v485 = vpop.permute.xlu0 %484
      %486 = vrot.lane.b32.xlu0 %v479, 126
      %v487 = vpop.permute.xlu0 %486
      %488 = vrot.lane.b32.xlu0 %v480, 126
      %v489 = vpop.permute.xlu0 %488
      %490 = vrot.lane.b32.xlu0 %v481, 126
      %v491 = vpop.permute.xlu0 %490
      %492 = vrot.lane.b32.xlu0 %v482, 126
      %v493 = vpop.permute.xlu0 %492
      %494 = vrot.lane.b32.xlu0 %v483, 126
      %v495 = vpop.permute.xlu0 %494
      %v496 = vrot.slane %v485, 4
      %v497 = vrot.slane %v487, 4
      %v498 = vrot.slane %v489, 4
      %v499 = vrot.slane %v491, 4
      %v500 = vrot.slane %v493, 4
      %v501 = vrot.slane %v495, 4
      %v502 = vsel %vm402, %v496, %v497
      %vm503 = vcmask 1031168
      %v504 = vsel %vm503, %v485, %v502
      %v505 = vsel %vm402, %v497, %v498
      %v506 = vsel %vm503, %v487, %v505
      %v507 = vsel %vm402, %v498, %v499
      %v508 = vsel %vm503, %v489, %v507
      %v509 = vsel %vm402, %v499, %v500
      %v510 = vsel %vm503, %v491, %v509
      %v511 = vsel %vm402, %v500, %v501
      %v512 = vsel %vm503, %v493, %v511
      %518 = vst [vmem:[#allocation2 + $0x28] sm:$0x33] %v504
      %519 = vst [vmem:[#allocation2 + $0x30] sm:$0x33] %v506
      %520 = vst [vmem:[#allocation2 + $0x38] sm:$0x33] %v508
      %521 = vst [vmem:[#allocation2 + $0x40] sm:$0x33] %v510
      %522 = vst [vmem:[#allocation2 + $0x48] sm:$0x33] %v512
      %v523 = vld [vmem:[%s246] sm:$0xff]
      %v524 = vld [vmem:[%s246 + $0x8] sm:$0xff]
      %v525 = vld [vmem:[%s246 + $0x10] sm:$0xff]
      %v526 = vld [vmem:[%s246 + $0x18] sm:$0xff]
      %v527 = vld [vmem:[%s246 + $0x20] sm:$0xff]
      %v528 = vld [vmem:[%s246 + $0x28] sm:$0xf]
      %v534 = vcombine.high %v523, %v523
      %v535 = vcombine.high %v524, %v524
      %v536 = vcombine.high %v525, %v525
      %v537 = vcombine.high %v526, %v526
      %v538 = vcombine.high %v527, %v527
      %v544 = vpack.c.bf16 %v523, %v523
      %v545 = vpack.c.bf16 %v534, %v534
      %v546 = vpack.c.bf16 %v524, %v524
      %v547 = vpack.c.bf16 %v535, %v535
      %v548 = vpack.c.bf16 %v525, %v525
      %v549 = vpack.c.bf16 %v536, %v536
      %v550 = vpack.c.bf16 %v526, %v526
      %v551 = vpack.c.bf16 %v537, %v537
      %v552 = vpack.c.bf16 %v527, %v527
      %v553 = vpack.c.bf16 %v538, %v538
      %v554 = vpack.c.bf16 %v528, %v528
      %v566 = vunpack.c.l.b16 %v544
      %v567 = vunpack.c.l.b16 %v545
      %v568 = vunpack.c.l.b16 %v546
      %v569 = vunpack.c.l.b16 %v547
      %v570 = vunpack.c.l.b16 %v548
      %v571 = vunpack.c.l.b16 %v549
      %v572 = vunpack.c.l.b16 %v550
      %v573 = vunpack.c.l.b16 %v551
      %v574 = vunpack.c.l.b16 %v552
      %v575 = vunpack.c.l.b16 %v553
      %v576 = vunpack.c.l.b16 %v554
      %v577 = vpack.c.b16 %v567, %v566
      %v578 = vpack.c.b16 %v569, %v568
      %v579 = vpack.c.b16 %v571, %v570
      %v580 = vpack.c.b16 %v573, %v572
      %v581 = vpack.c.b16 %v575, %v574
      %v582 = vpack.c.b16 %v576, %v576
      %v583 = vrot.slane %v577, 6
      %v584 = vrot.slane %v578, 6
      %v585 = vrot.slane %v579, 6
      %v586 = vrot.slane %v580, 6
      %v587 = vrot.slane %v581, 6
      %v588 = vrot.slane %v582, 6
      %589 = vrot.lane.b32.xlu0 %v583, 118
      %v590 = vpop.permute.xlu0 %589
      %591 = vrot.lane.b32.xlu0 %v584, 118
      %v592 = vpop.permute.xlu0 %591
      %593 = vrot.lane.b32.xlu0 %v585, 118
      %v594 = vpop.permute.xlu0 %593
      %595 = vrot.lane.b32.xlu0 %v586, 118
      %v596 = vpop.permute.xlu0 %595
      %597 = vrot.lane.b32.xlu0 %v587, 118
      %v598 = vpop.permute.xlu0 %597
      %599 = vrot.lane.b32.xlu0 %v588, 118
      %v600 = vpop.permute.xlu0 %599
      %v601 = vrot.slane %v590, 4
      %v602 = vrot.slane %v592, 4
      %v603 = vrot.slane %v594, 4
      %v604 = vrot.slane %v596, 4
      %v605 = vrot.slane %v598, 4
      %v606 = vrot.slane %v600, 4
      %v607 = vsel %vm402, %v601, %v602
      %vm608 = vcmask 965632
      %v609 = vsel %vm608, %v590, %v607
      %v610 = vsel %vm402, %v602, %v603
      %v611 = vsel %vm608, %v592, %v610
      %v612 = vsel %vm402, %v603, %v604
      %v613 = vsel %vm608, %v594, %v612
      %v614 = vsel %vm402, %v604, %v605
      %v615 = vsel %vm608, %v596, %v614
      %v616 = vsel %vm402, %v605, %v606
      %v617 = vsel %vm608, %v598, %v616
      %623 = vst [vmem:[#allocation2 + $0x28] sm:$0xcc] %v609
      %624 = vst [vmem:[#allocation2 + $0x30] sm:$0xcc] %v611
      %625 = vst [vmem:[#allocation2 + $0x38] sm:$0xcc] %v613
      %626 = vst [vmem:[#allocation2 + $0x40] sm:$0xcc] %v615
      %627 = vst [vmem:[#allocation2 + $0x48] sm:$0xcc] %v617
      %v628 = vld [vmem:[%s246] sm:$0xff]
      %v629 = vld [vmem:[%s246 + $0x8] sm:$0xff]
      %v630 = vld [vmem:[%s246 + $0x10] sm:$0xff]
      %v631 = vld [vmem:[%s246 + $0x18] sm:$0xff]
      %v632 = vld [vmem:[%s246 + $0x20] sm:$0xff]
      %v633 = vld [vmem:[%s246 + $0x28] sm:$0xf]
      %v639 = vcombine.high %v628, %v628
      %v640 = vcombine.high %v629, %v629
      %v641 = vcombine.high %v630, %v630
      %v642 = vcombine.high %v631, %v631
      %v643 = vcombine.high %v632, %v632
      %v649 = vpack.c.bf16 %v628, %v628
      %v650 = vpack.c.bf16 %v639, %v639
      %v651 = vpack.c.bf16 %v629, %v629
      %v652 = vpack.c.bf16 %v640, %v640
      %v653 = vpack.c.bf16 %v630, %v630
      %v654 = vpack.c.bf16 %v641, %v641
      %v655 = vpack.c.bf16 %v631, %v631
      %v656 = vpack.c.bf16 %v642, %v642
      %v657 = vpack.c.bf16 %v632, %v632
      %v658 = vpack.c.bf16 %v643, %v643
      %v659 = vpack.c.bf16 %v633, %v633
      %v671 = vunpack.c.l.b16 %v649
      %v672 = vunpack.c.l.b16 %v650
      %v673 = vunpack.c.l.b16 %v651
      %v674 = vunpack.c.l.b16 %v652
      %v675 = vunpack.c.l.b16 %v653
      %v676 = vunpack.c.l.b16 %v654
      %v677 = vunpack.c.l.b16 %v655
      %v678 = vunpack.c.l.b16 %v656
      %v679 = vunpack.c.l.b16 %v657
      %v680 = vunpack.c.l.b16 %v658
      %v681 = vunpack.c.l.b16 %v659
      %v682 = vpack.c.b16 %v672, %v671
      %v683 = vpack.c.b16 %v674, %v673
      %v684 = vpack.c.b16 %v676, %v675
      %v685 = vpack.c.b16 %v678, %v677
      %v686 = vpack.c.b16 %v680, %v679
      %v687 = vpack.c.b16 %v681, %v681
      %688 = vrot.lane.b32.xlu0 %v682, 117
      %v689 = vpop.permute.xlu0 %688
      %690 = vrot.lane.b32.xlu0 %v683, 117
      %v691 = vpop.permute.xlu0 %690
      %692 = vrot.lane.b32.xlu0 %v684, 117
      %v693 = vpop.permute.xlu0 %692
      %694 = vrot.lane.b32.xlu0 %v685, 117
      %v695 = vpop.permute.xlu0 %694
      %696 = vrot.lane.b32.xlu0 %v686, 117
      %v697 = vpop.permute.xlu0 %696
      %698 = vrot.lane.b32.xlu0 %v687, 117
      %v699 = vpop.permute.xlu0 %698
      %v700 = vrot.slane %v689, 4
      %v701 = vrot.slane %v691, 4
      %v702 = vrot.slane %v693, 4
      %v703 = vrot.slane %v695, 4
      %v704 = vrot.slane %v697, 4
      %v705 = vrot.slane %v699, 4
      %v706 = vsel %vm402, %v700, %v701
      %vm707 = vcmask 957440
      %v708 = vsel %vm707, %v689, %v706
      %v709 = vsel %vm402, %v701, %v702
      %v710 = vsel %vm707, %v691, %v709
      %v711 = vsel %vm402, %v702, %v703
      %v712 = vsel %vm707, %v693, %v711
      %v713 = vsel %vm402, %v703, %v704
      %v714 = vsel %vm707, %v695, %v713
      %v715 = vsel %vm402, %v704, %v705
      %v716 = vsel %vm707, %v697, %v715
      %722 = vst [vmem:[#allocation2 + $0x50] sm:$0x33] %v708
      %723 = vst [vmem:[#allocation2 + $0x58] sm:$0x33] %v710
      %724 = vst [vmem:[#allocation2 + $0x60] sm:$0x33] %v712
      %725 = vst [vmem:[#allocation2 + $0x68] sm:$0x33] %v714
      %726 = vst [vmem:[#allocation2 + $0x70] sm:$0x33] %v716
      %v727 = vld [vmem:[%s246] sm:$0xff]
      %v728 = vld [vmem:[%s246 + $0x8] sm:$0xff]
      %v729 = vld [vmem:[%s246 + $0x10] sm:$0xff]
      %v730 = vld [vmem:[%s246 + $0x18] sm:$0xff]
      %v731 = vld [vmem:[%s246 + $0x20] sm:$0xff]
      %v732 = vld [vmem:[%s246 + $0x28] sm:$0xf]
      %v738 = vcombine.high %v727, %v727
      %v739 = vcombine.high %v728, %v728
      %v740 = vcombine.high %v729, %v729
      %v741 = vcombine.high %v730, %v730
      %v742 = vcombine.high %v731, %v731
      %v748 = vpack.c.bf16 %v727, %v727
      %v749 = vpack.c.bf16 %v738, %v738
      %v750 = vpack.c.bf16 %v728, %v728
      %v751 = vpack.c.bf16 %v739, %v739
      %v752 = vpack.c.bf16 %v729, %v729
      %v753 = vpack.c.bf16 %v740, %v740
      %v754 = vpack.c.bf16 %v730, %v730
      %v755 = vpack.c.bf16 %v741, %v741
      %v756 = vpack.c.bf16 %v731, %v731
      %v757 = vpack.c.bf16 %v742, %v742
      %v758 = vpack.c.bf16 %v732, %v732
      %v770 = vunpack.c.l.b16 %v748
      %v771 = vunpack.c.l.b16 %v749
      %v772 = vunpack.c.l.b16 %v750
      %v773 = vunpack.c.l.b16 %v751
      %v774 = vunpack.c.l.b16 %v752
      %v775 = vunpack.c.l.b16 %v753
      %v776 = vunpack.c.l.b16 %v754
      %v777 = vunpack.c.l.b16 %v755
      %v778 = vunpack.c.l.b16 %v756
      %v779 = vunpack.c.l.b16 %v757
      %v780 = vunpack.c.l.b16 %v758
      %v781 = vpack.c.b16 %v771, %v770
      %v782 = vpack.c.b16 %v773, %v772
      %v783 = vpack.c.b16 %v775, %v774
      %v784 = vpack.c.b16 %v777, %v776
      %v785 = vpack.c.b16 %v779, %v778
      %v786 = vpack.c.b16 %v780, %v780
      %v787 = vrot.slane %v781, 6
      %v788 = vrot.slane %v782, 6
      %v789 = vrot.slane %v783, 6
      %v790 = vrot.slane %v784, 6
      %v791 = vrot.slane %v785, 6
      %v792 = vrot.slane %v786, 6
      %793 = vrot.lane.b32.xlu0 %v787, 116
      %v794 = vpop.permute.xlu0 %793
      %795 = vrot.lane.b32.xlu0 %v788, 116
      %v796 = vpop.permute.xlu0 %795
      %797 = vrot.lane.b32.xlu0 %v789, 116
      %v798 = vpop.permute.xlu0 %797
      %799 = vrot.lane.b32.xlu0 %v790, 116
      %v800 = vpop.permute.xlu0 %799
      %801 = vrot.lane.b32.xlu0 %v791, 116
      %v802 = vpop.permute.xlu0 %801
      %803 = vrot.lane.b32.xlu0 %v792, 116
      %v804 = vpop.permute.xlu0 %803
      %v805 = vrot.slane %v794, 4
      %v806 = vrot.slane %v796, 4
      %v807 = vrot.slane %v798, 4
      %v808 = vrot.slane %v800, 4
      %v809 = vrot.slane %v802, 4
      %v810 = vrot.slane %v804, 4
      %v811 = vsel %vm402, %v805, %v806
      %vm812 = vcmask 949248
      %v813 = vsel %vm812, %v794, %v811
      %v814 = vsel %vm402, %v806, %v807
      %v815 = vsel %vm812, %v796, %v814
      %v816 = vsel %vm402, %v807, %v808
      %v817 = vsel %vm812, %v798, %v816
      %v818 = vsel %vm402, %v808, %v809
      %v819 = vsel %vm812, %v800, %v818
      %v820 = vsel %vm402, %v809, %v810
      %v821 = vsel %vm812, %v802, %v820
      %827 = vst [vmem:[#allocation2 + $0x50] sm:$0xcc] %v813
      %828 = vst [vmem:[#allocation2 + $0x58] sm:$0xcc] %v815
      %829 = vst [vmem:[#allocation2 + $0x60] sm:$0xcc] %v817
      %830 = vst [vmem:[#allocation2 + $0x68] sm:$0xcc] %v819
      %831 = vst [vmem:[#allocation2 + $0x70] sm:$0xcc] %v821
      %v832 = vld [vmem:[%s246] sm:$0xff]
      %v833 = vld [vmem:[%s246 + $0x8] sm:$0xff]
      %v834 = vld [vmem:[%s246 + $0x10] sm:$0xff]
      %v835 = vld [vmem:[%s246 + $0x18] sm:$0xff]
      %v836 = vld [vmem:[%s246 + $0x20] sm:$0xff]
      %v837 = vld [vmem:[%s246 + $0x28] sm:$0xf]
      %v843 = vcombine.high %v832, %v832
      %v844 = vcombine.high %v833, %v833
      %v845 = vcombine.high %v834, %v834
      %v846 = vcombine.high %v835, %v835
      %v847 = vcombine.high %v836, %v836
      %v853 = vpack.c.bf16 %v832, %v832
      %v854 = vpack.c.bf16 %v843, %v843
      %v855 = vpack.c.bf16 %v833, %v833
      %v856 = vpack.c.bf16 %v844, %v844
      %v857 = vpack.c.bf16 %v834, %v834
      %v858 = vpack.c.bf16 %v845, %v845
      %v859 = vpack.c.bf16 %v835, %v835
      %v860 = vpack.c.bf16 %v846, %v846
      %v861 = vpack.c.bf16 %v836, %v836
      %v862 = vpack.c.bf16 %v847, %v847
      %v863 = vpack.c.bf16 %v837, %v837
      %v875 = vunpack.c.l.b16 %v853
      %v876 = vunpack.c.l.b16 %v854
      %v877 = vunpack.c.l.b16 %v855
      %v878 = vunpack.c.l.b16 %v856
      %v879 = vunpack.c.l.b16 %v857
      %v880 = vunpack.c.l.b16 %v858
      %v881 = vunpack.c.l.b16 %v859
      %v882 = vunpack.c.l.b16 %v860
      %v883 = vunpack.c.l.b16 %v861
      %v884 = vunpack.c.l.b16 %v862
      %v885 = vunpack.c.l.b16 %v863
      %v886 = vpack.c.b16 %v876, %v875
      %v887 = vpack.c.b16 %v878, %v877
      %v888 = vpack.c.b16 %v880, %v879
      %v889 = vpack.c.b16 %v882, %v881
      %v890 = vpack.c.b16 %v884, %v883
      %v891 = vpack.c.b16 %v885, %v885
      %892 = vrot.lane.b32.xlu0 %v886, 108
      %v893 = vpop.permute.xlu0 %892
      %894 = vrot.lane.b32.xlu0 %v887, 108
      %v895 = vpop.permute.xlu0 %894
      %896 = vrot.lane.b32.xlu0 %v888, 108
      %v897 = vpop.permute.xlu0 %896
      %898 = vrot.lane.b32.xlu0 %v889, 108
      %v899 = vpop.permute.xlu0 %898
      %900 = vrot.lane.b32.xlu0 %v890, 108
      %v901 = vpop.permute.xlu0 %900
      %902 = vrot.lane.b32.xlu0 %v891, 108
      %v903 = vpop.permute.xlu0 %902
      %v904 = vrot.slane %v893, 4
      %v905 = vrot.slane %v895, 4
      %v906 = vrot.slane %v897, 4
      %v907 = vrot.slane %v899, 4
      %v908 = vrot.slane %v901, 4
      %v909 = vrot.slane %v903, 4
      %v910 = vsel %vm402, %v904, %v905
      %vm911 = vcmask 883712
      %v912 = vsel %vm911, %v893, %v910
      %v913 = vsel %vm402, %v905, %v906
      %v914 = vsel %vm911, %v895, %v913
      %v915 = vsel %vm402, %v906, %v907
      %v916 = vsel %vm911, %v897, %v915
      %v917 = vsel %vm402, %v907, %v908
      %v918 = vsel %vm911, %v899, %v917
      %v919 = vsel %vm402, %v908, %v909
      %v920 = vsel %vm911, %v901, %v919
      %926 = vst [vmem:[#allocation2 + $0x78] sm:$0x33] %v912
      %927 = vst [vmem:[#allocation2 + $0x80] sm:$0x33] %v914
      %928 = vst [vmem:[#allocation2 + $0x88] sm:$0x33] %v916
      %929 = vst [vmem:[#allocation2 + $0x90] sm:$0x33] %v918
      %930 = vst [vmem:[#allocation2 + $0x98] sm:$0x33] %v920
      %v931 = vld [vmem:[%s246] sm:$0xff]
      %v932 = vld [vmem:[%s246 + $0x8] sm:$0xff]
      %v933 = vld [vmem:[%s246 + $0x10] sm:$0xff]
      %v934 = vld [vmem:[%s246 + $0x18] sm:$0xff]
      %v935 = vld [vmem:[%s246 + $0x20] sm:$0xff]
      %v936 = vld [vmem:[%s246 + $0x28] sm:$0xf]
      %v942 = vcombine.high %v931, %v931
      %v943 = vcombine.high %v932, %v932
      %v944 = vcombine.high %v933, %v933
      %v945 = vcombine.high %v934, %v934
      %v946 = vcombine.high %v935, %v935
      %v952 = vpack.c.bf16 %v931, %v931
      %v953 = vpack.c.bf16 %v942, %v942
      %v954 = vpack.c.bf16 %v932, %v932
      %v955 = vpack.c.bf16 %v943, %v943
      %v956 = vpack.c.bf16 %v933, %v933
      %v957 = vpack.c.bf16 %v944, %v944
      %v958 = vpack.c.bf16 %v934, %v934
      %v959 = vpack.c.bf16 %v945, %v945
      %v960 = vpack.c.bf16 %v935, %v935
      %v961 = vpack.c.bf16 %v946, %v946
      %v962 = vpack.c.bf16 %v936, %v936
      %v974 = vunpack.c.l.b16 %v952
      %v975 = vunpack.c.l.b16 %v953
      %v976 = vunpack.c.l.b16 %v954
      %v977 = vunpack.c.l.b16 %v955
      %v978 = vunpack.c.l.b16 %v956
      %v979 = vunpack.c.l.b16 %v957
      %v980 = vunpack.c.l.b16 %v958
      %v981 = vunpack.c.l.b16 %v959
      %v982 = vunpack.c.l.b16 %v960
      %v983 = vunpack.c.l.b16 %v961
      %v984 = vunpack.c.l.b16 %v962
      %v985 = vpack.c.b16 %v975, %v974
      %v986 = vpack.c.b16 %v977, %v976
      %v987 = vpack.c.b16 %v979, %v978
      %v988 = vpack.c.b16 %v981, %v980
      %v989 = vpack.c.b16 %v983, %v982
      %v990 = vpack.c.b16 %v984, %v984
      %v991 = vrot.slane %v985, 6
      %v992 = vrot.slane %v986, 6
      %v993 = vrot.slane %v987, 6
      %v994 = vrot.slane %v988, 6
      %v995 = vrot.slane %v989, 6
      %v996 = vrot.slane %v990, 6
      %997 = vrot.lane.b32.xlu0 %v991, 107
      %v998 = vpop.permute.xlu0 %997
      %999 = vrot.lane.b32.xlu0 %v992, 107
      %v1000 = vpop.permute.xlu0 %999
      %1001 = vrot.lane.b32.xlu0 %v993, 107
      %v1002 = vpop.permute.xlu0 %1001
      %1003 = vrot.lane.b32.xlu0 %v994, 107
      %v1004 = vpop.permute.xlu0 %1003
      %1005 = vrot.lane.b32.xlu0 %v995, 107
      %v1006 = vpop.permute.xlu0 %1005
      %1007 = vrot.lane.b32.xlu0 %v996, 107
      %v1008 = vpop.permute.xlu0 %1007
      %v1009 = vrot.slane %v998, 4
      %v1010 = vrot.slane %v1000, 4
      %v1011 = vrot.slane %v1002, 4
      %v1012 = vrot.slane %v1004, 4
      %v1013 = vrot.slane %v1006, 4
      %v1014 = vrot.slane %v1008, 4
      %v1015 = vsel %vm402, %v1009, %v1010
      %vm1016 = vcmask 875520
      %v1017 = vsel %vm1016, %v998, %v1015
      %v1018 = vsel %vm402, %v1010, %v1011
      %v1019 = vsel %vm1016, %v1000, %v1018
      %v1020 = vsel %vm402, %v1011, %v1012
      %v1021 = vsel %vm1016, %v1002, %v1020
      %v1022 = vsel %vm402, %v1012, %v1013
      %v1023 = vsel %vm1016, %v1004, %v1022
      %v1024 = vsel %vm402, %v1013, %v1014
      %v1025 = vsel %vm1016, %v1006, %v1024
      %1031 = vst [vmem:[#allocation2 + $0x78] sm:$0xcc] %v1017
      %1032 = vst [vmem:[#allocation2 + $0x80] sm:$0xcc] %v1019
      %1033 = vst [vmem:[#allocation2 + $0x88] sm:$0xcc] %v1021
      %1034 = vst [vmem:[#allocation2 + $0x90] sm:$0xcc] %v1023
      %1035 = vst [vmem:[#allocation2 + $0x98] sm:$0xcc] %v1025
      %v1036 = vld [vmem:[%s246] sm:$0xff]
      %v1037 = vld [vmem:[%s246 + $0x8] sm:$0xff]
      %v1038 = vld [vmem:[%s246 + $0x10] sm:$0xff]
      %v1039 = vld [vmem:[%s246 + $0x18] sm:$0xff]
      %v1040 = vld [vmem:[%s246 + $0x20] sm:$0xff]
      %v1041 = vld [vmem:[%s246 + $0x28] sm:$0xf]
      %v1047 = vcombine.high %v1036, %v1036
      %v1048 = vcombine.high %v1037, %v1037
      %v1049 = vcombine.high %v1038, %v1038
      %v1050 = vcombine.high %v1039, %v1039
      %v1051 = vcombine.high %v1040, %v1040
      %v1057 = vpack.c.bf16 %v1036, %v1036
      %v1058 = vpack.c.bf16 %v1047, %v1047
      %v1059 = vpack.c.bf16 %v1037, %v1037
      %v1060 = vpack.c.bf16 %v1048, %v1048
      %v1061 = vpack.c.bf16 %v1038, %v1038
      %v1062 = vpack.c.bf16 %v1049, %v1049
      %v1063 = vpack.c.bf16 %v1039, %v1039
      %v1064 = vpack.c.bf16 %v1050, %v1050
      %v1065 = vpack.c.bf16 %v1040, %v1040
      %v1066 = vpack.c.bf16 %v1051, %v1051
      %v1067 = vpack.c.bf16 %v1041, %v1041
      %v1079 = vunpack.c.l.b16 %v1057
      %v1080 = vunpack.c.l.b16 %v1058
      %v1081 = vunpack.c.l.b16 %v1059
      %v1082 = vunpack.c.l.b16 %v1060
      %v1083 = vunpack.c.l.b16 %v1061
      %v1084 = vunpack.c.l.b16 %v1062
      %v1085 = vunpack.c.l.b16 %v1063
      %v1086 = vunpack.c.l.b16 %v1064
      %v1087 = vunpack.c.l.b16 %v1065
      %v1088 = vunpack.c.l.b16 %v1066
      %v1089 = vunpack.c.l.b16 %v1067
      %v1090 = vpack.c.b16 %v1080, %v1079
      %v1091 = vpack.c.b16 %v1082, %v1081
      %v1092 = vpack.c.b16 %v1084, %v1083
      %v1093 = vpack.c.b16 %v1086, %v1085
      %v1094 = vpack.c.b16 %v1088, %v1087
      %v1095 = vpack.c.b16 %v1089, %v1089
      %1096 = vrot.lane.b32.xlu0 %v1090, 106
      %v1097 = vpop.permute.xlu0 %1096
      %1098 = vrot.lane.b32.xlu0 %v1091, 106
      %v1099 = vpop.permute.xlu0 %1098
      %1100 = vrot.lane.b32.xlu0 %v1092, 106
      %v1101 = vpop.permute.xlu0 %1100
      %1102 = vrot.lane.b32.xlu0 %v1093, 106
      %v1103 = vpop.permute.xlu0 %1102
      %1104 = vrot.lane.b32.xlu0 %v1094, 106
      %v1105 = vpop.permute.xlu0 %1104
      %1106 = vrot.lane.b32.xlu0 %v1095, 106
      %v1107 = vpop.permute.xlu0 %1106
      %v1108 = vrot.slane %v1097, 4
      %v1109 = vrot.slane %v1099, 4
      %v1110 = vrot.slane %v1101, 4
      %v1111 = vrot.slane %v1103, 4
      %v1112 = vrot.slane %v1105, 4
      %v1113 = vrot.slane %v1107, 4
      %v1114 = vsel %vm402, %v1108, %v1109
      %vm1115 = vcmask 867328
      %v1116 = vsel %vm1115, %v1097, %v1114
      %v1117 = vsel %vm402, %v1109, %v1110
      %v1118 = vsel %vm1115, %v1099, %v1117
      %v1119 = vsel %vm402, %v1110, %v1111
      %v1120 = vsel %vm1115, %v1101, %v1119
      %v1121 = vsel %vm402, %v1111, %v1112
      %v1122 = vsel %vm1115, %v1103, %v1121
      %v1123 = vsel %vm402, %v1112, %v1113
      %v1124 = vsel %vm1115, %v1105, %v1123
      %1130 = vst [vmem:[#allocation2 + $0xa0] sm:$0x33] %v1116
      %1131 = vst [vmem:[#allocation2 + $0xa8] sm:$0x33] %v1118
      %1132 = vst [vmem:[#allocation2 + $0xb0] sm:$0x33] %v1120
      %1133 = vst [vmem:[#allocation2 + $0xb8] sm:$0x33] %v1122
      %1134 = vst [vmem:[#allocation2 + $0xc0] sm:$0x33] %v1124
      %v1135 = vld [vmem:[%s246 + $0x4] sm:$0xff]
      %v1136 = vld [vmem:[%s246 + $0xc] sm:$0xff]
      %v1137 = vld [vmem:[%s246 + $0x14] sm:$0xff]
      %v1138 = vld [vmem:[%s246 + $0x1c] sm:$0xff]
      %v1139 = vld [vmem:[%s246 + $0x24] sm:$0xff]
      %v1140 = vld [vmem:[%s246 + $0x2c] sm:$0xf]
      %v1146 = vcombine.high %v1135, %v1135
      %v1147 = vcombine.high %v1136, %v1136
      %v1148 = vcombine.high %v1137, %v1137
      %v1149 = vcombine.high %v1138, %v1138
      %v1150 = vcombine.high %v1139, %v1139
      %v1156 = vpack.c.bf16 %v1135, %v1135
      %v1157 = vpack.c.bf16 %v1146, %v1146
      %v1158 = vpack.c.bf16 %v1136, %v1136
      %v1159 = vpack.c.bf16 %v1147, %v1147
      %v1160 = vpack.c.bf16 %v1137, %v1137
      %v1161 = vpack.c.bf16 %v1148, %v1148
      %v1162 = vpack.c.bf16 %v1138, %v1138
      %v1163 = vpack.c.bf16 %v1149, %v1149
      %v1164 = vpack.c.bf16 %v1139, %v1139
      %v1165 = vpack.c.bf16 %v1150, %v1150
      %v1166 = vpack.c.bf16 %v1140, %v1140
      %v1178 = vunpack.c.l.b16 %v1156
      %v1179 = vunpack.c.l.b16 %v1157
      %v1180 = vunpack.c.l.b16 %v1158
      %v1181 = vunpack.c.l.b16 %v1159
      %v1182 = vunpack.c.l.b16 %v1160
      %v1183 = vunpack.c.l.b16 %v1161
      %v1184 = vunpack.c.l.b16 %v1162
      %v1185 = vunpack.c.l.b16 %v1163
      %v1186 = vunpack.c.l.b16 %v1164
      %v1187 = vunpack.c.l.b16 %v1165
      %v1188 = vunpack.c.l.b16 %v1166
      %v1189 = vpack.c.b16 %v1179, %v1178
      %v1190 = vpack.c.b16 %v1181, %v1180
      %v1191 = vpack.c.b16 %v1183, %v1182
      %v1192 = vpack.c.b16 %v1185, %v1184
      %v1193 = vpack.c.b16 %v1187, %v1186
      %v1194 = vpack.c.b16 %v1188, %v1188
      %v1195 = vrot.slane %v1189, 6
      %v1196 = vrot.slane %v1190, 6
      %v1197 = vrot.slane %v1191, 6
      %v1198 = vrot.slane %v1192, 6
      %v1199 = vrot.slane %v1193, 6
      %v1200 = vrot.slane %v1194, 6
      %1201 = vrot.lane.b32.xlu0 %v1195, 96
      %v1202 = vpop.permute.xlu0 %1201
      %1203 = vrot.lane.b32.xlu0 %v1196, 96
      %v1204 = vpop.permute.xlu0 %1203
      %1205 = vrot.lane.b32.xlu0 %v1197, 96
      %v1206 = vpop.permute.xlu0 %1205
      %1207 = vrot.lane.b32.xlu0 %v1198, 96
      %v1208 = vpop.permute.xlu0 %1207
      %1209 = vrot.lane.b32.xlu0 %v1199, 96
      %v1210 = vpop.permute.xlu0 %1209
      %1211 = vrot.lane.b32.xlu0 %v1200, 96
      %v1212 = vpop.permute.xlu0 %1211
      %v1213 = vrot.slane %v1202, 4
      %v1214 = vrot.slane %v1204, 4
      %v1215 = vrot.slane %v1206, 4
      %v1216 = vrot.slane %v1208, 4
      %v1217 = vrot.slane %v1210, 4
      %v1218 = vrot.slane %v1212, 4
      %v1219 = vsel %vm402, %v1213, %v1214
      %vm1220 = vcmask 785408
      %v1221 = vsel %vm1220, %v1202, %v1219
      %v1222 = vsel %vm402, %v1214, %v1215
      %v1223 = vsel %vm1220, %v1204, %v1222
      %v1224 = vsel %vm402, %v1215, %v1216
      %v1225 = vsel %vm1220, %v1206, %v1224
      %v1226 = vsel %vm402, %v1216, %v1217
      %v1227 = vsel %vm1220, %v1208, %v1226
      %v1228 = vsel %vm402, %v1217, %v1218
      %v1229 = vsel %vm1220, %v1210, %v1228
      %1235 = vst [vmem:[#allocation2 + $0xa0] sm:$0xcc] %v1221
      %1236 = vst [vmem:[#allocation2 + $0xa8] sm:$0xcc] %v1223
      %1237 = vst [vmem:[#allocation2 + $0xb0] sm:$0xcc] %v1225
      %1238 = vst [vmem:[#allocation2 + $0xb8] sm:$0xcc] %v1227
      %1239 = vst [vmem:[#allocation2 + $0xc0] sm:$0xcc] %v1229
      %v1240 = vld [vmem:[%s246 + $0x4] sm:$0xff]
      %v1241 = vld [vmem:[%s246 + $0xc] sm:$0xff]
      %v1242 = vld [vmem:[%s246 + $0x14] sm:$0xff]
      %v1243 = vld [vmem:[%s246 + $0x1c] sm:$0xff]
      %v1244 = vld [vmem:[%s246 + $0x24] sm:$0xff]
      %v1245 = vld [vmem:[%s246 + $0x2c] sm:$0xf]
      %v1251 = vcombine.high %v1240, %v1240
      %v1252 = vcombine.high %v1241, %v1241
      %v1253 = vcombine.high %v1242, %v1242
      %v1254 = vcombine.high %v1243, %v1243
      %v1255 = vcombine.high %v1244, %v1244
      %v1261 = vpack.c.bf16 %v1240, %v1240
      %v1262 = vpack.c.bf16 %v1251, %v1251
      %v1263 = vpack.c.bf16 %v1241, %v1241
      %v1264 = vpack.c.bf16 %v1252, %v1252
      %v1265 = vpack.c.bf16 %v1242, %v1242
      %v1266 = vpack.c.bf16 %v1253, %v1253
      %v1267 = vpack.c.bf16 %v1243, %v1243
      %v1268 = vpack.c.bf16 %v1254, %v1254
      %v1269 = vpack.c.bf16 %v1244, %v1244
      %v1270 = vpack.c.bf16 %v1255, %v1255
      %v1271 = vpack.c.bf16 %v1245, %v1245
      %v1283 = vunpack.c.l.b16 %v1261
      %v1284 = vunpack.c.l.b16 %v1262
      %v1285 = vunpack.c.l.b16 %v1263
      %v1286 = vunpack.c.l.b16 %v1264
      %v1287 = vunpack.c.l.b16 %v1265
      %v1288 = vunpack.c.l.b16 %v1266
      %v1289 = vunpack.c.l.b16 %v1267
      %v1290 = vunpack.c.l.b16 %v1268
      %v1291 = vunpack.c.l.b16 %v1269
      %v1292 = vunpack.c.l.b16 %v1270
      %v1293 = vunpack.c.l.b16 %v1271
      %v1294 = vpack.c.b16 %v1284, %v1283
      %v1295 = vpack.c.b16 %v1286, %v1285
      %v1296 = vpack.c.b16 %v1288, %v1287
      %v1297 = vpack.c.b16 %v1290, %v1289
      %v1298 = vpack.c.b16 %v1292, %v1291
      %v1299 = vpack.c.b16 %v1293, %v1293
      %1300 = vrot.lane.b32.xlu0 %v1294, 95
      %v1301 = vpop.permute.xlu0 %1300
      %1302 = vrot.lane.b32.xlu0 %v1295, 95
      %v1303 = vpop.permute.xlu0 %1302
      %1304 = vrot.lane.b32.xlu0 %v1296, 95
      %v1305 = vpop.permute.xlu0 %1304
      %1306 = vrot.lane.b32.xlu0 %v1297, 95
      %v1307 = vpop.permute.xlu0 %1306
      %1308 = vrot.lane.b32.xlu0 %v1298, 95
      %v1309 = vpop.permute.xlu0 %1308
      %1310 = vrot.lane.b32.xlu0 %v1299, 95
      %v1311 = vpop.permute.xlu0 %1310
      %v1312 = vrot.slane %v1301, 4
      %v1313 = vrot.slane %v1303, 4
      %v1314 = vrot.slane %v1305, 4
      %v1315 = vrot.slane %v1307, 4
      %v1316 = vrot.slane %v1309, 4
      %v1317 = vrot.slane %v1311, 4
      %v1318 = vsel %vm402, %v1312, %v1313
      %vm1319 = vcmask 777216
      %v1320 = vsel %vm1319, %v1301, %v1318
      %v1321 = vsel %vm402, %v1313, %v1314
      %v1322 = vsel %vm1319, %v1303, %v1321
      %v1323 = vsel %vm402, %v1314, %v1315
      %v1324 = vsel %vm1319, %v1305, %v1323
      %v1325 = vsel %vm402, %v1315, %v1316
      %v1326 = vsel %vm1319, %v1307, %v1325
      %v1327 = vsel %vm402, %v1316, %v1317
      %v1328 = vsel %vm1319, %v1309, %v1327
      %1334 = vst [vmem:[#allocation2 + $0xc8] sm:$0x33] %v1320
      %1335 = vst [vmem:[#allocation2 + $0xd0] sm:$0x33] %v1322
      %1336 = vst [vmem:[#allocation2 + $0xd8] sm:$0x33] %v1324
      %1337 = vst [vmem:[#allocation2 + $0xe0] sm:$0x33] %v1326
      %1338 = vst [vmem:[#allocation2 + $0xe8] sm:$0x33] %v1328
      %v1339 = vld [vmem:[%s246 + $0x4] sm:$0xff]
      %v1340 = vld [vmem:[%s246 + $0xc] sm:$0xff]
      %v1341 = vld [vmem:[%s246 + $0x14] sm:$0xff]
      %v1342 = vld [vmem:[%s246 + $0x1c] sm:$0xff]
      %v1343 = vld [vmem:[%s246 + $0x24] sm:$0xff]
      %v1344 = vld [vmem:[%s246 + $0x2c] sm:$0xf]
      %v1350 = vcombine.high %v1339, %v1339
      %v1351 = vcombine.high %v1340, %v1340
      %v1352 = vcombine.high %v1341, %v1341
      %v1353 = vcombine.high %v1342, %v1342
      %v1354 = vcombine.high %v1343, %v1343
      %v1360 = vpack.c.bf16 %v1339, %v1339
      %v1361 = vpack.c.bf16 %v1350, %v1350
      %v1362 = vpack.c.bf16 %v1340, %v1340
      %v1363 = vpack.c.bf16 %v1351, %v1351
      %v1364 = vpack.c.bf16 %v1341, %v1341
      %v1365 = vpack.c.bf16 %v1352, %v1352
      %v1366 = vpack.c.bf16 %v1342, %v1342
      %v1367 = vpack.c.bf16 %v1353, %v1353
      %v1368 = vpack.c.bf16 %v1343, %v1343
      %v1369 = vpack.c.bf16 %v1354, %v1354
      %v1370 = vpack.c.bf16 %v1344, %v1344
      %v1382 = vunpack.c.l.b16 %v1360
      %v1383 = vunpack.c.l.b16 %v1361
      %v1384 = vunpack.c.l.b16 %v1362
      %v1385 = vunpack.c.l.b16 %v1363
      %v1386 = vunpack.c.l.b16 %v1364
      %v1387 = vunpack.c.l.b16 %v1365
      %v1388 = vunpack.c.l.b16 %v1366
      %v1389 = vunpack.c.l.b16 %v1367
      %v1390 = vunpack.c.l.b16 %v1368
      %v1391 = vunpack.c.l.b16 %v1369
      %v1392 = vunpack.c.l.b16 %v1370
      %v1393 = vpack.c.b16 %v1383, %v1382
      %v1394 = vpack.c.b16 %v1385, %v1384
      %v1395 = vpack.c.b16 %v1387, %v1386
      %v1396 = vpack.c.b16 %v1389, %v1388
      %v1397 = vpack.c.b16 %v1391, %v1390
      %v1398 = vpack.c.b16 %v1392, %v1392
      %v1399 = vrot.slane %v1393, 6
      %v1400 = vrot.slane %v1394, 6
      %v1401 = vrot.slane %v1395, 6
      %v1402 = vrot.slane %v1396, 6
      %v1403 = vrot.slane %v1397, 6
      %v1404 = vrot.slane %v1398, 6
      %1405 = vrot.lane.b32.xlu0 %v1399, 94
      %v1406 = vpop.permute.xlu0 %1405
      %1407 = vrot.lane.b32.xlu0 %v1400, 94
      %v1408 = vpop.permute.xlu0 %1407
      %1409 = vrot.lane.b32.xlu0 %v1401, 94
      %v1410 = vpop.permute.xlu0 %1409
      %1411 = vrot.lane.b32.xlu0 %v1402, 94
      %v1412 = vpop.permute.xlu0 %1411
      %1413 = vrot.lane.b32.xlu0 %v1403, 94
      %v1414 = vpop.permute.xlu0 %1413
      %1415 = vrot.lane.b32.xlu0 %v1404, 94
      %v1416 = vpop.permute.xlu0 %1415
      %v1417 = vrot.slane %v1406, 4
      %v1418 = vrot.slane %v1408, 4
      %v1419 = vrot.slane %v1410, 4
      %v1420 = vrot.slane %v1412, 4
      %v1421 = vrot.slane %v1414, 4
      %v1422 = vrot.slane %v1416, 4
      %v1423 = vsel %vm402, %v1417, %v1418
      %vm1424 = vcmask 769024
      %v1425 = vsel %vm1424, %v1406, %v1423
      %v1426 = vsel %vm402, %v1418, %v1419
      %v1427 = vsel %vm1424, %v1408, %v1426
      %v1428 = vsel %vm402, %v1419, %v1420
      %v1429 = vsel %vm1424, %v1410, %v1428
      %v1430 = vsel %vm402, %v1420, %v1421
      %v1431 = vsel %vm1424, %v1412, %v1430
      %v1432 = vsel %vm402, %v1421, %v1422
      %v1433 = vsel %vm1424, %v1414, %v1432
      %1439 = vst [vmem:[#allocation2 + $0xc8] sm:$0xcc] %v1425
      %1440 = vst [vmem:[#allocation2 + $0xd0] sm:$0xcc] %v1427
      %1441 = vst [vmem:[#allocation2 + $0xd8] sm:$0xcc] %v1429
      %1442 = vst [vmem:[#allocation2 + $0xe0] sm:$0xcc] %v1431
      %1443 = vst [vmem:[#allocation2 + $0xe8] sm:$0xcc] %v1433
      %v1444 = vld [vmem:[%s246 + $0x4] sm:$0xff]
      %v1445 = vld [vmem:[%s246 + $0xc] sm:$0xff]
      %v1446 = vld [vmem:[%s246 + $0x14] sm:$0xff]
      %v1447 = vld [vmem:[%s246 + $0x1c] sm:$0xff]
      %v1448 = vld [vmem:[%s246 + $0x24] sm:$0xff]
      %v1449 = vld [vmem:[%s246 + $0x2c] sm:$0xf]
      %v1455 = vcombine.high %v1444, %v1444
      %v1456 = vcombine.high %v1445, %v1445
      %v1457 = vcombine.high %v1446, %v1446
      %v1458 = vcombine.high %v1447, %v1447
      %v1459 = vcombine.high %v1448, %v1448
      %v1465 = vpack.c.bf16 %v1444, %v1444
      %v1466 = vpack.c.bf16 %v1455, %v1455
      %v1467 = vpack.c.bf16 %v1445, %v1445
      %v1468 = vpack.c.bf16 %v1456, %v1456
      %v1469 = vpack.c.bf16 %v1446, %v1446
      %v1470 = vpack.c.bf16 %v1457, %v1457
      %v1471 = vpack.c.bf16 %v1447, %v1447
      %v1472 = vpack.c.bf16 %v1458, %v1458
      %v1473 = vpack.c.bf16 %v1448, %v1448
      %v1474 = vpack.c.bf16 %v1459, %v1459
      %v1475 = vpack.c.bf16 %v1449, %v1449
      %v1487 = vunpack.c.l.b16 %v1465
      %v1488 = vunpack.c.l.b16 %v1466
      %v1489 = vunpack.c.l.b16 %v1467
      %v1490 = vunpack.c.l.b16 %v1468
      %v1491 = vunpack.c.l.b16 %v1469
      %v1492 = vunpack.c.l.b16 %v1470
      %v1493 = vunpack.c.l.b16 %v1471
      %v1494 = vunpack.c.l.b16 %v1472
      %v1495 = vunpack.c.l.b16 %v1473
      %v1496 = vunpack.c.l.b16 %v1474
      %v1497 = vunpack.c.l.b16 %v1475
      %v1498 = vpack.c.b16 %v1488, %v1487
      %v1499 = vpack.c.b16 %v1490, %v1489
      %v1500 = vpack.c.b16 %v1492, %v1491
      %v1501 = vpack.c.b16 %v1494, %v1493
      %v1502 = vpack.c.b16 %v1496, %v1495
      %v1503 = vpack.c.b16 %v1497, %v1497
      %1504 = vrot.lane.b32.xlu0 %v1498, 86
      %v1505 = vpop.permute.xlu0 %1504
      %1506 = vrot.lane.b32.xlu0 %v1499, 86
      %v1507 = vpop.permute.xlu0 %1506
      %1508 = vrot.lane.b32.xlu0 %v1500, 86
      %v1509 = vpop.permute.xlu0 %1508
      %1510 = vrot.lane.b32.xlu0 %v1501, 86
      %v1511 = vpop.permute.xlu0 %1510
      %1512 = vrot.lane.b32.xlu0 %v1502, 86
      %v1513 = vpop.permute.xlu0 %1512
      %1514 = vrot.lane.b32.xlu0 %v1503, 86
      %v1515 = vpop.permute.xlu0 %1514
      %v1516 = vrot.slane %v1505, 4
      %v1517 = vrot.slane %v1507, 4
      %v1518 = vrot.slane %v1509, 4
      %v1519 = vrot.slane %v1511, 4
      %v1520 = vrot.slane %v1513, 4
      %v1521 = vrot.slane %v1515, 4
      %v1522 = vsel %vm402, %v1516, %v1517
      %vm1523 = vcmask 703488
      %v1524 = vsel %vm1523, %v1505, %v1522
      %v1525 = vsel %vm402, %v1517, %v1518
      %v1526 = vsel %vm1523, %v1507, %v1525
      %v1527 = vsel %vm402, %v1518, %v1519
      %v1528 = vsel %vm1523, %v1509, %v1527
      %v1529 = vsel %vm402, %v1519, %v1520
      %v1530 = vsel %vm1523, %v1511, %v1529
      %v1531 = vsel %vm402, %v1520, %v1521
      %v1532 = vsel %vm1523, %v1513, %v1531
      %1538 = vst [vmem:[#allocation2 + $0xf0] sm:$0x33] %v1524
      %1539 = vst [vmem:[#allocation2 + $0xf8] sm:$0x33] %v1526
      %1540 = vst [vmem:[#allocation2 + $0x100] sm:$0x33] %v1528
      %1541 = vst [vmem:[#allocation2 + $0x108] sm:$0x33] %v1530
      %1542 = vst [vmem:[#allocation2 + $0x110] sm:$0x33] %v1532
      %v1543 = vld [vmem:[%s246 + $0x4] sm:$0xff]
      %v1544 = vld [vmem:[%s246 + $0xc] sm:$0xff]
      %v1545 = vld [vmem:[%s246 + $0x14] sm:$0xff]
      %v1546 = vld [vmem:[%s246 + $0x1c] sm:$0xff]
      %v1547 = vld [vmem:[%s246 + $0x24] sm:$0xff]
      %v1548 = vld [vmem:[%s246 + $0x2c] sm:$0xf]
      %v1554 = vcombine.high %v1543, %v1543
      %v1555 = vcombine.high %v1544, %v1544
      %v1556 = vcombine.high %v1545, %v1545
      %v1557 = vcombine.high %v1546, %v1546
      %v1558 = vcombine.high %v1547, %v1547
      %v1564 = vpack.c.bf16 %v1543, %v1543
      %v1565 = vpack.c.bf16 %v1554, %v1554
      %v1566 = vpack.c.bf16 %v1544, %v1544
      %v1567 = vpack.c.bf16 %v1555, %v1555
      %v1568 = vpack.c.bf16 %v1545, %v1545
      %v1569 = vpack.c.bf16 %v1556, %v1556
      %v1570 = vpack.c.bf16 %v1546, %v1546
      %v1571 = vpack.c.bf16 %v1557, %v1557
      %v1572 = vpack.c.bf16 %v1547, %v1547
      %v1573 = vpack.c.bf16 %v1558, %v1558
      %v1574 = vpack.c.bf16 %v1548, %v1548
      %v1586 = vunpack.c.l.b16 %v1564
      %v1587 = vunpack.c.l.b16 %v1565
      %v1588 = vunpack.c.l.b16 %v1566
      %v1589 = vunpack.c.l.b16 %v1567
      %v1590 = vunpack.c.l.b16 %v1568
      %v1591 = vunpack.c.l.b16 %v1569
      %v1592 = vunpack.c.l.b16 %v1570
      %v1593 = vunpack.c.l.b16 %v1571
      %v1594 = vunpack.c.l.b16 %v1572
      %v1595 = vunpack.c.l.b16 %v1573
      %v1596 = vunpack.c.l.b16 %v1574
      %v1597 = vpack.c.b16 %v1587, %v1586
      %v1598 = vpack.c.b16 %v1589, %v1588
      %v1599 = vpack.c.b16 %v1591, %v1590
      %v1600 = vpack.c.b16 %v1593, %v1592
      %v1601 = vpack.c.b16 %v1595, %v1594
      %v1602 = vpack.c.b16 %v1596, %v1596
      %v1603 = vrot.slane %v1597, 6
      %v1604 = vrot.slane %v1598, 6
      %v1605 = vrot.slane %v1599, 6
      %v1606 = vrot.slane %v1600, 6
      %v1607 = vrot.slane %v1601, 6
      %v1608 = vrot.slane %v1602, 6
      %1609 = vrot.lane.b32.xlu0 %v1603, 85
      %v1610 = vpop.permute.xlu0 %1609
      %1611 = vrot.lane.b32.xlu0 %v1604, 85
      %v1612 = vpop.permute.xlu0 %1611
      %1613 = vrot.lane.b32.xlu0 %v1605, 85
      %v1614 = vpop.permute.xlu0 %1613
      %1615 = vrot.lane.b32.xlu0 %v1606, 85
      %v1616 = vpop.permute.xlu0 %1615
      %1617 = vrot.lane.b32.xlu0 %v1607, 85
      %v1618 = vpop.permute.xlu0 %1617
      %1619 = vrot.lane.b32.xlu0 %v1608, 85
      %v1620 = vpop.permute.xlu0 %1619
      %v1621 = vrot.slane %v1610, 4
      %v1622 = vrot.slane %v1612, 4
      %v1623 = vrot.slane %v1614, 4
      %v1624 = vrot.slane %v1616, 4
      %v1625 = vrot.slane %v1618, 4
      %v1626 = vrot.slane %v1620, 4
      %v1627 = vsel %vm402, %v1621, %v1622
      %vm1628 = vcmask 695296
      %v1629 = vsel %vm1628, %v1610, %v1627
      %v1630 = vsel %vm402, %v1622, %v1623
      %v1631 = vsel %vm1628, %v1612, %v1630
      %v1632 = vsel %vm402, %v1623, %v1624
      %v1633 = vsel %vm1628, %v1614, %v1632
      %v1634 = vsel %vm402, %v1624, %v1625
      %v1635 = vsel %vm1628, %v1616, %v1634
      %v1636 = vsel %vm402, %v1625, %v1626
      %v1637 = vsel %vm1628, %v1618, %v1636
      %1643 = vst [vmem:[#allocation2 + $0xf0] sm:$0xcc] %v1629
      %1644 = vst [vmem:[#allocation2 + $0xf8] sm:$0xcc] %v1631
      %1645 = vst [vmem:[#allocation2 + $0x100] sm:$0xcc] %v1633
      %1646 = vst [vmem:[#allocation2 + $0x108] sm:$0xcc] %v1635
      %1647 = vst [vmem:[#allocation2 + $0x110] sm:$0xcc] %v1637
      %v1648 = vld [vmem:[%s246 + $0x4] sm:$0xff]
      %v1649 = vld [vmem:[%s246 + $0xc] sm:$0xff]
      %v1650 = vld [vmem:[%s246 + $0x14] sm:$0xff]
      %v1651 = vld [vmem:[%s246 + $0x1c] sm:$0xff]
      %v1652 = vld [vmem:[%s246 + $0x24] sm:$0xff]
      %v1653 = vld [vmem:[%s246 + $0x2c] sm:$0xf]
      %v1659 = vcombine.high %v1648, %v1648
      %v1660 = vcombine.high %v1649, %v1649
      %v1661 = vcombine.high %v1650, %v1650
      %v1662 = vcombine.high %v1651, %v1651
      %v1663 = vcombine.high %v1652, %v1652
      %v1669 = vpack.c.bf16 %v1648, %v1648
      %v1670 = vpack.c.bf16 %v1659, %v1659
      %v1671 = vpack.c.bf16 %v1649, %v1649
      %v1672 = vpack.c.bf16 %v1660, %v1660
      %v1673 = vpack.c.bf16 %v1650, %v1650
      %v1674 = vpack.c.bf16 %v1661, %v1661
      %v1675 = vpack.c.bf16 %v1651, %v1651
      %v1676 = vpack.c.bf16 %v1662, %v1662
      %v1677 = vpack.c.bf16 %v1652, %v1652
      %v1678 = vpack.c.bf16 %v1663, %v1663
      %v1679 = vpack.c.bf16 %v1653, %v1653
      %v1691 = vunpack.c.l.b16 %v1669
      %v1692 = vunpack.c.l.b16 %v1670
      %v1693 = vunpack.c.l.b16 %v1671
      %v1694 = vunpack.c.l.b16 %v1672
      %v1695 = vunpack.c.l.b16 %v1673
      %v1696 = vunpack.c.l.b16 %v1674
      %v1697 = vunpack.c.l.b16 %v1675
      %v1698 = vunpack.c.l.b16 %v1676
      %v1699 = vunpack.c.l.b16 %v1677
      %v1700 = vunpack.c.l.b16 %v1678
      %v1701 = vunpack.c.l.b16 %v1679
      %v1702 = vpack.c.b16 %v1692, %v1691
      %v1703 = vpack.c.b16 %v1694, %v1693
      %v1704 = vpack.c.b16 %v1696, %v1695
      %v1705 = vpack.c.b16 %v1698, %v1697
      %v1706 = vpack.c.b16 %v1700, %v1699
      %v1707 = vpack.c.b16 %v1701, %v1701
      %1708 = vrot.lane.b32.xlu0 %v1702, 84
      %v1709 = vpop.permute.xlu0 %1708
      %1710 = vrot.lane.b32.xlu0 %v1703, 84
      %v1711 = vpop.permute.xlu0 %1710
      %1712 = vrot.lane.b32.xlu0 %v1704, 84
      %v1713 = vpop.permute.xlu0 %1712
      %1714 = vrot.lane.b32.xlu0 %v1705, 84
      %v1715 = vpop.permute.xlu0 %1714
      %1716 = vrot.lane.b32.xlu0 %v1706, 84
      %v1717 = vpop.permute.xlu0 %1716
      %1718 = vrot.lane.b32.xlu0 %v1707, 84
      %v1719 = vpop.permute.xlu0 %1718
      %v1720 = vrot.slane %v1709, 4
      %v1721 = vrot.slane %v1711, 4
      %v1722 = vrot.slane %v1713, 4
      %v1723 = vrot.slane %v1715, 4
      %v1724 = vrot.slane %v1717, 4
      %v1725 = vrot.slane %v1719, 4
      %v1726 = vsel %vm402, %v1720, %v1721
      %vm1727 = vcmask 687104
      %v1728 = vsel %vm1727, %v1709, %v1726
      %v1729 = vsel %vm402, %v1721, %v1722
      %v1730 = vsel %vm1727, %v1711, %v1729
      %v1731 = vsel %vm402, %v1722, %v1723
      %v1732 = vsel %vm1727, %v1713, %v1731
      %v1733 = vsel %vm402, %v1723, %v1724
      %v1734 = vsel %vm1727, %v1715, %v1733
      %v1735 = vsel %vm402, %v1724, %v1725
      %v1736 = vsel %vm1727, %v1717, %v1735
      %1742 = vst [vmem:[#allocation2 + $0x118] sm:$0x33] %v1728
      %1743 = vst [vmem:[#allocation2 + $0x120] sm:$0x33] %v1730
      %1744 = vst [vmem:[#allocation2 + $0x128] sm:$0x33] %v1732
      %1745 = vst [vmem:[#allocation2 + $0x130] sm:$0x33] %v1734
      %1746 = vst [vmem:[#allocation2 + $0x138] sm:$0x33] %v1736
      %v1747 = vld [vmem:[%s246 + $0x4] sm:$0xff]
      %v1748 = vld [vmem:[%s246 + $0xc] sm:$0xff]
      %v1749 = vld [vmem:[%s246 + $0x14] sm:$0xff]
      %v1750 = vld [vmem:[%s246 + $0x1c] sm:$0xff]
      %v1751 = vld [vmem:[%s246 + $0x24] sm:$0xff]
      %v1752 = vld [vmem:[%s246 + $0x2c] sm:$0xf]
      %v1758 = vcombine.high %v1747, %v1747
      %v1759 = vcombine.high %v1748, %v1748
      %v1760 = vcombine.high %v1749, %v1749
      %v1761 = vcombine.high %v1750, %v1750
      %v1762 = vcombine.high %v1751, %v1751
      %v1768 = vpack.c.bf16 %v1747, %v1747
      %v1769 = vpack.c.bf16 %v1758, %v1758
      %v1770 = vpack.c.bf16 %v1748, %v1748
      %v1771 = vpack.c.bf16 %v1759, %v1759
      %v1772 = vpack.c.bf16 %v1749, %v1749
      %v1773 = vpack.c.bf16 %v1760, %v1760
      %v1774 = vpack.c.bf16 %v1750, %v1750
      %v1775 = vpack.c.bf16 %v1761, %v1761
      %v1776 = vpack.c.bf16 %v1751, %v1751
      %v1777 = vpack.c.bf16 %v1762, %v1762
      %v1778 = vpack.c.bf16 %v1752, %v1752
      %v1790 = vunpack.c.l.b16 %v1768
      %v1791 = vunpack.c.l.b16 %v1769
      %v1792 = vunpack.c.l.b16 %v1770
      %v1793 = vunpack.c.l.b16 %v1771
      %v1794 = vunpack.c.l.b16 %v1772
      %v1795 = vunpack.c.l.b16 %v1773
      %v1796 = vunpack.c.l.b16 %v1774
      %v1797 = vunpack.c.l.b16 %v1775
      %v1798 = vunpack.c.l.b16 %v1776
      %v1799 = vunpack.c.l.b16 %v1777
      %v1800 = vunpack.c.l.b16 %v1778
      %v1801 = vpack.c.b16 %v1791, %v1790
      %v1802 = vpack.c.b16 %v1793, %v1792
      %v1803 = vpack.c.b16 %v1795, %v1794
      %v1804 = vpack.c.b16 %v1797, %v1796
      %v1805 = vpack.c.b16 %v1799, %v1798
      %v1806 = vpack.c.b16 %v1800, %v1800
      %v1807 = vrot.slane %v1801, 6
      %v1808 = vrot.slane %v1802, 6
      %v1809 = vrot.slane %v1803, 6
      %v1810 = vrot.slane %v1804, 6
      %v1811 = vrot.slane %v1805, 6
      %v1812 = vrot.slane %v1806, 6
      %1813 = vrot.lane.b32.xlu0 %v1807, 76
      %v1814 = vpop.permute.xlu0 %1813
      %1815 = vrot.lane.b32.xlu0 %v1808, 76
      %v1816 = vpop.permute.xlu0 %1815
      %1817 = vrot.lane.b32.xlu0 %v1809, 76
      %v1818 = vpop.permute.xlu0 %1817
      %1819 = vrot.lane.b32.xlu0 %v1810, 76
      %v1820 = vpop.permute.xlu0 %1819
      %1821 = vrot.lane.b32.xlu0 %v1811, 76
      %v1822 = vpop.permute.xlu0 %1821
      %1823 = vrot.lane.b32.xlu0 %v1812, 76
      %v1824 = vpop.permute.xlu0 %1823
      %v1825 = vrot.slane %v1814, 4
      %v1826 = vrot.slane %v1816, 4
      %v1827 = vrot.slane %v1818, 4
      %v1828 = vrot.slane %v1820, 4
      %v1829 = vrot.slane %v1822, 4
      %v1830 = vrot.slane %v1824, 4
      %v1831 = vsel %vm402, %v1825, %v1826
      %vm1832 = vcmask 621568
      %v1833 = vsel %vm1832, %v1814, %v1831
      %v1834 = vsel %vm402, %v1826, %v1827
      %v1835 = vsel %vm1832, %v1816, %v1834
      %v1836 = vsel %vm402, %v1827, %v1828
      %v1837 = vsel %vm1832, %v1818, %v1836
      %v1838 = vsel %vm402, %v1828, %v1829
      %v1839 = vsel %vm1832, %v1820, %v1838
      %v1840 = vsel %vm402, %v1829, %v1830
      %v1841 = vsel %vm1832, %v1822, %v1840
      %1847 = vst [vmem:[#allocation2 + $0x118] sm:$0xcc] %v1833
      %1848 = vst [vmem:[#allocation2 + $0x120] sm:$0xcc] %v1835
      %1849 = vst [vmem:[#allocation2 + $0x128] sm:$0xcc] %v1837
      %1850 = vst [vmem:[#allocation2 + $0x130] sm:$0xcc] %v1839
      %1851 = vst [vmem:[#allocation2 + $0x138] sm:$0xcc] %v1841
      %v1852 = vld [vmem:[%s246 + $0x4] sm:$0xff]
      %v1853 = vld [vmem:[%s246 + $0xc] sm:$0xff]
      %v1854 = vld [vmem:[%s246 + $0x14] sm:$0xff]
      %v1855 = vld [vmem:[%s246 + $0x1c] sm:$0xff]
      %v1856 = vld [vmem:[%s246 + $0x24] sm:$0xff]
      %v1857 = vld [vmem:[%s246 + $0x2c] sm:$0xf]
      %v1863 = vcombine.high %v1852, %v1852
      %v1864 = vcombine.high %v1853, %v1853
      %v1865 = vcombine.high %v1854, %v1854
      %v1866 = vcombine.high %v1855, %v1855
      %v1867 = vcombine.high %v1856, %v1856
      %v1873 = vpack.c.bf16 %v1852, %v1852
      %v1874 = vpack.c.bf16 %v1863, %v1863
      %v1875 = vpack.c.bf16 %v1853, %v1853
      %v1876 = vpack.c.bf16 %v1864, %v1864
      %v1877 = vpack.c.bf16 %v1854, %v1854
      %v1878 = vpack.c.bf16 %v1865, %v1865
      %v1879 = vpack.c.bf16 %v1855, %v1855
      %v1880 = vpack.c.bf16 %v1866, %v1866
      %v1881 = vpack.c.bf16 %v1856, %v1856
      %v1882 = vpack.c.bf16 %v1867, %v1867
      %v1883 = vpack.c.bf16 %v1857, %v1857
      %v1895 = vunpack.c.l.b16 %v1873
      %v1896 = vunpack.c.l.b16 %v1874
      %v1897 = vunpack.c.l.b16 %v1875
      %v1898 = vunpack.c.l.b16 %v1876
      %v1899 = vunpack.c.l.b16 %v1877
      %v1900 = vunpack.c.l.b16 %v1878
      %v1901 = vunpack.c.l.b16 %v1879
      %v1902 = vunpack.c.l.b16 %v1880
      %v1903 = vunpack.c.l.b16 %v1881
      %v1904 = vunpack.c.l.b16 %v1882
      %v1905 = vunpack.c.l.b16 %v1883
      %v1906 = vpack.c.b16 %v1896, %v1895
      %v1907 = vpack.c.b16 %v1898, %v1897
      %v1908 = vpack.c.b16 %v1900, %v1899
      %v1909 = vpack.c.b16 %v1902, %v1901
      %v1910 = vpack.c.b16 %v1904, %v1903
      %v1911 = vpack.c.b16 %v1905, %v1905
      %1912 = vrot.lane.b32.xlu0 %v1906, 75
      %v1913 = vpop.permute.xlu0 %1912
      %1914 = vrot.lane.b32.xlu0 %v1907, 75
      %v1915 = vpop.permute.xlu0 %1914
      %1916 = vrot.lane.b32.xlu0 %v1908, 75
      %v1917 = vpop.permute.xlu0 %1916
      %1918 = vrot.lane.b32.xlu0 %v1909, 75
      %v1919 = vpop.permute.xlu0 %1918
      %1920 = vrot.lane.b32.xlu0 %v1910, 75
      %v1921 = vpop.permute.xlu0 %1920
      %1922 = vrot.lane.b32.xlu0 %v1911, 75
      %v1923 = vpop.permute.xlu0 %1922
      %v1924 = vrot.slane %v1913, 4
      %v1925 = vrot.slane %v1915, 4
      %v1926 = vrot.slane %v1917, 4
      %v1927 = vrot.slane %v1919, 4
      %v1928 = vrot.slane %v1921, 4
      %v1929 = vrot.slane %v1923, 4
      %v1930 = vsel %vm402, %v1924, %v1925
      %vm1931 = vcmask 613376
      %v1932 = vsel %vm1931, %v1913, %v1930
      %v1933 = vsel %vm402, %v1925, %v1926
      %v1934 = vsel %vm1931, %v1915, %v1933
      %v1935 = vsel %vm402, %v1926, %v1927
      %v1936 = vsel %vm1931, %v1917, %v1935
      %v1937 = vsel %vm402, %v1927, %v1928
      %v1938 = vsel %vm1931, %v1919, %v1937
      %v1939 = vsel %vm402, %v1928, %v1929
      %v1940 = vsel %vm1931, %v1921, %v1939
      %1946 = vst [vmem:[#allocation2 + $0x140] sm:$0x33] %v1932
      %1947 = vst [vmem:[#allocation2 + $0x148] sm:$0x33] %v1934
      %1948 = vst [vmem:[#allocation2 + $0x150] sm:$0x33] %v1936
      %1949 = vst [vmem:[#allocation2 + $0x158] sm:$0x33] %v1938
      %1950 = vst [vmem:[#allocation2 + $0x160] sm:$0x33] %v1940
      %v1951 = vld [vmem:[%s246 + $0x4] sm:$0xff]
      %v1952 = vld [vmem:[%s246 + $0xc] sm:$0xff]
      %v1953 = vld [vmem:[%s246 + $0x14] sm:$0xff]
      %v1954 = vld [vmem:[%s246 + $0x1c] sm:$0xff]
      %v1955 = vld [vmem:[%s246 + $0x24] sm:$0xff]
      %v1956 = vld [vmem:[%s246 + $0x2c] sm:$0xf]
      %v1962 = vcombine.high %v1951, %v1951
      %v1963 = vcombine.high %v1952, %v1952
      %v1964 = vcombine.high %v1953, %v1953
      %v1965 = vcombine.high %v1954, %v1954
      %v1966 = vcombine.high %v1955, %v1955
      %v1972 = vpack.c.bf16 %v1951, %v1951
      %v1973 = vpack.c.bf16 %v1962, %v1962
      %v1974 = vpack.c.bf16 %v1952, %v1952
      %v1975 = vpack.c.bf16 %v1963, %v1963
      %v1976 = vpack.c.bf16 %v1953, %v1953
      %v1977 = vpack.c.bf16 %v1964, %v1964
      %v1978 = vpack.c.bf16 %v1954, %v1954
      %v1979 = vpack.c.bf16 %v1965, %v1965
      %v1980 = vpack.c.bf16 %v1955, %v1955
      %v1981 = vpack.c.bf16 %v1966, %v1966
      %v1982 = vpack.c.bf16 %v1956, %v1956
      %v1994 = vunpack.c.l.b16 %v1972
      %v1995 = vunpack.c.l.b16 %v1973
      %v1996 = vunpack.c.l.b16 %v1974
      %v1997 = vunpack.c.l.b16 %v1975
      %v1998 = vunpack.c.l.b16 %v1976
      %v1999 = vunpack.c.l.b16 %v1977
      %v2000 = vunpack.c.l.b16 %v1978
      %v2001 = vunpack.c.l.b16 %v1979
      %v2002 = vunpack.c.l.b16 %v1980
      %v2003 = vunpack.c.l.b16 %v1981
      %v2004 = vunpack.c.l.b16 %v1982
      %v2005 = vpack.c.b16 %v1995, %v1994
      %v2006 = vpack.c.b16 %v1997, %v1996
      %v2007 = vpack.c.b16 %v1999, %v1998
      %v2008 = vpack.c.b16 %v2001, %v2000
      %v2009 = vpack.c.b16 %v2003, %v2002
      %v2010 = vpack.c.b16 %v2004, %v2004
      %v2011 = vrot.slane %v2005, 6
      %v2012 = vrot.slane %v2006, 6
      %v2013 = vrot.slane %v2007, 6
      %v2014 = vrot.slane %v2008, 6
      %v2015 = vrot.slane %v2009, 6
      %v2016 = vrot.slane %v2010, 6
      %2017 = vrot.lane.b32.xlu0 %v2011, 74
      %v2018 = vpop.permute.xlu0 %2017
      %2019 = vrot.lane.b32.xlu0 %v2012, 74
      %v2020 = vpop.permute.xlu0 %2019
      %2021 = vrot.lane.b32.xlu0 %v2013, 74
      %v2022 = vpop.permute.xlu0 %2021
      %2023 = vrot.lane.b32.xlu0 %v2014, 74
      %v2024 = vpop.permute.xlu0 %2023
      %2025 = vrot.lane.b32.xlu0 %v2015, 74
      %v2026 = vpop.permute.xlu0 %2025
      %2027 = vrot.lane.b32.xlu0 %v2016, 74
      %v2028 = vpop.permute.xlu0 %2027
      %v2029 = vrot.slane %v2018, 4
      %v2030 = vrot.slane %v2020, 4
      %v2031 = vrot.slane %v2022, 4
      %v2032 = vrot.slane %v2024, 4
      %v2033 = vrot.slane %v2026, 4
      %v2034 = vrot.slane %v2028, 4
      %v2035 = vsel %vm402, %v2029, %v2030
      %vm2036 = vcmask 605184
      %v2037 = vsel %vm2036, %v2018, %v2035
      %v2038 = vsel %vm402, %v2030, %v2031
      %v2039 = vsel %vm2036, %v2020, %v2038
      %v2040 = vsel %vm402, %v2031, %v2032
      %v2041 = vsel %vm2036, %v2022, %v2040
      %v2042 = vsel %vm402, %v2032, %v2033
      %v2043 = vsel %vm2036, %v2024, %v2042
      %v2044 = vsel %vm402, %v2033, %v2034
      %v2045 = vsel %vm2036, %v2026, %v2044
      %2051 = vst [vmem:[#allocation2 + $0x140] sm:$0xcc] %v2037
      %2052 = vst [vmem:[#allocation2 + $0x148] sm:$0xcc] %v2039
      %2053 = vst [vmem:[#allocation2 + $0x150] sm:$0xcc] %v2041
      %2054 = vst [vmem:[#allocation2 + $0x158] sm:$0xcc] %v2043
      %2055 = vst [vmem:[#allocation2 + $0x160] sm:$0xcc] %v2045
      %v2056 = vld [vmem:[%s246 + $0x8] sm:$0xff]
      %v2057 = vld [vmem:[%s246 + $0x10] sm:$0xff]
      %v2058 = vld [vmem:[%s246 + $0x18] sm:$0xff]
      %v2059 = vld [vmem:[%s246 + $0x20] sm:$0xff]
      %v2060 = vld [vmem:[%s246 + $0x28] sm:$0xff]
      %v2061 = vld [vmem:[%s246 + $0x30] sm:$0xf]
      %v2067 = vcombine.high %v2056, %v2056
      %v2068 = vcombine.high %v2057, %v2057
      %v2069 = vcombine.high %v2058, %v2058
      %v2070 = vcombine.high %v2059, %v2059
      %v2071 = vcombine.high %v2060, %v2060
      %v2077 = vpack.c.bf16 %v2056, %v2056
      %v2078 = vpack.c.bf16 %v2067, %v2067
      %v2079 = vpack.c.bf16 %v2057, %v2057
      %v2080 = vpack.c.bf16 %v2068, %v2068
      %v2081 = vpack.c.bf16 %v2058, %v2058
      %v2082 = vpack.c.bf16 %v2069, %v2069
      %v2083 = vpack.c.bf16 %v2059, %v2059
      %v2084 = vpack.c.bf16 %v2070, %v2070
      %v2085 = vpack.c.bf16 %v2060, %v2060
      %v2086 = vpack.c.bf16 %v2071, %v2071
      %v2087 = vpack.c.bf16 %v2061, %v2061
      %v2099 = vunpack.c.l.b16 %v2077
      %v2100 = vunpack.c.l.b16 %v2078
      %v2101 = vunpack.c.l.b16 %v2079
      %v2102 = vunpack.c.l.b16 %v2080
      %v2103 = vunpack.c.l.b16 %v2081
      %v2104 = vunpack.c.l.b16 %v2082
      %v2105 = vunpack.c.l.b16 %v2083
      %v2106 = vunpack.c.l.b16 %v2084
      %v2107 = vunpack.c.l.b16 %v2085
      %v2108 = vunpack.c.l.b16 %v2086
      %v2109 = vunpack.c.l.b16 %v2087
      %v2110 = vpack.c.b16 %v2100, %v2099
      %v2111 = vpack.c.b16 %v2102, %v2101
      %v2112 = vpack.c.b16 %v2104, %v2103
      %v2113 = vpack.c.b16 %v2106, %v2105
      %v2114 = vpack.c.b16 %v2108, %v2107
      %v2115 = vpack.c.b16 %v2109, %v2109
      %2116 = vrot.lane.b32.xlu0 %v2110, 64
      %v2117 = vpop.permute.xlu0 %2116
      %2118 = vrot.lane.b32.xlu0 %v2111, 64
      %v2119 = vpop.permute.xlu0 %2118
      %2120 = vrot.lane.b32.xlu0 %v2112, 64
      %v2121 = vpop.permute.xlu0 %2120
      %2122 = vrot.lane.b32.xlu0 %v2113, 64
      %v2123 = vpop.permute.xlu0 %2122
      %2124 = vrot.lane.b32.xlu0 %v2114, 64
      %v2125 = vpop.permute.xlu0 %2124
      %2126 = vrot.lane.b32.xlu0 %v2115, 64
      %v2127 = vpop.permute.xlu0 %2126
      %v2128 = vrot.slane %v2117, 4
      %v2129 = vrot.slane %v2119, 4
      %v2130 = vrot.slane %v2121, 4
      %v2131 = vrot.slane %v2123, 4
      %v2132 = vrot.slane %v2125, 4
      %v2133 = vrot.slane %v2127, 4
      %v2134 = vsel %vm402, %v2128, %v2129
      %vm2135 = vcmask 523264
      %v2136 = vsel %vm2135, %v2117, %v2134
      %v2137 = vsel %vm402, %v2129, %v2130
      %v2138 = vsel %vm2135, %v2119, %v2137
      %v2139 = vsel %vm402, %v2130, %v2131
      %v2140 = vsel %vm2135, %v2121, %v2139
      %v2141 = vsel %vm402, %v2131, %v2132
      %v2142 = vsel %vm2135, %v2123, %v2141
      %v2143 = vsel %vm402, %v2132, %v2133
      %v2144 = vsel %vm2135, %v2125, %v2143
      %2150 = vst [vmem:[#allocation2 + $0x168] sm:$0x33] %v2136
      %2151 = vst [vmem:[#allocation2 + $0x170] sm:$0x33] %v2138
      %2152 = vst [vmem:[#allocation2 + $0x178] sm:$0x33] %v2140
      %2153 = vst [vmem:[#allocation2 + $0x180] sm:$0x33] %v2142
      %2154 = vst [vmem:[#allocation2 + $0x188] sm:$0x33] %v2144
      %v2155 = vld [vmem:[%s246 + $0x8] sm:$0xff]
      %v2156 = vld [vmem:[%s246 + $0x10] sm:$0xff]
      %v2157 = vld [vmem:[%s246 + $0x18] sm:$0xff]
      %v2158 = vld [vmem:[%s246 + $0x20] sm:$0xff]
      %v2159 = vld [vmem:[%s246 + $0x28] sm:$0xff]
      %v2160 = vld [vmem:[%s246 + $0x30] sm:$0xf]
      %v2166 = vcombine.high %v2155, %v2155
      %v2167 = vcombine.high %v2156, %v2156
      %v2168 = vcombine.high %v2157, %v2157
      %v2169 = vcombine.high %v2158, %v2158
      %v2170 = vcombine.high %v2159, %v2159
      %v2176 = vpack.c.bf16 %v2155, %v2155
      %v2177 = vpack.c.bf16 %v2166, %v2166
      %v2178 = vpack.c.bf16 %v2156, %v2156
      %v2179 = vpack.c.bf16 %v2167, %v2167
      %v2180 = vpack.c.bf16 %v2157, %v2157
      %v2181 = vpack.c.bf16 %v2168, %v2168
      %v2182 = vpack.c.bf16 %v2158, %v2158
      %v2183 = vpack.c.bf16 %v2169, %v2169
      %v2184 = vpack.c.bf16 %v2159, %v2159
      %v2185 = vpack.c.bf16 %v2170, %v2170
      %v2186 = vpack.c.bf16 %v2160, %v2160
      %v2198 = vunpack.c.l.b16 %v2176
      %v2199 = vunpack.c.l.b16 %v2177
      %v2200 = vunpack.c.l.b16 %v2178
      %v2201 = vunpack.c.l.b16 %v2179
      %v2202 = vunpack.c.l.b16 %v2180
      %v2203 = vunpack.c.l.b16 %v2181
      %v2204 = vunpack.c.l.b16 %v2182
      %v2205 = vunpack.c.l.b16 %v2183
      %v2206 = vunpack.c.l.b16 %v2184
      %v2207 = vunpack.c.l.b16 %v2185
      %v2208 = vunpack.c.l.b16 %v2186
      %v2209 = vpack.c.b16 %v2199, %v2198
      %v2210 = vpack.c.b16 %v2201, %v2200
      %v2211 = vpack.c.b16 %v2203, %v2202
      %v2212 = vpack.c.b16 %v2205, %v2204
      %v2213 = vpack.c.b16 %v2207, %v2206
      %v2214 = vpack.c.b16 %v2208, %v2208
      %v2215 = vrot.slane %v2209, 6
      %v2216 = vrot.slane %v2210, 6
      %v2217 = vrot.slane %v2211, 6
      %v2218 = vrot.slane %v2212, 6
      %v2219 = vrot.slane %v2213, 6
      %v2220 = vrot.slane %v2214, 6
      %2221 = vrot.lane.b32.xlu0 %v2215, 63
      %v2222 = vpop.permute.xlu0 %2221
      %2223 = vrot.lane.b32.xlu0 %v2216, 63
      %v2224 = vpop.permute.xlu0 %2223
      %2225 = vrot.lane.b32.xlu0 %v2217, 63
      %v2226 = vpop.permute.xlu0 %2225
      %2227 = vrot.lane.b32.xlu0 %v2218, 63
      %v2228 = vpop.permute.xlu0 %2227
      %2229 = vrot.lane.b32.xlu0 %v2219, 63
      %v2230 = vpop.permute.xlu0 %2229
      %2231 = vrot.lane.b32.xlu0 %v2220, 63
      %v2232 = vpop.permute.xlu0 %2231
      %v2233 = vrot.slane %v2222, 4
      %v2234 = vrot.slane %v2224, 4
      %v2235 = vrot.slane %v2226, 4
      %v2236 = vrot.slane %v2228, 4
      %v2237 = vrot.slane %v2230, 4
      %v2238 = vrot.slane %v2232, 4
      %v2239 = vsel %vm402, %v2233, %v2234
      %vm2240 = vcmask 515072
      %v2241 = vsel %vm2240, %v2222, %v2239
      %v2242 = vsel %vm402, %v2234, %v2235
      %v2243 = vsel %vm2240, %v2224, %v2242
      %v2244 = vsel %vm402, %v2235, %v2236
      %v2245 = vsel %vm2240, %v2226, %v2244
      %v2246 = vsel %vm402, %v2236, %v2237
      %v2247 = vsel %vm2240, %v2228, %v2246
      %v2248 = vsel %vm402, %v2237, %v2238
      %v2249 = vsel %vm2240, %v2230, %v2248
      %2255 = vst [vmem:[#allocation2 + $0x168] sm:$0xcc] %v2241
      %2256 = vst [vmem:[#allocation2 + $0x170] sm:$0xcc] %v2243
      %2257 = vst [vmem:[#allocation2 + $0x178] sm:$0xcc] %v2245
      %2258 = vst [vmem:[#allocation2 + $0x180] sm:$0xcc] %v2247
      %2259 = vst [vmem:[#allocation2 + $0x188] sm:$0xcc] %v2249
      %v2260 = vld [vmem:[%s246 + $0x8] sm:$0xff]
      %v2261 = vld [vmem:[%s246 + $0x10] sm:$0xff]
      %v2262 = vld [vmem:[%s246 + $0x18] sm:$0xff]
      %v2263 = vld [vmem:[%s246 + $0x20] sm:$0xff]
      %v2264 = vld [vmem:[%s246 + $0x28] sm:$0xff]
      %v2265 = vld [vmem:[%s246 + $0x30] sm:$0xf]
      %v2271 = vcombine.high %v2260, %v2260
      %v2272 = vcombine.high %v2261, %v2261
      %v2273 = vcombine.high %v2262, %v2262
      %v2274 = vcombine.high %v2263, %v2263
      %v2275 = vcombine.high %v2264, %v2264
      %v2281 = vpack.c.bf16 %v2260, %v2260
      %v2282 = vpack.c.bf16 %v2271, %v2271
      %v2283 = vpack.c.bf16 %v2261, %v2261
      %v2284 = vpack.c.bf16 %v2272, %v2272
      %v2285 = vpack.c.bf16 %v2262, %v2262
      %v2286 = vpack.c.bf16 %v2273, %v2273
      %v2287 = vpack.c.bf16 %v2263, %v2263
      %v2288 = vpack.c.bf16 %v2274, %v2274
      %v2289 = vpack.c.bf16 %v2264, %v2264
      %v2290 = vpack.c.bf16 %v2275, %v2275
      %v2291 = vpack.c.bf16 %v2265, %v2265
      %v2303 = vunpack.c.l.b16 %v2281
      %v2304 = vunpack.c.l.b16 %v2282
      %v2305 = vunpack.c.l.b16 %v2283
      %v2306 = vunpack.c.l.b16 %v2284
      %v2307 = vunpack.c.l.b16 %v2285
      %v2308 = vunpack.c.l.b16 %v2286
      %v2309 = vunpack.c.l.b16 %v2287
      %v2310 = vunpack.c.l.b16 %v2288
      %v2311 = vunpack.c.l.b16 %v2289
      %v2312 = vunpack.c.l.b16 %v2290
      %v2313 = vunpack.c.l.b16 %v2291
      %v2314 = vpack.c.b16 %v2304, %v2303
      %v2315 = vpack.c.b16 %v2306, %v2305
      %v2316 = vpack.c.b16 %v2308, %v2307
      %v2317 = vpack.c.b16 %v2310, %v2309
      %v2318 = vpack.c.b16 %v2312, %v2311
      %v2319 = vpack.c.b16 %v2313, %v2313
      %2320 = vrot.lane.b32.xlu0 %v2314, 62
      %v2321 = vpop.permute.xlu0 %2320
      %2322 = vrot.lane.b32.xlu0 %v2315, 62
      %v2323 = vpop.permute.xlu0 %2322
      %2324 = vrot.lane.b32.xlu0 %v2316, 62
      %v2325 = vpop.permute.xlu0 %2324
      %2326 = vrot.lane.b32.xlu0 %v2317, 62
      %v2327 = vpop.permute.xlu0 %2326
      %2328 = vrot.lane.b32.xlu0 %v2318, 62
      %v2329 = vpop.permute.xlu0 %2328
      %2330 = vrot.lane.b32.xlu0 %v2319, 62
      %v2331 = vpop.permute.xlu0 %2330
      %v2332 = vrot.slane %v2321, 4
      %v2333 = vrot.slane %v2323, 4
      %v2334 = vrot.slane %v2325, 4
      %v2335 = vrot.slane %v2327, 4
      %v2336 = vrot.slane %v2329, 4
      %v2337 = vrot.slane %v2331, 4
      %v2338 = vsel %vm402, %v2332, %v2333
      %vm2339 = vcmask 506880
      %v2340 = vsel %vm2339, %v2321, %v2338
      %v2341 = vsel %vm402, %v2333, %v2334
      %v2342 = vsel %vm2339, %v2323, %v2341
      %v2343 = vsel %vm402, %v2334, %v2335
      %v2344 = vsel %vm2339, %v2325, %v2343
      %v2345 = vsel %vm402, %v2335, %v2336
      %v2346 = vsel %vm2339, %v2327, %v2345
      %v2347 = vsel %vm402, %v2336, %v2337
      %v2348 = vsel %vm2339, %v2329, %v2347
      %2354 = vst [vmem:[#allocation2 + $0x190] sm:$0x33] %v2340
      %2355 = vst [vmem:[#allocation2 + $0x198] sm:$0x33] %v2342
      %2356 = vst [vmem:[#allocation2 + $0x1a0] sm:$0x33] %v2344
      %2357 = vst [vmem:[#allocation2 + $0x1a8] sm:$0x33] %v2346
      %2358 = vst [vmem:[#allocation2 + $0x1b0] sm:$0x33] %v2348
      %v2359 = vld [vmem:[%s246 + $0x8] sm:$0xff]
      %v2360 = vld [vmem:[%s246 + $0x10] sm:$0xff]
      %v2361 = vld [vmem:[%s246 + $0x18] sm:$0xff]
      %v2362 = vld [vmem:[%s246 + $0x20] sm:$0xff]
      %v2363 = vld [vmem:[%s246 + $0x28] sm:$0xff]
      %v2364 = vld [vmem:[%s246 + $0x30] sm:$0xf]
      %v2370 = vcombine.high %v2359, %v2359
      %v2371 = vcombine.high %v2360, %v2360
      %v2372 = vcombine.high %v2361, %v2361
      %v2373 = vcombine.high %v2362, %v2362
      %v2374 = vcombine.high %v2363, %v2363
      %v2380 = vpack.c.bf16 %v2359, %v2359
      %v2381 = vpack.c.bf16 %v2370, %v2370
      %v2382 = vpack.c.bf16 %v2360, %v2360
      %v2383 = vpack.c.bf16 %v2371, %v2371
      %v2384 = vpack.c.bf16 %v2361, %v2361
      %v2385 = vpack.c.bf16 %v2372, %v2372
      %v2386 = vpack.c.bf16 %v2362, %v2362
      %v2387 = vpack.c.bf16 %v2373, %v2373
      %v2388 = vpack.c.bf16 %v2363, %v2363
      %v2389 = vpack.c.bf16 %v2374, %v2374
      %v2390 = vpack.c.bf16 %v2364, %v2364
      %v2402 = vunpack.c.l.b16 %v2380
      %v2403 = vunpack.c.l.b16 %v2381
      %v2404 = vunpack.c.l.b16 %v2382
      %v2405 = vunpack.c.l.b16 %v2383
      %v2406 = vunpack.c.l.b16 %v2384
      %v2407 = vunpack.c.l.b16 %v2385
      %v2408 = vunpack.c.l.b16 %v2386
      %v2409 = vunpack.c.l.b16 %v2387
      %v2410 = vunpack.c.l.b16 %v2388
      %v2411 = vunpack.c.l.b16 %v2389
      %v2412 = vunpack.c.l.b16 %v2390
      %v2413 = vpack.c.b16 %v2403, %v2402
      %v2414 = vpack.c.b16 %v2405, %v2404
      %v2415 = vpack.c.b16 %v2407, %v2406
      %v2416 = vpack.c.b16 %v2409, %v2408
      %v2417 = vpack.c.b16 %v2411, %v2410
      %v2418 = vpack.c.b16 %v2412, %v2412
      %v2419 = vrot.slane %v2413, 6
      %v2420 = vrot.slane %v2414, 6
      %v2421 = vrot.slane %v2415, 6
      %v2422 = vrot.slane %v2416, 6
      %v2423 = vrot.slane %v2417, 6
      %v2424 = vrot.slane %v2418, 6
      %2425 = vrot.lane.b32.xlu0 %v2419, 54
      %v2426 = vpop.permute.xlu0 %2425
      %2427 = vrot.lane.b32.xlu0 %v2420, 54
      %v2428 = vpop.permute.xlu0 %2427
      %2429 = vrot.lane.b32.xlu0 %v2421, 54
      %v2430 = vpop.permute.xlu0 %2429
      %2431 = vrot.lane.b32.xlu0 %v2422, 54
      %v2432 = vpop.permute.xlu0 %2431
      %2433 = vrot.lane.b32.xlu0 %v2423, 54
      %v2434 = vpop.permute.xlu0 %2433
      %2435 = vrot.lane.b32.xlu0 %v2424, 54
      %v2436 = vpop.permute.xlu0 %2435
      %v2437 = vrot.slane %v2426, 4
      %v2438 = vrot.slane %v2428, 4
      %v2439 = vrot.slane %v2430, 4
      %v2440 = vrot.slane %v2432, 4
      %v2441 = vrot.slane %v2434, 4
      %v2442 = vrot.slane %v2436, 4
      %v2443 = vsel %vm402, %v2437, %v2438
      %vm2444 = vcmask 441344
      %v2445 = vsel %vm2444, %v2426, %v2443
      %v2446 = vsel %vm402, %v2438, %v2439
      %v2447 = vsel %vm2444, %v2428, %v2446
      %v2448 = vsel %vm402, %v2439, %v2440
      %v2449 = vsel %vm2444, %v2430, %v2448
      %v2450 = vsel %vm402, %v2440, %v2441
      %v2451 = vsel %vm2444, %v2432, %v2450
      %v2452 = vsel %vm402, %v2441, %v2442
      %v2453 = vsel %vm2444, %v2434, %v2452
      %2459 = vst [vmem:[#allocation2 + $0x190] sm:$0xcc] %v2445
      %2460 = vst [vmem:[#allocation2 + $0x198] sm:$0xcc] %v2447
      %2461 = vst [vmem:[#allocation2 + $0x1a0] sm:$0xcc] %v2449
      %2462 = vst [vmem:[#allocation2 + $0x1a8] sm:$0xcc] %v2451
      %2463 = vst [vmem:[#allocation2 + $0x1b0] sm:$0xcc] %v2453
      %v2464 = vld [vmem:[%s246 + $0x8] sm:$0xff]
      %v2465 = vld [vmem:[%s246 + $0x10] sm:$0xff]
      %v2466 = vld [vmem:[%s246 + $0x18] sm:$0xff]
      %v2467 = vld [vmem:[%s246 + $0x20] sm:$0xff]
      %v2468 = vld [vmem:[%s246 + $0x28] sm:$0xff]
      %v2469 = vld [vmem:[%s246 + $0x30] sm:$0xf]
      %v2475 = vcombine.high %v2464, %v2464
      %v2476 = vcombine.high %v2465, %v2465
      %v2477 = vcombine.high %v2466, %v2466
      %v2478 = vcombine.high %v2467, %v2467
      %v2479 = vcombine.high %v2468, %v2468
      %v2485 = vpack.c.bf16 %v2464, %v2464
      %v2486 = vpack.c.bf16 %v2475, %v2475
      %v2487 = vpack.c.bf16 %v2465, %v2465
      %v2488 = vpack.c.bf16 %v2476, %v2476
      %v2489 = vpack.c.bf16 %v2466, %v2466
      %v2490 = vpack.c.bf16 %v2477, %v2477
      %v2491 = vpack.c.bf16 %v2467, %v2467
      %v2492 = vpack.c.bf16 %v2478, %v2478
      %v2493 = vpack.c.bf16 %v2468, %v2468
      %v2494 = vpack.c.bf16 %v2479, %v2479
      %v2495 = vpack.c.bf16 %v2469, %v2469
      %v2507 = vunpack.c.l.b16 %v2485
      %v2508 = vunpack.c.l.b16 %v2486
      %v2509 = vunpack.c.l.b16 %v2487
      %v2510 = vunpack.c.l.b16 %v2488
      %v2511 = vunpack.c.l.b16 %v2489
      %v2512 = vunpack.c.l.b16 %v2490
      %v2513 = vunpack.c.l.b16 %v2491
      %v2514 = vunpack.c.l.b16 %v2492
      %v2515 = vunpack.c.l.b16 %v2493
      %v2516 = vunpack.c.l.b16 %v2494
      %v2517 = vunpack.c.l.b16 %v2495
      %v2518 = vpack.c.b16 %v2508, %v2507
      %v2519 = vpack.c.b16 %v2510, %v2509
      %v2520 = vpack.c.b16 %v2512, %v2511
      %v2521 = vpack.c.b16 %v2514, %v2513
      %v2522 = vpack.c.b16 %v2516, %v2515
      %v2523 = vpack.c.b16 %v2517, %v2517
      %2524 = vrot.lane.b32.xlu0 %v2518, 53
      %v2525 = vpop.permute.xlu0 %2524
      %2526 = vrot.lane.b32.xlu0 %v2519, 53
      %v2527 = vpop.permute.xlu0 %2526
      %2528 = vrot.lane.b32.xlu0 %v2520, 53
      %v2529 = vpop.permute.xlu0 %2528
      %2530 = vrot.lane.b32.xlu0 %v2521, 53
      %v2531 = vpop.permute.xlu0 %2530
      %2532 = vrot.lane.b32.xlu0 %v2522, 53
      %v2533 = vpop.permute.xlu0 %2532
      %2534 = vrot.lane.b32.xlu0 %v2523, 53
      %v2535 = vpop.permute.xlu0 %2534
      %v2536 = vrot.slane %v2525, 4
      %v2537 = vrot.slane %v2527, 4
      %v2538 = vrot.slane %v2529, 4
      %v2539 = vrot.slane %v2531, 4
      %v2540 = vrot.slane %v2533, 4
      %v2541 = vrot.slane %v2535, 4
      %v2542 = vsel %vm402, %v2536, %v2537
      %vm2543 = vcmask 433152
      %v2544 = vsel %vm2543, %v2525, %v2542
      %v2545 = vsel %vm402, %v2537, %v2538
      %v2546 = vsel %vm2543, %v2527, %v2545
      %v2547 = vsel %vm402, %v2538, %v2539
      %v2548 = vsel %vm2543, %v2529, %v2547
      %v2549 = vsel %vm402, %v2539, %v2540
      %v2550 = vsel %vm2543, %v2531, %v2549
      %v2551 = vsel %vm402, %v2540, %v2541
      %v2552 = vsel %vm2543, %v2533, %v2551
      %2558 = vst [vmem:[#allocation2 + $0x1b8] sm:$0x33] %v2544
      %2559 = vst [vmem:[#allocation2 + $0x1c0] sm:$0x33] %v2546
      %2560 = vst [vmem:[#allocation2 + $0x1c8] sm:$0x33] %v2548
      %2561 = vst [vmem:[#allocation2 + $0x1d0] sm:$0x33] %v2550
      %2562 = vst [vmem:[#allocation2 + $0x1d8] sm:$0x33] %v2552
      %v2563 = vld [vmem:[%s246 + $0x8] sm:$0xff]
      %v2564 = vld [vmem:[%s246 + $0x10] sm:$0xff]
      %v2565 = vld [vmem:[%s246 + $0x18] sm:$0xff]
      %v2566 = vld [vmem:[%s246 + $0x20] sm:$0xff]
      %v2567 = vld [vmem:[%s246 + $0x28] sm:$0xff]
      %v2568 = vld [vmem:[%s246 + $0x30] sm:$0xf]
      %v2574 = vcombine.high %v2563, %v2563
      %v2575 = vcombine.high %v2564, %v2564
      %v2576 = vcombine.high %v2565, %v2565
      %v2577 = vcombine.high %v2566, %v2566
      %v2578 = vcombine.high %v2567, %v2567
      %v2584 = vpack.c.bf16 %v2563, %v2563
      %v2585 = vpack.c.bf16 %v2574, %v2574
      %v2586 = vpack.c.bf16 %v2564, %v2564
      %v2587 = vpack.c.bf16 %v2575, %v2575
      %v2588 = vpack.c.bf16 %v2565, %v2565
      %v2589 = vpack.c.bf16 %v2576, %v2576
      %v2590 = vpack.c.bf16 %v2566, %v2566
      %v2591 = vpack.c.bf16 %v2577, %v2577
      %v2592 = vpack.c.bf16 %v2567, %v2567
      %v2593 = vpack.c.bf16 %v2578, %v2578
      %v2594 = vpack.c.bf16 %v2568, %v2568
      %v2606 = vunpack.c.l.b16 %v2584
      %v2607 = vunpack.c.l.b16 %v2585
      %v2608 = vunpack.c.l.b16 %v2586
      %v2609 = vunpack.c.l.b16 %v2587
      %v2610 = vunpack.c.l.b16 %v2588
      %v2611 = vunpack.c.l.b16 %v2589
      %v2612 = vunpack.c.l.b16 %v2590
      %v2613 = vunpack.c.l.b16 %v2591
      %v2614 = vunpack.c.l.b16 %v2592
      %v2615 = vunpack.c.l.b16 %v2593
      %v2616 = vunpack.c.l.b16 %v2594
      %v2617 = vpack.c.b16 %v2607, %v2606
      %v2618 = vpack.c.b16 %v2609, %v2608
      %v2619 = vpack.c.b16 %v2611, %v2610
      %v2620 = vpack.c.b16 %v2613, %v2612
      %v2621 = vpack.c.b16 %v2615, %v2614
      %v2622 = vpack.c.b16 %v2616, %v2616
      %v2623 = vrot.slane %v2617, 6
      %v2624 = vrot.slane %v2618, 6
      %v2625 = vrot.slane %v2619, 6
      %v2626 = vrot.slane %v2620, 6
      %v2627 = vrot.slane %v2621, 6
      %v2628 = vrot.slane %v2622, 6
      %2629 = vrot.lane.b32.xlu0 %v2623, 52
      %v2630 = vpop.permute.xlu0 %2629
      %2631 = vrot.lane.b32.xlu0 %v2624, 52
      %v2632 = vpop.permute.xlu0 %2631
      %2633 = vrot.lane.b32.xlu0 %v2625, 52
      %v2634 = vpop.permute.xlu0 %2633
      %2635 = vrot.lane.b32.xlu0 %v2626, 52
      %v2636 = vpop.permute.xlu0 %2635
      %2637 = vrot.lane.b32.xlu0 %v2627, 52
      %v2638 = vpop.permute.xlu0 %2637
      %2639 = vrot.lane.b32.xlu0 %v2628, 52
      %v2640 = vpop.permute.xlu0 %2639
      %v2641 = vrot.slane %v2630, 4
      %v2642 = vrot.slane %v2632, 4
      %v2643 = vrot.slane %v2634, 4
      %v2644 = vrot.slane %v2636, 4
      %v2645 = vrot.slane %v2638, 4
      %v2646 = vrot.slane %v2640, 4
      %v2647 = vsel %vm402, %v2641, %v2642
      %vm2648 = vcmask 424960
      %v2649 = vsel %vm2648, %v2630, %v2647
      %v2650 = vsel %vm402, %v2642, %v2643
      %v2651 = vsel %vm2648, %v2632, %v2650
      %v2652 = vsel %vm402, %v2643, %v2644
      %v2653 = vsel %vm2648, %v2634, %v2652
      %v2654 = vsel %vm402, %v2644, %v2645
      %v2655 = vsel %vm2648, %v2636, %v2654
      %v2656 = vsel %vm402, %v2645, %v2646
      %v2657 = vsel %vm2648, %v2638, %v2656
      %2663 = vst [vmem:[#allocation2 + $0x1b8] sm:$0xcc] %v2649
      %2664 = vst [vmem:[#allocation2 + $0x1c0] sm:$0xcc] %v2651
      %2665 = vst [vmem:[#allocation2 + $0x1c8] sm:$0xcc] %v2653
      %2666 = vst [vmem:[#allocation2 + $0x1d0] sm:$0xcc] %v2655
      %2667 = vst [vmem:[#allocation2 + $0x1d8] sm:$0xcc] %v2657
      %v2668 = vld [vmem:[%s246 + $0x8] sm:$0xff]
      %v2669 = vld [vmem:[%s246 + $0x10] sm:$0xff]
      %v2670 = vld [vmem:[%s246 + $0x18] sm:$0xff]
      %v2671 = vld [vmem:[%s246 + $0x20] sm:$0xff]
      %v2672 = vld [vmem:[%s246 + $0x28] sm:$0xff]
      %v2673 = vld [vmem:[%s246 + $0x30] sm:$0xf]
      %v2679 = vcombine.high %v2668, %v2668
      %v2680 = vcombine.high %v2669, %v2669
      %v2681 = vcombine.high %v2670, %v2670
      %v2682 = vcombine.high %v2671, %v2671
      %v2683 = vcombine.high %v2672, %v2672
      %v2689 = vpack.c.bf16 %v2668, %v2668
      %v2690 = vpack.c.bf16 %v2679, %v2679
      %v2691 = vpack.c.bf16 %v2669, %v2669
      %v2692 = vpack.c.bf16 %v2680, %v2680
      %v2693 = vpack.c.bf16 %v2670, %v2670
      %v2694 = vpack.c.bf16 %v2681, %v2681
      %v2695 = vpack.c.bf16 %v2671, %v2671
      %v2696 = vpack.c.bf16 %v2682, %v2682
      %v2697 = vpack.c.bf16 %v2672, %v2672
      %v2698 = vpack.c.bf16 %v2683, %v2683
      %v2699 = vpack.c.bf16 %v2673, %v2673
      %v2711 = vunpack.c.l.b16 %v2689
      %v2712 = vunpack.c.l.b16 %v2690
      %v2713 = vunpack.c.l.b16 %v2691
      %v2714 = vunpack.c.l.b16 %v2692
      %v2715 = vunpack.c.l.b16 %v2693
      %v2716 = vunpack.c.l.b16 %v2694
      %v2717 = vunpack.c.l.b16 %v2695
      %v2718 = vunpack.c.l.b16 %v2696
      %v2719 = vunpack.c.l.b16 %v2697
      %v2720 = vunpack.c.l.b16 %v2698
      %v2721 = vunpack.c.l.b16 %v2699
      %v2722 = vpack.c.b16 %v2712, %v2711
      %v2723 = vpack.c.b16 %v2714, %v2713
      %v2724 = vpack.c.b16 %v2716, %v2715
      %v2725 = vpack.c.b16 %v2718, %v2717
      %v2726 = vpack.c.b16 %v2720, %v2719
      %v2727 = vpack.c.b16 %v2721, %v2721
      %2728 = vrot.lane.b32.xlu0 %v2722, 44
      %v2729 = vpop.permute.xlu0 %2728
      %2730 = vrot.lane.b32.xlu0 %v2723, 44
      %v2731 = vpop.permute.xlu0 %2730
      %2732 = vrot.lane.b32.xlu0 %v2724, 44
      %v2733 = vpop.permute.xlu0 %2732
      %2734 = vrot.lane.b32.xlu0 %v2725, 44
      %v2735 = vpop.permute.xlu0 %2734
      %2736 = vrot.lane.b32.xlu0 %v2726, 44
      %v2737 = vpop.permute.xlu0 %2736
      %2738 = vrot.lane.b32.xlu0 %v2727, 44
      %v2739 = vpop.permute.xlu0 %2738
      %v2740 = vrot.slane %v2729, 4
      %v2741 = vrot.slane %v2731, 4
      %v2742 = vrot.slane %v2733, 4
      %v2743 = vrot.slane %v2735, 4
      %v2744 = vrot.slane %v2737, 4
      %v2745 = vrot.slane %v2739, 4
      %v2746 = vsel %vm402, %v2740, %v2741
      %vm2747 = vcmask 359424
      %v2748 = vsel %vm2747, %v2729, %v2746
      %v2749 = vsel %vm402, %v2741, %v2742
      %v2750 = vsel %vm2747, %v2731, %v2749
      %v2751 = vsel %vm402, %v2742, %v2743
      %v2752 = vsel %vm2747, %v2733, %v2751
      %v2753 = vsel %vm402, %v2743, %v2744
      %v2754 = vsel %vm2747, %v2735, %v2753
      %v2755 = vsel %vm402, %v2744, %v2745
      %v2756 = vsel %vm2747, %v2737, %v2755
      %2762 = vst [vmem:[#allocation2 + $0x1e0] sm:$0x33] %v2748
      %2763 = vst [vmem:[#allocation2 + $0x1e8] sm:$0x33] %v2750
      %2764 = vst [vmem:[#allocation2 + $0x1f0] sm:$0x33] %v2752
      %2765 = vst [vmem:[#allocation2 + $0x1f8] sm:$0x33] %v2754
      %2766 = vst [vmem:[#allocation2 + $0x200] sm:$0x33] %v2756
      %v2767 = vld [vmem:[%s246 + $0x8] sm:$0xff]
      %v2768 = vld [vmem:[%s246 + $0x10] sm:$0xff]
      %v2769 = vld [vmem:[%s246 + $0x18] sm:$0xff]
      %v2770 = vld [vmem:[%s246 + $0x20] sm:$0xff]
      %v2771 = vld [vmem:[%s246 + $0x28] sm:$0xff]
      %v2772 = vld [vmem:[%s246 + $0x30] sm:$0xf]
      %v2778 = vcombine.high %v2767, %v2767
      %v2779 = vcombine.high %v2768, %v2768
      %v2780 = vcombine.high %v2769, %v2769
      %v2781 = vcombine.high %v2770, %v2770
      %v2782 = vcombine.high %v2771, %v2771
      %v2788 = vpack.c.bf16 %v2767, %v2767
      %v2789 = vpack.c.bf16 %v2778, %v2778
      %v2790 = vpack.c.bf16 %v2768, %v2768
      %v2791 = vpack.c.bf16 %v2779, %v2779
      %v2792 = vpack.c.bf16 %v2769, %v2769
      %v2793 = vpack.c.bf16 %v2780, %v2780
      %v2794 = vpack.c.bf16 %v2770, %v2770
      %v2795 = vpack.c.bf16 %v2781, %v2781
      %v2796 = vpack.c.bf16 %v2771, %v2771
      %v2797 = vpack.c.bf16 %v2782, %v2782
      %v2798 = vpack.c.bf16 %v2772, %v2772
      %v2810 = vunpack.c.l.b16 %v2788
      %v2811 = vunpack.c.l.b16 %v2789
      %v2812 = vunpack.c.l.b16 %v2790
      %v2813 = vunpack.c.l.b16 %v2791
      %v2814 = vunpack.c.l.b16 %v2792
      %v2815 = vunpack.c.l.b16 %v2793
      %v2816 = vunpack.c.l.b16 %v2794
      %v2817 = vunpack.c.l.b16 %v2795
      %v2818 = vunpack.c.l.b16 %v2796
      %v2819 = vunpack.c.l.b16 %v2797
      %v2820 = vunpack.c.l.b16 %v2798
      %v2821 = vpack.c.b16 %v2811, %v2810
      %v2822 = vpack.c.b16 %v2813, %v2812
      %v2823 = vpack.c.b16 %v2815, %v2814
      %v2824 = vpack.c.b16 %v2817, %v2816
      %v2825 = vpack.c.b16 %v2819, %v2818
      %v2826 = vpack.c.b16 %v2820, %v2820
      %v2827 = vrot.slane %v2821, 6
      %v2828 = vrot.slane %v2822, 6
      %v2829 = vrot.slane %v2823, 6
      %v2830 = vrot.slane %v2824, 6
      %v2831 = vrot.slane %v2825, 6
      %v2832 = vrot.slane %v2826, 6
      %2833 = vrot.lane.b32.xlu0 %v2827, 43
      %v2834 = vpop.permute.xlu0 %2833
      %2835 = vrot.lane.b32.xlu0 %v2828, 43
      %v2836 = vpop.permute.xlu0 %2835
      %2837 = vrot.lane.b32.xlu0 %v2829, 43
      %v2838 = vpop.permute.xlu0 %2837
      %2839 = vrot.lane.b32.xlu0 %v2830, 43
      %v2840 = vpop.permute.xlu0 %2839
      %2841 = vrot.lane.b32.xlu0 %v2831, 43
      %v2842 = vpop.permute.xlu0 %2841
      %2843 = vrot.lane.b32.xlu0 %v2832, 43
      %v2844 = vpop.permute.xlu0 %2843
      %v2845 = vrot.slane %v2834, 4
      %v2846 = vrot.slane %v2836, 4
      %v2847 = vrot.slane %v2838, 4
      %v2848 = vrot.slane %v2840, 4
      %v2849 = vrot.slane %v2842, 4
      %v2850 = vrot.slane %v2844, 4
      %v2851 = vsel %vm402, %v2845, %v2846
      %vm2852 = vcmask 351232
      %v2853 = vsel %vm2852, %v2834, %v2851
      %v2854 = vsel %vm402, %v2846, %v2847
      %v2855 = vsel %vm2852, %v2836, %v2854
      %v2856 = vsel %vm402, %v2847, %v2848
      %v2857 = vsel %vm2852, %v2838, %v2856
      %v2858 = vsel %vm402, %v2848, %v2849
      %v2859 = vsel %vm2852, %v2840, %v2858
      %v2860 = vsel %vm402, %v2849, %v2850
      %v2861 = vsel %vm2852, %v2842, %v2860
      %2867 = vst [vmem:[#allocation2 + $0x1e0] sm:$0xcc] %v2853
      %2868 = vst [vmem:[#allocation2 + $0x1e8] sm:$0xcc] %v2855
      %2869 = vst [vmem:[#allocation2 + $0x1f0] sm:$0xcc] %v2857
      %2870 = vst [vmem:[#allocation2 + $0x1f8] sm:$0xcc] %v2859
      %2871 = vst [vmem:[#allocation2 + $0x200] sm:$0xcc] %v2861
      %v2872 = vld [vmem:[%s246 + $0x8] sm:$0xff]
      %v2873 = vld [vmem:[%s246 + $0x10] sm:$0xff]
      %v2874 = vld [vmem:[%s246 + $0x18] sm:$0xff]
      %v2875 = vld [vmem:[%s246 + $0x20] sm:$0xff]
      %v2876 = vld [vmem:[%s246 + $0x28] sm:$0xff]
      %v2877 = vld [vmem:[%s246 + $0x30] sm:$0xf]
      %v2883 = vcombine.high %v2872, %v2872
      %v2884 = vcombine.high %v2873, %v2873
      %v2885 = vcombine.high %v2874, %v2874
      %v2886 = vcombine.high %v2875, %v2875
      %v2887 = vcombine.high %v2876, %v2876
      %v2893 = vpack.c.bf16 %v2872, %v2872
      %v2894 = vpack.c.bf16 %v2883, %v2883
      %v2895 = vpack.c.bf16 %v2873, %v2873
      %v2896 = vpack.c.bf16 %v2884, %v2884
      %v2897 = vpack.c.bf16 %v2874, %v2874
      %v2898 = vpack.c.bf16 %v2885, %v2885
      %v2899 = vpack.c.bf16 %v2875, %v2875
      %v2900 = vpack.c.bf16 %v2886, %v2886
      %v2901 = vpack.c.bf16 %v2876, %v2876
      %v2902 = vpack.c.bf16 %v2887, %v2887
      %v2903 = vpack.c.bf16 %v2877, %v2877
      %v2915 = vunpack.c.l.b16 %v2893
      %v2916 = vunpack.c.l.b16 %v2894
      %v2917 = vunpack.c.l.b16 %v2895
      %v2918 = vunpack.c.l.b16 %v2896
      %v2919 = vunpack.c.l.b16 %v2897
      %v2920 = vunpack.c.l.b16 %v2898
      %v2921 = vunpack.c.l.b16 %v2899
      %v2922 = vunpack.c.l.b16 %v2900
      %v2923 = vunpack.c.l.b16 %v2901
      %v2924 = vunpack.c.l.b16 %v2902
      %v2925 = vunpack.c.l.b16 %v2903
      %v2926 = vpack.c.b16 %v2916, %v2915
      %v2927 = vpack.c.b16 %v2918, %v2917
      %v2928 = vpack.c.b16 %v2920, %v2919
      %v2929 = vpack.c.b16 %v2922, %v2921
      %v2930 = vpack.c.b16 %v2924, %v2923
      %v2931 = vpack.c.b16 %v2925, %v2925
      %2932 = vrot.lane.b32.xlu0 %v2926, 42
      %v2933 = vpop.permute.xlu0 %2932
      %2934 = vrot.lane.b32.xlu0 %v2927, 42
      %v2935 = vpop.permute.xlu0 %2934
      %2936 = vrot.lane.b32.xlu0 %v2928, 42
      %v2937 = vpop.permute.xlu0 %2936
      %2938 = vrot.lane.b32.xlu0 %v2929, 42
      %v2939 = vpop.permute.xlu0 %2938
      %2940 = vrot.lane.b32.xlu0 %v2930, 42
      %v2941 = vpop.permute.xlu0 %2940
      %2942 = vrot.lane.b32.xlu0 %v2931, 42
      %v2943 = vpop.permute.xlu0 %2942
      %v2944 = vrot.slane %v2933, 4
      %v2945 = vrot.slane %v2935, 4
      %v2946 = vrot.slane %v2937, 4
      %v2947 = vrot.slane %v2939, 4
      %v2948 = vrot.slane %v2941, 4
      %v2949 = vrot.slane %v2943, 4
      %v2950 = vsel %vm402, %v2944, %v2945
      %vm2951 = vcmask 343040
      %v2952 = vsel %vm2951, %v2933, %v2950
      %v2953 = vsel %vm402, %v2945, %v2946
      %v2954 = vsel %vm2951, %v2935, %v2953
      %v2955 = vsel %vm402, %v2946, %v2947
      %v2956 = vsel %vm2951, %v2937, %v2955
      %v2957 = vsel %vm402, %v2947, %v2948
      %v2958 = vsel %vm2951, %v2939, %v2957
      %v2959 = vsel %vm402, %v2948, %v2949
      %v2960 = vsel %vm2951, %v2941, %v2959
      %2966 = vst [vmem:[#allocation2 + $0x208] sm:$0x33] %v2952
      %2967 = vst [vmem:[#allocation2 + $0x210] sm:$0x33] %v2954
      %2968 = vst [vmem:[#allocation2 + $0x218] sm:$0x33] %v2956
      %2969 = vst [vmem:[#allocation2 + $0x220] sm:$0x33] %v2958
      %2970 = vst [vmem:[#allocation2 + $0x228] sm:$0x33] %v2960
      %v2971 = vld [vmem:[%s1] sm:$0xf]
      %v2972 = vld [vmem:[#allocation2] sm:$0xff]
      %v2973 = vld [vmem:[#allocation2 + $0x8] sm:$0xff]
      %v2974 = vld [vmem:[#allocation2 + $0x10] sm:$0xff]
      %v2975 = vld [vmem:[#allocation2 + $0x18] sm:$0xff]
      %v2976 = vld [vmem:[#allocation2 + $0x20] sm:$0xff]
      %v2977 = vld [vmem:[#allocation2 + $0x28] sm:$0xff]
      %v2978 = vld [vmem:[#allocation2 + $0x30] sm:$0xff]
      %v2979 = vld [vmem:[#allocation2 + $0x38] sm:$0xff]
      %v2980 = vld [vmem:[#allocation2 + $0x40] sm:$0xff]
      %v2981 = vld [vmem:[#allocation2 + $0x48] sm:$0xff]
      %v2982 = vld [vmem:[#allocation2 + $0x50] sm:$0xff]
      %v2983 = vld [vmem:[#allocation2 + $0x58] sm:$0xff]
      %v2984 = vld [vmem:[#allocation2 + $0x60] sm:$0xff]
      %v2985 = vld [vmem:[#allocation2 + $0x68] sm:$0xff]
      %v2986 = vld [vmem:[#allocation2 + $0x70] sm:$0xff]
      %v2987 = vld [vmem:[#allocation2 + $0x78] sm:$0xff]
      %v2988 = vld [vmem:[#allocation2 + $0x80] sm:$0xff]
      %v2989 = vld [vmem:[#allocation2 + $0x88] sm:$0xff]
      %v2990 = vld [vmem:[#allocation2 + $0x90] sm:$0xff]
      %v2991 = vld [vmem:[#allocation2 + $0x98] sm:$0xff]
      %v2992 = vld [vmem:[#allocation2 + $0xa0] sm:$0xff]
      %v2993 = vld [vmem:[#allocation2 + $0xa8] sm:$0xff]
      %v2994 = vld [vmem:[#allocation2 + $0xb0] sm:$0xff]
      %v2995 = vld [vmem:[#allocation2 + $0xb8] sm:$0xff]
      %v2996 = vld [vmem:[#allocation2 + $0xc0] sm:$0xff]
      %v2997 = vld [vmem:[#allocation2 + $0xc8] sm:$0xff]
      %v2998 = vld [vmem:[#allocation2 + $0xd0] sm:$0xff]
      %v2999 = vld [vmem:[#allocation2 + $0xd8] sm:$0xff]
      %v3000 = vld [vmem:[#allocation2 + $0xe0] sm:$0xff]
      %v3001 = vld [vmem:[#allocation2 + $0xe8] sm:$0xff]
      %v3002 = vld [vmem:[#allocation2 + $0xf0] sm:$0xff]
      %v3003 = vld [vmem:[#allocation2 + $0xf8] sm:$0xff]
      %v3004 = vld [vmem:[#allocation2 + $0x100] sm:$0xff]
      %v3005 = vld [vmem:[#allocation2 + $0x108] sm:$0xff]
      %v3006 = vld [vmem:[#allocation2 + $0x110] sm:$0xff]
      %v3007 = vld [vmem:[#allocation2 + $0x118] sm:$0xff]
      %v3008 = vld [vmem:[#allocation2 + $0x120] sm:$0xff]
      %v3009 = vld [vmem:[#allocation2 + $0x128] sm:$0xff]
      %v3010 = vld [vmem:[#allocation2 + $0x130] sm:$0xff]
      %v3011 = vld [vmem:[#allocation2 + $0x138] sm:$0xff]
      %v3012 = vld [vmem:[#allocation2 + $0x140] sm:$0xff]
      %v3013 = vld [vmem:[#allocation2 + $0x148] sm:$0xff]
      %v3014 = vld [vmem:[#allocation2 + $0x150] sm:$0xff]
      %v3015 = vld [vmem:[#allocation2 + $0x158] sm:$0xff]
      %v3016 = vld [vmem:[#allocation2 + $0x160] sm:$0xff]
      %v3017 = vld [vmem:[#allocation2 + $0x168] sm:$0xff]
      %v3018 = vld [vmem:[#allocation2 + $0x170] sm:$0xff]
      %v3019 = vld [vmem:[#allocation2 + $0x178] sm:$0xff]
      %v3020 = vld [vmem:[#allocation2 + $0x180] sm:$0xff]
      %v3021 = vld [vmem:[#allocation2 + $0x188] sm:$0xff]
      %v3022 = vld [vmem:[#allocation2 + $0x190] sm:$0xff]
      %v3023 = vld [vmem:[#allocation2 + $0x198] sm:$0xff]
      %v3024 = vld [vmem:[#allocation2 + $0x1a0] sm:$0xff]
      %v3025 = vld [vmem:[#allocation2 + $0x1a8] sm:$0xff]
      %v3026 = vld [vmem:[#allocation2 + $0x1b0] sm:$0xff]
      %v3027 = vld [vmem:[#allocation2 + $0x1b8] sm:$0xff]
      %v3028 = vld [vmem:[#allocation2 + $0x1c0] sm:$0xff]
      %v3029 = vld [vmem:[#allocation2 + $0x1c8] sm:$0xff]
      %v3030 = vld [vmem:[#allocation2 + $0x1d0] sm:$0xff]
      %v3031 = vld [vmem:[#allocation2 + $0x1d8] sm:$0xff]
      %v3032 = vld [vmem:[#allocation2 + $0x1e0] sm:$0xff]
      %v3033 = vld [vmem:[#allocation2 + $0x1e8] sm:$0xff]
      %v3034 = vld [vmem:[#allocation2 + $0x1f0] sm:$0xff]
      %v3035 = vld [vmem:[#allocation2 + $0x1f8] sm:$0xff]
      %v3036 = vld [vmem:[#allocation2 + $0x200] sm:$0xff]
      %v3037 = vld [vmem:[#allocation2 + $0x208] sm:$0x33]
      %v3038 = vld [vmem:[#allocation2 + $0x210] sm:$0x33]
      %v3039 = vld [vmem:[#allocation2 + $0x218] sm:$0x33]
      %v3040 = vld [vmem:[#allocation2 + $0x220] sm:$0x33]
      %v3041 = vld [vmem:[#allocation2 + $0x228] sm:$0x33]
      %v3042 = vld [vmem:[%s2] sm:$0xff]
      %3044 = vset.pattern.permute.xlu0 0
      %3045 = vperm.xlu0 %3044, %v3042
      %v3046 = vpop.permute.xlu0 %3045
      %v3118 = vunpack.c.l.b16 %v2972
      %v3119 = vunpack.c.h.b16 %v2972
      %v3120 = vunpack.c.l.b16 %v2973
      %v3121 = vunpack.c.h.b16 %v2973
      %v3122 = vunpack.c.l.b16 %v2974
      %v3123 = vunpack.c.h.b16 %v2974
      %v3124 = vunpack.c.l.b16 %v2975
      %v3125 = vunpack.c.h.b16 %v2975
      %v3126 = vunpack.c.l.b16 %v2976
      %v3127 = vunpack.c.h.b16 %v2976
      %v3128 = vunpack.c.l.b16 %v2977
      %v3129 = vunpack.c.h.b16 %v2977
      %v3130 = vunpack.c.l.b16 %v2978
      %v3131 = vunpack.c.h.b16 %v2978
      %v3132 = vunpack.c.l.b16 %v2979
      %v3133 = vunpack.c.h.b16 %v2979
      %v3134 = vunpack.c.l.b16 %v2980
      %v3135 = vunpack.c.h.b16 %v2980
      %v3136 = vunpack.c.l.b16 %v2981
      %v3137 = vunpack.c.h.b16 %v2981
      %v3138 = vunpack.c.l.b16 %v2982
      %v3139 = vunpack.c.h.b16 %v2982
      %v3140 = vunpack.c.l.b16 %v2983
      %v3141 = vunpack.c.h.b16 %v2983
      %v3142 = vunpack.c.l.b16 %v2984
      %v3143 = vunpack.c.h.b16 %v2984
      %v3144 = vunpack.c.l.b16 %v2985
      %v3145 = vunpack.c.h.b16 %v2985
      %v3146 = vunpack.c.l.b16 %v2986
      %v3147 = vunpack.c.h.b16 %v2986
      %v3148 = vunpack.c.l.b16 %v2987
      %v3149 = vunpack.c.h.b16 %v2987
      %v3150 = vunpack.c.l.b16 %v2988
      %v3151 = vunpack.c.h.b16 %v2988
      %v3152 = vunpack.c.l.b16 %v2989
      %v3153 = vunpack.c.h.b16 %v2989
      %v3154 = vunpack.c.l.b16 %v2990
      %v3155 = vunpack.c.h.b16 %v2990
      %v3156 = vunpack.c.l.b16 %v2991
      %v3157 = vunpack.c.h.b16 %v2991
      %v3158 = vunpack.c.l.b16 %v2992
      %v3159 = vunpack.c.h.b16 %v2992
      %v3160 = vunpack.c.l.b16 %v2993
      %v3161 = vunpack.c.h.b16 %v2993
      %v3162 = vunpack.c.l.b16 %v2994
      %v3163 = vunpack.c.h.b16 %v2994
      %v3164 = vunpack.c.l.b16 %v2995
      %v3165 = vunpack.c.h.b16 %v2995
      %v3166 = vunpack.c.l.b16 %v2996
      %v3167 = vunpack.c.h.b16 %v2996
      %v3168 = vunpack.c.l.b16 %v2997
      %v3169 = vunpack.c.h.b16 %v2997
      %v3170 = vunpack.c.l.b16 %v2998
      %v3171 = vunpack.c.h.b16 %v2998
      %v3172 = vunpack.c.l.b16 %v2999
      %v3173 = vunpack.c.h.b16 %v2999
      %v3174 = vunpack.c.l.b16 %v3000
      %v3175 = vunpack.c.h.b16 %v3000
      %v3176 = vunpack.c.l.b16 %v3001
      %v3177 = vunpack.c.h.b16 %v3001
      %v3178 = vunpack.c.l.b16 %v3002
      %v3179 = vunpack.c.h.b16 %v3002
      %v3180 = vunpack.c.l.b16 %v3003
      %v3181 = vunpack.c.h.b16 %v3003
      %v3182 = vunpack.c.l.b16 %v3004
      %v3183 = vunpack.c.h.b16 %v3004
      %v3184 = vunpack.c.l.b16 %v3005
      %v3185 = vunpack.c.h.b16 %v3005
      %v3186 = vunpack.c.l.b16 %v3006
      %v3187 = vunpack.c.h.b16 %v3006
      %v3188 = vunpack.c.l.b16 %v3007
      %v3189 = vunpack.c.h.b16 %v3007
      %v3190 = vunpack.c.l.b16 %v3008
      %v3191 = vunpack.c.h.b16 %v3008
      %v3192 = vunpack.c.l.b16 %v3009
      %v3193 = vunpack.c.h.b16 %v3009
      %v3194 = vunpack.c.l.b16 %v3010
      %v3195 = vunpack.c.h.b16 %v3010
      %v3196 = vunpack.c.l.b16 %v3011
      %v3197 = vunpack.c.h.b16 %v3011
      %v3198 = vunpack.c.l.b16 %v3012
      %v3199 = vunpack.c.h.b16 %v3012
      %v3200 = vunpack.c.l.b16 %v3013
      %v3201 = vunpack.c.h.b16 %v3013
      %v3202 = vunpack.c.l.b16 %v3014
      %v3203 = vunpack.c.h.b16 %v3014
      %v3204 = vunpack.c.l.b16 %v3015
      %v3205 = vunpack.c.h.b16 %v3015
      %v3206 = vunpack.c.l.b16 %v3016
      %v3207 = vunpack.c.h.b16 %v3016
      %v3208 = vunpack.c.l.b16 %v3017
      %v3209 = vunpack.c.h.b16 %v3017
      %v3210 = vunpack.c.l.b16 %v3018
      %v3211 = vunpack.c.h.b16 %v3018
      %v3212 = vunpack.c.l.b16 %v3019
      %v3213 = vunpack.c.h.b16 %v3019
      %v3214 = vunpack.c.l.b16 %v3020
      %v3215 = vunpack.c.h.b16 %v3020
      %v3216 = vunpack.c.l.b16 %v3021
      %v3217 = vunpack.c.h.b16 %v3021
      %v3218 = vunpack.c.l.b16 %v3022
      %v3219 = vunpack.c.h.b16 %v3022
      %v3220 = vunpack.c.l.b16 %v3023
      %v3221 = vunpack.c.h.b16 %v3023
      %v3222 = vunpack.c.l.b16 %v3024
      %v3223 = vunpack.c.h.b16 %v3024
      %v3224 = vunpack.c.l.b16 %v3025
      %v3225 = vunpack.c.h.b16 %v3025
      %v3226 = vunpack.c.l.b16 %v3026
      %v3227 = vunpack.c.h.b16 %v3026
      %v3228 = vunpack.c.l.b16 %v3027
      %v3229 = vunpack.c.h.b16 %v3027
      %v3230 = vunpack.c.l.b16 %v3028
      %v3231 = vunpack.c.h.b16 %v3028
      %v3232 = vunpack.c.l.b16 %v3029
      %v3233 = vunpack.c.h.b16 %v3029
      %v3234 = vunpack.c.l.b16 %v3030
      %v3235 = vunpack.c.h.b16 %v3030
      %v3236 = vunpack.c.l.b16 %v3031
      %v3237 = vunpack.c.h.b16 %v3031
      %v3238 = vunpack.c.l.b16 %v3032
      %v3239 = vunpack.c.h.b16 %v3032
      %v3240 = vunpack.c.l.b16 %v3033
      %v3241 = vunpack.c.h.b16 %v3033
      %v3242 = vunpack.c.l.b16 %v3034
      %v3243 = vunpack.c.h.b16 %v3034
      %v3244 = vunpack.c.l.b16 %v3035
      %v3245 = vunpack.c.h.b16 %v3035
      %v3246 = vunpack.c.l.b16 %v3036
      %v3247 = vunpack.c.h.b16 %v3036
      %v3248 = vunpack.c.l.b16 %v3037
      %v3249 = vunpack.c.h.b16 %v3037
      %v3250 = vunpack.c.l.b16 %v3038
      %v3251 = vunpack.c.h.b16 %v3038
      %v3252 = vunpack.c.l.b16 %v3039
      %v3253 = vunpack.c.h.b16 %v3039
      %v3254 = vunpack.c.l.b16 %v3040
      %v3255 = vunpack.c.h.b16 %v3040
      %v3256 = vunpack.c.l.b16 %v3041
      %v3257 = vunpack.c.h.b16 %v3041
      %v3258 = vpack.c.b16 %v3128, %v3118
      %v3259 = vpack.c.b16 %v3129, %v3119
      %v3260 = vpack.c.b16 %v3130, %v3120
      %v3261 = vpack.c.b16 %v3131, %v3121
      %v3262 = vpack.c.b16 %v3132, %v3122
      %v3263 = vpack.c.b16 %v3133, %v3123
      %v3264 = vpack.c.b16 %v3134, %v3124
      %v3265 = vpack.c.b16 %v3135, %v3125
      %v3266 = vpack.c.b16 %v3136, %v3126
      %v3267 = vpack.c.b16 %v3137, %v3127
      %v3268 = vpack.c.b16 %v3148, %v3138
      %v3269 = vpack.c.b16 %v3149, %v3139
      %v3270 = vpack.c.b16 %v3150, %v3140
      %v3271 = vpack.c.b16 %v3151, %v3141
      %v3272 = vpack.c.b16 %v3152, %v3142
      %v3273 = vpack.c.b16 %v3153, %v3143
      %v3274 = vpack.c.b16 %v3154, %v3144
      %v3275 = vpack.c.b16 %v3155, %v3145
      %v3276 = vpack.c.b16 %v3156, %v3146
      %v3277 = vpack.c.b16 %v3157, %v3147
      %v3278 = vpack.c.b16 %v3168, %v3158
      %v3279 = vpack.c.b16 %v3169, %v3159
      %v3280 = vpack.c.b16 %v3170, %v3160
      %v3281 = vpack.c.b16 %v3171, %v3161
      %v3282 = vpack.c.b16 %v3172, %v3162
      %v3283 = vpack.c.b16 %v3173, %v3163
      %v3284 = vpack.c.b16 %v3174, %v3164
      %v3285 = vpack.c.b16 %v3175, %v3165
      %v3286 = vpack.c.b16 %v3176, %v3166
      %v3287 = vpack.c.b16 %v3177, %v3167
      %v3288 = vpack.c.b16 %v3188, %v3178
      %v3289 = vpack.c.b16 %v3189, %v3179
      %v3290 = vpack.c.b16 %v3190, %v3180
      %v3291 = vpack.c.b16 %v3191, %v3181
      %v3292 = vpack.c.b16 %v3192, %v3182
      %v3293 = vpack.c.b16 %v3193, %v3183
      %v3294 = vpack.c.b16 %v3194, %v3184
      %v3295 = vpack.c.b16 %v3195, %v3185
      %v3296 = vpack.c.b16 %v3196, %v3186
      %v3297 = vpack.c.b16 %v3197, %v3187
      %v3298 = vpack.c.b16 %v3208, %v3198
      %v3299 = vpack.c.b16 %v3209, %v3199
      %v3300 = vpack.c.b16 %v3210, %v3200
      %v3301 = vpack.c.b16 %v3211, %v3201
      %v3302 = vpack.c.b16 %v3212, %v3202
      %v3303 = vpack.c.b16 %v3213, %v3203
      %v3304 = vpack.c.b16 %v3214, %v3204
      %v3305 = vpack.c.b16 %v3215, %v3205
      %v3306 = vpack.c.b16 %v3216, %v3206
      %v3307 = vpack.c.b16 %v3217, %v3207
      %v3308 = vpack.c.b16 %v3228, %v3218
      %v3309 = vpack.c.b16 %v3229, %v3219
      %v3310 = vpack.c.b16 %v3230, %v3220
      %v3311 = vpack.c.b16 %v3231, %v3221
      %v3312 = vpack.c.b16 %v3232, %v3222
      %v3313 = vpack.c.b16 %v3233, %v3223
      %v3314 = vpack.c.b16 %v3234, %v3224
      %v3315 = vpack.c.b16 %v3235, %v3225
      %v3316 = vpack.c.b16 %v3236, %v3226
      %v3317 = vpack.c.b16 %v3237, %v3227
      %v3318 = vpack.c.b16 %v3248, %v3238
      %v3319 = vpack.c.b16 %v3249, %v3239
      %v3320 = vpack.c.b16 %v3250, %v3240
      %v3321 = vpack.c.b16 %v3251, %v3241
      %v3322 = vpack.c.b16 %v3252, %v3242
      %v3323 = vpack.c.b16 %v3253, %v3243
      %v3324 = vpack.c.b16 %v3254, %v3244
      %v3325 = vpack.c.b16 %v3255, %v3245
      %v3326 = vpack.c.b16 %v3256, %v3246
      %v3327 = vpack.c.b16 %v3257, %v3247
      %vm3388 = vcmask 883712
      %v3390 = vsel %vm3388, %v2971, 0
      %vm3392 = vcmask 1045504
      %v3394 = vsel %vm3392, %v3318, 0
      %v3397 = vsel %vm3392, %v3319, 0
      %v3400 = vsel %vm3392, %v3320, 0
      %v3403 = vsel %vm3392, %v3321, 0
      %v3406 = vsel %vm3392, %v3322, 0
      %v3409 = vsel %vm3392, %v3323, 0
      %v3412 = vsel %vm3392, %v3324, 0
      %v3415 = vsel %vm3392, %v3325, 0
      %v3418 = vsel %vm3392, %v3326, 0
      %v3421 = vsel %vm3392, %v3327, 0
      %3423 = vmatprep.subr.bf16.mxu0 %v3259
      %3424 = vmatpush1.bf16.msra.mxu0 %v3258
      %3425 = vmatprep.subr.bf16.mxu0 %v3269
      %3426 = vmatpush1.bf16.msra.mxu0 %v3268
      %3427 = vmatprep.subr.bf16.mxu0 %v3279
      %3428 = vmatpush1.bf16.msra.mxu0 %v3278
      %3429 = vmatprep.subr.bf16.mxu0 %v3289
      %3430 = vmatpush1.bf16.msra.mxu0 %v3288
      %3431 = vmatprep.subr.bf16.mxu0 %v3299
      %3432 = vmatpush1.bf16.msra.mxu0 %v3298
      %3433 = vmatprep.subr.bf16.mxu0 %v3309
      %3434 = vmatpush1.bf16.msra.mxu0 %v3308
      %3435 = vmatprep.subr.bf16.mxu0 %v3397
      %3436 = vmatpush1.bf16.msra.mxu0 %v3394
      %3437 = vmatprep.subr.bf16.mxu0 0
      %3438 = vmatpush1.bf16.msra.mxu0 0
      %3439 = vmatprep.subr.bf16.mxu0 0
      %3440 = vmatpush1.bf16.msra.mxu0 0
      %3441 = vmatprep.subr.bf16.mxu0 0
      %3442 = vmatpush1.bf16.msra.mxu0 0
      %3443 = vmatprep.subr.bf16.mxu0 0
      %3444 = vmatpush1.bf16.msra.mxu0 0
      %3445 = vmatprep.subr.bf16.mxu0 0
      %3446 = vmatpush1.bf16.msra.mxu0 0
      %3447 = vmatprep.subr.bf16.mxu0 0
      %3448 = vmatpush1.bf16.msra.mxu0 0
      %3449 = vmatprep.subr.bf16.mxu0 0
      %3450 = vmatpush1.bf16.msra.mxu0 0
      %3451 = vmatprep.subr.bf16.mxu0 0
      %3452 = vmatpush1.bf16.msra.mxu0 0
      %3453 = vmatprep.subr.bf16.mxu0 0
      %3454 = vmatpush1.bf16.msra.mxu0 0
      %3455 = vmatprep.mubr.bf16.mxu0 0
      %3456 = vmatmul.mubr.bf16.gmra.mrb[0].mxu0 %v3390
      %v3457 = vpop.f32.mrb[0].mxu0
      %v3458 = vadd.f32 %v3046, %v3457
      %v3459 = vpop.f32.mrb[0].mxu0
      %v3460 = vadd.f32 %v3046, %v3459
      %v3461 = vpop.f32.mrb[0].mxu0
      %v3462 = vpop.f32.mrb[0].mxu0
      %3463 = vdwg.mxu0
      %3464 = vmatprep.subr.bf16.mxu0 %v3261
      %3465 = vmatpush1.bf16.msra.mxu0 %v3260
      %3466 = vmatprep.subr.bf16.mxu0 %v3271
      %3467 = vmatpush1.bf16.msra.mxu0 %v3270
      %3468 = vmatprep.subr.bf16.mxu0 %v3281
      %3469 = vmatpush1.bf16.msra.mxu0 %v3280
      %3470 = vmatprep.subr.bf16.mxu0 %v3291
      %3471 = vmatpush1.bf16.msra.mxu0 %v3290
      %3472 = vmatprep.subr.bf16.mxu0 %v3301
      %3473 = vmatpush1.bf16.msra.mxu0 %v3300
      %3474 = vmatprep.subr.bf16.mxu0 %v3311
      %3475 = vmatpush1.bf16.msra.mxu0 %v3310
      %3476 = vmatprep.subr.bf16.mxu0 %v3403
      %3477 = vmatpush1.bf16.msra.mxu0 %v3400
      %3478 = vmatprep.subr.bf16.mxu0 0
      %3479 = vmatpush1.bf16.msra.mxu0 0
      %3480 = vmatprep.subr.bf16.mxu0 0
      %3481 = vmatpush1.bf16.msra.mxu0 0
      %3482 = vmatprep.subr.bf16.mxu0 0
      %3483 = vmatpush1.bf16.msra.mxu0 0
      %3484 = vmatprep.subr.bf16.mxu0 0
      %3485 = vmatpush1.bf16.msra.mxu0 0
      %3486 = vmatprep.subr.bf16.mxu0 0
      %3487 = vmatpush1.bf16.msra.mxu0 0
      %3488 = vmatprep.subr.bf16.mxu0 0
      %3489 = vmatpush1.bf16.msra.mxu0 0
      %3490 = vmatprep.subr.bf16.mxu0 0
      %3491 = vmatpush1.bf16.msra.mxu0 0
      %3492 = vmatprep.subr.bf16.mxu0 0
      %3493 = vmatpush1.bf16.msra.mxu0 0
      %3494 = vmatprep.subr.bf16.mxu0 0
      %3495 = vmatpush1.bf16.msra.mxu0 0
      %3496 = vmatprep.mubr.bf16.mxu0 0
      %3497 = vmatmul.mubr.bf16.gmra.mrb[0].mxu0 %v3390
      %v3498 = vpop.f32.mrb[0].mxu0
      %v3499 = vadd.f32 %v3046, %v3498
      %v3500 = vpop.f32.mrb[0].mxu0
      %v3501 = vadd.f32 %v3046, %v3500
      %v3502 = vpop.f32.mrb[0].mxu0
      %v3503 = vpop.f32.mrb[0].mxu0
      %3504 = vdwg.mxu0
      %3505 = vmatprep.subr.bf16.mxu0 %v3263
      %3506 = vmatpush1.bf16.msra.mxu0 %v3262
      %3507 = vmatprep.subr.bf16.mxu0 %v3273
      %3508 = vmatpush1.bf16.msra.mxu0 %v3272
      %3509 = vmatprep.subr.bf16.mxu0 %v3283
      %3510 = vmatpush1.bf16.msra.mxu0 %v3282
      %3511 = vmatprep.subr.bf16.mxu0 %v3293
      %3512 = vmatpush1.bf16.msra.mxu0 %v3292
      %3513 = vmatprep.subr.bf16.mxu0 %v3303
      %3514 = vmatpush1.bf16.msra.mxu0 %v3302
      %3515 = vmatprep.subr.bf16.mxu0 %v3313
      %3516 = vmatpush1.bf16.msra.mxu0 %v3312
      %3517 = vmatprep.subr.bf16.mxu0 %v3409
      %3518 = vmatpush1.bf16.msra.mxu0 %v3406
      %3519 = vmatprep.subr.bf16.mxu0 0
      %3520 = vmatpush1.bf16.msra.mxu0 0
      %3521 = vmatprep.subr.bf16.mxu0 0
      %3522 = vmatpush1.bf16.msra.mxu0 0
      %3523 = vmatprep.subr.bf16.mxu0 0
      %3524 = vmatpush1.bf16.msra.mxu0 0
      %3525 = vmatprep.subr.bf16.mxu0 0
      %3526 = vmatpush1.bf16.msra.mxu0 0
      %3527 = vmatprep.subr.bf16.mxu0 0
      %3528 = vmatpush1.bf16.msra.mxu0 0
      %3529 = vmatprep.subr.bf16.mxu0 0
      %3530 = vmatpush1.bf16.msra.mxu0 0
      %3531 = vmatprep.subr.bf16.mxu0 0
      %3532 = vmatpush1.bf16.msra.mxu0 0
      %3533 = vmatprep.subr.bf16.mxu0 0
      %3534 = vmatpush1.bf16.msra.mxu0 0
      %3535 = vmatprep.subr.bf16.mxu0 0
      %3536 = vmatpush1.bf16.msra.mxu0 0
      %3537 = vmatprep.mubr.bf16.mxu0 0
      %3538 = vmatmul.mubr.bf16.gmra.mrb[0].mxu0 %v3390
      %v3539 = vpop.f32.mrb[0].mxu0
      %v3540 = vadd.f32 %v3046, %v3539
      %v3541 = vpop.f32.mrb[0].mxu0
      %v3542 = vadd.f32 %v3046, %v3541
      %v3543 = vpop.f32.mrb[0].mxu0
      %v3544 = vpop.f32.mrb[0].mxu0
      %3545 = vdwg.mxu0
      %3546 = vmatprep.subr.bf16.mxu0 %v3265
      %3547 = vmatpush1.bf16.msra.mxu0 %v3264
      %3548 = vmatprep.subr.bf16.mxu0 %v3275
      %3549 = vmatpush1.bf16.msra.mxu0 %v3274
      %3550 = vmatprep.subr.bf16.mxu0 %v3285
      %3551 = vmatpush1.bf16.msra.mxu0 %v3284
      %3552 = vmatprep.subr.bf16.mxu0 %v3295
      %3553 = vmatpush1.bf16.msra.mxu0 %v3294
      %3554 = vmatprep.subr.bf16.mxu0 %v3305
      %3555 = vmatpush1.bf16.msra.mxu0 %v3304
      %3556 = vmatprep.subr.bf16.mxu0 %v3315
      %3557 = vmatpush1.bf16.msra.mxu0 %v3314
      %3558 = vmatprep.subr.bf16.mxu0 %v3415
      %3559 = vmatpush1.bf16.msra.mxu0 %v3412
      %3560 = vmatprep.subr.bf16.mxu0 0
      %3561 = vmatpush1.bf16.msra.mxu0 0
      %3562 = vmatprep.subr.bf16.mxu0 0
      %3563 = vmatpush1.bf16.msra.mxu0 0
      %3564 = vmatprep.subr.bf16.mxu0 0
      %3565 = vmatpush1.bf16.msra.mxu0 0
      %3566 = vmatprep.subr.bf16.mxu0 0
      %3567 = vmatpush1.bf16.msra.mxu0 0
      %3568 = vmatprep.subr.bf16.mxu0 0
      %3569 = vmatpush1.bf16.msra.mxu0 0
      %3570 = vmatprep.subr.bf16.mxu0 0
      %3571 = vmatpush1.bf16.msra.mxu0 0
      %3572 = vmatprep.subr.bf16.mxu0 0
      %3573 = vmatpush1.bf16.msra.mxu0 0
      %3574 = vmatprep.subr.bf16.mxu0 0
      %3575 = vmatpush1.bf16.msra.mxu0 0
      %3576 = vmatprep.subr.bf16.mxu0 0
      %3577 = vmatpush1.bf16.msra.mxu0 0
      %3578 = vmatprep.mubr.bf16.mxu0 0
      %3579 = vmatmul.mubr.bf16.gmra.mrb[0].mxu0 %v3390
      %v3580 = vpop.f32.mrb[0].mxu0
      %v3581 = vadd.f32 %v3046, %v3580
      %v3582 = vpop.f32.mrb[0].mxu0
      %v3583 = vadd.f32 %v3046, %v3582
      %v3584 = vpop.f32.mrb[0].mxu0
      %v3585 = vpop.f32.mrb[0].mxu0
      %3586 = vdwg.mxu0
      %3587 = vmatprep.subr.bf16.mxu0 %v3267
      %3588 = vmatpush1.bf16.msra.mxu0 %v3266
      %3589 = vmatprep.subr.bf16.mxu0 %v3277
      %3590 = vmatpush1.bf16.msra.mxu0 %v3276
      %3591 = vmatprep.subr.bf16.mxu0 %v3287
      %3592 = vmatpush1.bf16.msra.mxu0 %v3286
      %3593 = vmatprep.subr.bf16.mxu0 %v3297
      %3594 = vmatpush1.bf16.msra.mxu0 %v3296
      %3595 = vmatprep.subr.bf16.mxu0 %v3307
      %3596 = vmatpush1.bf16.msra.mxu0 %v3306
      %3597 = vmatprep.subr.bf16.mxu0 %v3317
      %3598 = vmatpush1.bf16.msra.mxu0 %v3316
      %3599 = vmatprep.subr.bf16.mxu0 %v3421
      %3600 = vmatpush1.bf16.msra.mxu0 %v3418
      %3601 = vmatprep.subr.bf16.mxu0 0
      %3602 = vmatpush1.bf16.msra.mxu0 0
      %3603 = vmatprep.subr.bf16.mxu0 0
      %3604 = vmatpush1.bf16.msra.mxu0 0
      %3605 = vmatprep.subr.bf16.mxu0 0
      %3606 = vmatpush1.bf16.msra.mxu0 0
      %3607 = vmatprep.subr.bf16.mxu0 0
      %3608 = vmatpush1.bf16.msra.mxu0 0
      %3609 = vmatprep.subr.bf16.mxu0 0
      %3610 = vmatpush1.bf16.msra.mxu0 0
      %3611 = vmatprep.subr.bf16.mxu0 0
      %3612 = vmatpush1.bf16.msra.mxu0 0
      %3613 = vmatprep.subr.bf16.mxu0 0
      %3614 = vmatpush1.bf16.msra.mxu0 0
      %3615 = vmatprep.subr.bf16.mxu0 0
      %3616 = vmatpush1.bf16.msra.mxu0 0
      %3617 = vmatprep.subr.bf16.mxu0 0
      %3618 = vmatpush1.bf16.msra.mxu0 0
      %3619 = vmatprep.mubr.bf16.mxu0 0
      %3620 = vmatmul.mubr.bf16.gmra.mrb[0].mxu0 %v3390
      %v3621 = vpop.f32.mrb[0].mxu0
      %v3622 = vadd.f32 %v3046, %v3621
      %v3623 = vpop.f32.mrb[0].mxu0
      %v3624 = vadd.f32 %v3046, %v3623
      %v3625 = vpop.f32.mrb[0].mxu0
      %v3626 = vpop.f32.mrb[0].mxu0
      %3627 = vdwg.mxu0
      %v3628 = vmax.f32 %v3458, 0.0
      %v3629 = vmax.f32 %v3460, 0.0
      %v3630 = vmax.f32 %v3499, 0.0
      %v3631 = vmax.f32 %v3501, 0.0
      %v3632 = vmax.f32 %v3540, 0.0
      %v3633 = vmax.f32 %v3542, 0.0
      %v3634 = vmax.f32 %v3581, 0.0
      %v3635 = vmax.f32 %v3583, 0.0
      %v3636 = vmax.f32 %v3622, 0.0
      %v3637 = vmax.f32 %v3624, 0.0
      %v3638 = vld [vmem:[%s5] sm:$0xff]
      %v3639 = vld [vmem:[%s5 + $0x8] sm:$0x3]
      %v3642 = vlaneseq
      %v3643 = vshrl.u32 %v3642, 7
      %v3644 = vsub.s32 0, %v3643
      %v3645 = vrot.slane %v3638, %v3644
      %v3646 = vlaneseq
      %v3647 = vshrl.u32 %v3646, 7
      %v3648 = vsub.s32 1, %v3647
      %v3649 = vrot.slane %v3638, %v3648
      %v3650 = vlaneseq
      %v3651 = vshrl.u32 %v3650, 7
      %v3652 = vsub.s32 2, %v3651
      %v3653 = vrot.slane %v3638, %v3652
      %v3654 = vlaneseq
      %v3655 = vshrl.u32 %v3654, 7
      %v3656 = vsub.s32 3, %v3655
      %v3657 = vrot.slane %v3638, %v3656
      %v3658 = vlaneseq
      %v3659 = vshrl.u32 %v3658, 7
      %v3660 = vsub.s32 4, %v3659
      %v3661 = vrot.slane %v3638, %v3660
      %v3662 = vlaneseq
      %v3663 = vshrl.u32 %v3662, 7
      %v3664 = vsub.s32 5, %v3663
      %v3665 = vrot.slane %v3638, %v3664
      %v3666 = vlaneseq
      %v3667 = vshrl.u32 %v3666, 7
      %v3668 = vsub.s32 6, %v3667
      %v3669 = vrot.slane %v3638, %v3668
      %v3670 = vlaneseq
      %v3671 = vshrl.u32 %v3670, 7
      %v3672 = vsub.s32 7, %v3671
      %v3673 = vrot.slane %v3638, %v3672
      %v3674 = vlaneseq
      %v3675 = vshrl.u32 %v3674, 7
      %v3676 = vsub.s32 0, %v3675
      %v3677 = vrot.slane %v3639, %v3676
      %v3678 = vlaneseq
      %v3679 = vshrl.u32 %v3678, 7
      %v3680 = vsub.s32 1, %v3679
      %v3681 = vrot.slane %v3639, %v3680
      %v3692 = vmul.f32 %v3628, %v3645
      %v3693 = vmul.f32 %v3629, %v3649
      %v3694 = vmul.f32 %v3630, %v3653
      %v3695 = vmul.f32 %v3631, %v3657
      %v3696 = vmul.f32 %v3632, %v3661
      %v3697 = vmul.f32 %v3633, %v3665
      %v3698 = vmul.f32 %v3634, %v3669
      %v3699 = vmul.f32 %v3635, %v3673
      %v3700 = vmul.f32 %v3636, %v3677
      %v3701 = vmul.f32 %v3637, %v3681
      %vm3702 = vcmask 1043456
      %vm3703 = vcmask 351236
      %vm3704 = vmor %vm3703, %vm3702
      %3705 = vst.msk [vmem:[#allocation3] sm:$0xff] %vm3704, 0
      %vm3706 = vcmask 1043800
      %vm3707 = vcmask 1047556
      %vm3708 = vmor %vm3707, %vm3706
      %3709 = vst.msk [vmem:[#allocation3 + $0x2c] sm:$0xff] %vm3708, 0
      %v3710 = vpack.c.bf16 %v3692, %v3692
      %v3711 = vpack.c.bf16 %v3693, %v3693
      %v3712 = vpack.c.bf16 %v3694, %v3694
      %v3713 = vpack.c.bf16 %v3695, %v3695
      %v3714 = vpack.c.bf16 %v3696, %v3696
      %v3715 = vpack.c.bf16 %v3697, %v3697
      %v3716 = vpack.c.bf16 %v3698, %v3698
      %v3717 = vpack.c.bf16 %v3699, %v3699
      %v3718 = vpack.c.bf16 %v3700, %v3700
      %v3719 = vpack.c.bf16 %v3701, %v3701
      %v3730 = vunpack.c.l.b16 %v3710
      %v3731 = vunpack.c.l.b16 %v3711
      %v3732 = vunpack.c.l.b16 %v3712
      %v3733 = vunpack.c.l.b16 %v3713
      %v3734 = vunpack.c.l.b16 %v3714
      %v3735 = vunpack.c.l.b16 %v3715
      %v3736 = vunpack.c.l.b16 %v3716
      %v3737 = vunpack.c.l.b16 %v3717
      %v3738 = vunpack.c.l.b16 %v3718
      %v3739 = vunpack.c.l.b16 %v3719
      %v3740 = vpack.c.b16 %v3731, %v3730
      %v3741 = vpack.c.b16 %v3733, %v3732
      %v3742 = vpack.c.b16 %v3735, %v3734
      %v3743 = vpack.c.b16 %v3737, %v3736
      %v3744 = vpack.c.b16 %v3739, %v3738
      %3745 = vrot.lane.b32.xlu0 %v3740, 43
      %v3746 = vpop.permute.xlu0 %3745
      %3747 = vrot.lane.b32.xlu0 %v3741, 43
      %v3748 = vpop.permute.xlu0 %3747
      %3749 = vrot.lane.b32.xlu0 %v3742, 43
      %v3750 = vpop.permute.xlu0 %3749
      %3751 = vrot.lane.b32.xlu0 %v3743, 43
      %v3752 = vpop.permute.xlu0 %3751
      %3753 = vrot.lane.b32.xlu0 %v3744, 43
      %v3754 = vpop.permute.xlu0 %3753
      %v3755 = vrot.slane %v3746, 4
      %v3756 = vrot.slane %v3748, 4
      %v3757 = vrot.slane %v3750, 4
      %v3758 = vrot.slane %v3752, 4
      %v3759 = vrot.slane %v3754, 4
      %v3760 = vsel %vm2852, %v3755, %v3746
      %v3761 = vsel %vm402, %v3755, %v3756
      %v3762 = vsel %vm2852, %v3761, %v3748
      %v3763 = vsel %vm402, %v3756, %v3757
      %v3764 = vsel %vm2852, %v3763, %v3750
      %v3765 = vsel %vm402, %v3757, %v3758
      %v3766 = vsel %vm2852, %v3765, %v3752
      %v3767 = vsel %vm402, %v3758, %v3759
      %v3768 = vsel %vm2852, %v3767, %v3754
      %3775 = vst.msk [vmem:[#allocation3 + $0x4] sm:$0xff] %vm3708, %v3760
      %3776 = vst [vmem:[#allocation3 + $0xc] sm:$0xff] %v3762
      %3777 = vst [vmem:[#allocation3 + $0x14] sm:$0xff] %v3764
      %3778 = vst [vmem:[#allocation3 + $0x1c] sm:$0xff] %v3766
      %3779 = vst [vmem:[#allocation3 + $0x24] sm:$0xff] %v3768
      %vm3780 = vcmask 347136
      %3781 = vst.msk [vmem:[#allocation3 + $0x2c] sm:$0xf] %vm3780, %v3759
      %v3782 = vld [vmem:[#allocation3] sm:$0xff]
      %v3783 = vld [vmem:[#allocation3 + $0x8] sm:$0xff]
      %v3784 = vld [vmem:[#allocation3 + $0x10] sm:$0xff]
      %v3785 = vld [vmem:[#allocation3 + $0x18] sm:$0xff]
      %v3786 = vld [vmem:[#allocation3 + $0x20] sm:$0xff]
      %3787 = vst [vmem:[#allocation4] sm:$0xff] %v3782
      %3788 = vst [vmem:[#allocation4 + $0x8] sm:$0xff] %v3783
      %3789 = vst [vmem:[#allocation4 + $0x10] sm:$0xff] %v3784
      %3790 = vst [vmem:[#allocation4 + $0x18] sm:$0xff] %v3785
      %3791 = vst [vmem:[#allocation4 + $0x20] sm:$0xff] %v3786
      %v3792 = vld [vmem:[#allocation3] sm:$0xff]
      %v3793 = vld [vmem:[#allocation3 + $0x8] sm:$0xff]
      %v3794 = vld [vmem:[#allocation3 + $0x10] sm:$0xff]
      %v3795 = vld [vmem:[#allocation3 + $0x18] sm:$0xff]
      %v3796 = vld [vmem:[#allocation3 + $0x20] sm:$0xff]
      %v3797 = vld [vmem:[#allocation3 + $0x28] sm:$0xf]
      %3804 = vrot.lane.b32.xlu0 %v3792, 127
      %v3805 = vpop.permute.xlu0 %3804
      %3806 = vrot.lane.b32.xlu0 %v3793, 127
      %v3807 = vpop.permute.xlu0 %3806
      %3808 = vrot.lane.b32.xlu0 %v3794, 127
      %v3809 = vpop.permute.xlu0 %3808
      %3810 = vrot.lane.b32.xlu0 %v3795, 127
      %v3811 = vpop.permute.xlu0 %3810
      %3812 = vrot.lane.b32.xlu0 %v3796, 127
      %v3813 = vpop.permute.xlu0 %3812
      %3814 = vrot.lane.b32.xlu0 %v3797, 127
      %v3815 = vpop.permute.xlu0 %3814
      %v3816 = vrot.slane %v3805, 4
      %v3817 = vrot.slane %v3807, 4
      %v3818 = vrot.slane %v3809, 4
      %v3819 = vrot.slane %v3811, 4
      %v3820 = vrot.slane %v3813, 4
      %v3821 = vrot.slane %v3815, 4
      %v3822 = vsel %vm402, %v3816, %v3817
      %v3823 = vsel %vm404, %v3805, %v3822
      %v3824 = vsel %vm402, %v3817, %v3818
      %v3825 = vsel %vm404, %v3807, %v3824
      %v3826 = vsel %vm402, %v3818, %v3819
      %v3827 = vsel %vm404, %v3809, %v3826
      %v3828 = vsel %vm402, %v3819, %v3820
      %v3829 = vsel %vm404, %v3811, %v3828
      %v3830 = vsel %vm402, %v3820, %v3821
      %v3831 = vsel %vm404, %v3813, %v3830
      %3837 = vst [vmem:[#allocation4 + $0x28] sm:$0xff] %v3823
      %3838 = vst [vmem:[#allocation4 + $0x30] sm:$0xff] %v3825
      %3839 = vst [vmem:[#allocation4 + $0x38] sm:$0xff] %v3827
      %3840 = vst [vmem:[#allocation4 + $0x40] sm:$0xff] %v3829
      %3841 = vst [vmem:[#allocation4 + $0x48] sm:$0xff] %v3831
      %v3842 = vld [vmem:[#allocation3] sm:$0xff]
      %v3843 = vld [vmem:[#allocation3 + $0x8] sm:$0xff]
      %v3844 = vld [vmem:[#allocation3 + $0x10] sm:$0xff]
      %v3845 = vld [vmem:[#allocation3 + $0x18] sm:$0xff]
      %v3846 = vld [vmem:[#allocation3 + $0x20] sm:$0xff]
      %v3847 = vld [vmem:[#allocation3 + $0x28] sm:$0xf]
      %3854 = vrot.lane.b32.xlu0 %v3842, 126
      %v3855 = vpop.permute.xlu0 %3854
      %3856 = vrot.lane.b32.xlu0 %v3843, 126
      %v3857 = vpop.permute.xlu0 %3856
      %3858 = vrot.lane.b32.xlu0 %v3844, 126
      %v3859 = vpop.permute.xlu0 %3858
      %3860 = vrot.lane.b32.xlu0 %v3845, 126
      %v3861 = vpop.permute.xlu0 %3860
      %3862 = vrot.lane.b32.xlu0 %v3846, 126
      %v3863 = vpop.permute.xlu0 %3862
      %3864 = vrot.lane.b32.xlu0 %v3847, 126
      %v3865 = vpop.permute.xlu0 %3864
      %v3866 = vrot.slane %v3855, 4
      %v3867 = vrot.slane %v3857, 4
      %v3868 = vrot.slane %v3859, 4
      %v3869 = vrot.slane %v3861, 4
      %v3870 = vrot.slane %v3863, 4
      %v3871 = vrot.slane %v3865, 4
      %v3872 = vsel %vm402, %v3866, %v3867
      %v3873 = vsel %vm503, %v3855, %v3872
      %v3874 = vsel %vm402, %v3867, %v3868
      %v3875 = vsel %vm503, %v3857, %v3874
      %v3876 = vsel %vm402, %v3868, %v3869
      %v3877 = vsel %vm503, %v3859, %v3876
      %v3878 = vsel %vm402, %v3869, %v3870
      %v3879 = vsel %vm503, %v3861, %v3878
      %v3880 = vsel %vm402, %v3870, %v3871
      %v3881 = vsel %vm503, %v3863, %v3880
      %3887 = vst [vmem:[#allocation4 + $0x50] sm:$0xff] %v3873
      %3888 = vst [vmem:[#allocation4 + $0x58] sm:$0xff] %v3875
      %3889 = vst [vmem:[#allocation4 + $0x60] sm:$0xff] %v3877
      %3890 = vst [vmem:[#allocation4 + $0x68] sm:$0xff] %v3879
      %3891 = vst [vmem:[#allocation4 + $0x70] sm:$0xff] %v3881
      %v3892 = vld [vmem:[#allocation3] sm:$0xff]
      %v3893 = vld [vmem:[#allocation3 + $0x8] sm:$0xff]
      %v3894 = vld [vmem:[#allocation3 + $0x10] sm:$0xff]
      %v3895 = vld [vmem:[#allocation3 + $0x18] sm:$0xff]
      %v3896 = vld [vmem:[#allocation3 + $0x20] sm:$0xff]
      %v3897 = vld [vmem:[#allocation3 + $0x28] sm:$0xf]
      %3904 = vrot.lane.b32.xlu0 %v3892, 118
      %v3905 = vpop.permute.xlu0 %3904
      %3906 = vrot.lane.b32.xlu0 %v3893, 118
      %v3907 = vpop.permute.xlu0 %3906
      %3908 = vrot.lane.b32.xlu0 %v3894, 118
      %v3909 = vpop.permute.xlu0 %3908
      %3910 = vrot.lane.b32.xlu0 %v3895, 118
      %v3911 = vpop.permute.xlu0 %3910
      %3912 = vrot.lane.b32.xlu0 %v3896, 118
      %v3913 = vpop.permute.xlu0 %3912
      %3914 = vrot.lane.b32.xlu0 %v3897, 118
      %v3915 = vpop.permute.xlu0 %3914
      %v3916 = vrot.slane %v3905, 4
      %v3917 = vrot.slane %v3907, 4
      %v3918 = vrot.slane %v3909, 4
      %v3919 = vrot.slane %v3911, 4
      %v3920 = vrot.slane %v3913, 4
      %v3921 = vrot.slane %v3915, 4
      %v3922 = vsel %vm402, %v3916, %v3917
      %v3923 = vsel %vm608, %v3905, %v3922
      %v3924 = vsel %vm402, %v3917, %v3918
      %v3925 = vsel %vm608, %v3907, %v3924
      %v3926 = vsel %vm402, %v3918, %v3919
      %v3927 = vsel %vm608, %v3909, %v3926
      %v3928 = vsel %vm402, %v3919, %v3920
      %v3929 = vsel %vm608, %v3911, %v3928
      %v3930 = vsel %vm402, %v3920, %v3921
      %v3931 = vsel %vm608, %v3913, %v3930
      %3937 = vst [vmem:[#allocation4 + $0x78] sm:$0xff] %v3923
      %3938 = vst [vmem:[#allocation4 + $0x80] sm:$0xff] %v3925
      %3939 = vst [vmem:[#allocation4 + $0x88] sm:$0xff] %v3927
      %3940 = vst [vmem:[#allocation4 + $0x90] sm:$0xff] %v3929
      %3941 = vst [vmem:[#allocation4 + $0x98] sm:$0xff] %v3931
      %v3942 = vld [vmem:[#allocation3] sm:$0xff]
      %v3943 = vld [vmem:[#allocation3 + $0x8] sm:$0xff]
      %v3944 = vld [vmem:[#allocation3 + $0x10] sm:$0xff]
      %v3945 = vld [vmem:[#allocation3 + $0x18] sm:$0xff]
      %v3946 = vld [vmem:[#allocation3 + $0x20] sm:$0xff]
      %v3947 = vld [vmem:[#allocation3 + $0x28] sm:$0xf]
      %3954 = vrot.lane.b32.xlu0 %v3942, 117
      %v3955 = vpop.permute.xlu0 %3954
      %3956 = vrot.lane.b32.xlu0 %v3943, 117
      %v3957 = vpop.permute.xlu0 %3956
      %3958 = vrot.lane.b32.xlu0 %v3944, 117
      %v3959 = vpop.permute.xlu0 %3958
      %3960 = vrot.lane.b32.xlu0 %v3945, 117
      %v3961 = vpop.permute.xlu0 %3960
      %3962 = vrot.lane.b32.xlu0 %v3946, 117
      %v3963 = vpop.permute.xlu0 %3962
      %3964 = vrot.lane.b32.xlu0 %v3947, 117
      %v3965 = vpop.permute.xlu0 %3964
      %v3966 = vrot.slane %v3955, 4
      %v3967 = vrot.slane %v3957, 4
      %v3968 = vrot.slane %v3959, 4
      %v3969 = vrot.slane %v3961, 4
      %v3970 = vrot.slane %v3963, 4
      %v3971 = vrot.slane %v3965, 4
      %v3972 = vsel %vm402, %v3966, %v3967
      %v3973 = vsel %vm707, %v3955, %v3972
      %v3974 = vsel %vm402, %v3967, %v3968
      %v3975 = vsel %vm707, %v3957, %v3974
      %v3976 = vsel %vm402, %v3968, %v3969
      %v3977 = vsel %vm707, %v3959, %v3976
      %v3978 = vsel %vm402, %v3969, %v3970
      %v3979 = vsel %vm707, %v3961, %v3978
      %v3980 = vsel %vm402, %v3970, %v3971
      %v3981 = vsel %vm707, %v3963, %v3980
      %3987 = vst [vmem:[#allocation4 + $0xa0] sm:$0xff] %v3973
      %3988 = vst [vmem:[#allocation4 + $0xa8] sm:$0xff] %v3975
      %3989 = vst [vmem:[#allocation4 + $0xb0] sm:$0xff] %v3977
      %3990 = vst [vmem:[#allocation4 + $0xb8] sm:$0xff] %v3979
      %3991 = vst [vmem:[#allocation4 + $0xc0] sm:$0xff] %v3981
      %v3992 = vld [vmem:[#allocation3] sm:$0xff]
      %v3993 = vld [vmem:[#allocation3 + $0x8] sm:$0xff]
      %v3994 = vld [vmem:[#allocation3 + $0x10] sm:$0xff]
      %v3995 = vld [vmem:[#allocation3 + $0x18] sm:$0xff]
      %v3996 = vld [vmem:[#allocation3 + $0x20] sm:$0xff]
      %v3997 = vld [vmem:[#allocation3 + $0x28] sm:$0xf]
      %4004 = vrot.lane.b32.xlu0 %v3992, 116
      %v4005 = vpop.permute.xlu0 %4004
      %4006 = vrot.lane.b32.xlu0 %v3993, 116
      %v4007 = vpop.permute.xlu0 %4006
      %4008 = vrot.lane.b32.xlu0 %v3994, 116
      %v4009 = vpop.permute.xlu0 %4008
      %4010 = vrot.lane.b32.xlu0 %v3995, 116
      %v4011 = vpop.permute.xlu0 %4010
      %4012 = vrot.lane.b32.xlu0 %v3996, 116
      %v4013 = vpop.permute.xlu0 %4012
      %4014 = vrot.lane.b32.xlu0 %v3997, 116
      %v4015 = vpop.permute.xlu0 %4014
      %v4016 = vrot.slane %v4005, 4
      %v4017 = vrot.slane %v4007, 4
      %v4018 = vrot.slane %v4009, 4
      %v4019 = vrot.slane %v4011, 4
      %v4020 = vrot.slane %v4013, 4
      %v4021 = vrot.slane %v4015, 4
      %v4022 = vsel %vm402, %v4016, %v4017
      %v4023 = vsel %vm812, %v4005, %v4022
      %v4024 = vsel %vm402, %v4017, %v4018
      %v4025 = vsel %vm812, %v4007, %v4024
      %v4026 = vsel %vm402, %v4018, %v4019
      %v4027 = vsel %vm812, %v4009, %v4026
      %v4028 = vsel %vm402, %v4019, %v4020
      %v4029 = vsel %vm812, %v4011, %v4028
      %v4030 = vsel %vm402, %v4020, %v4021
      %v4031 = vsel %vm812, %v4013, %v4030
      %4037 = vst [vmem:[#allocation4 + $0xc8] sm:$0xff] %v4023
      %4038 = vst [vmem:[#allocation4 + $0xd0] sm:$0xff] %v4025
      %4039 = vst [vmem:[#allocation4 + $0xd8] sm:$0xff] %v4027
      %4040 = vst [vmem:[#allocation4 + $0xe0] sm:$0xff] %v4029
      %4041 = vst [vmem:[#allocation4 + $0xe8] sm:$0xff] %v4031
      %v4042 = vld [vmem:[#allocation3] sm:$0xff]
      %v4043 = vld [vmem:[#allocation3 + $0x8] sm:$0xff]
      %v4044 = vld [vmem:[#allocation3 + $0x10] sm:$0xff]
      %v4045 = vld [vmem:[#allocation3 + $0x18] sm:$0xff]
      %v4046 = vld [vmem:[#allocation3 + $0x20] sm:$0xff]
      %v4047 = vld [vmem:[#allocation3 + $0x28] sm:$0xf]
      %4054 = vrot.lane.b32.xlu0 %v4042, 108
      %v4055 = vpop.permute.xlu0 %4054
      %4056 = vrot.lane.b32.xlu0 %v4043, 108
      %v4057 = vpop.permute.xlu0 %4056
      %4058 = vrot.lane.b32.xlu0 %v4044, 108
      %v4059 = vpop.permute.xlu0 %4058
      %4060 = vrot.lane.b32.xlu0 %v4045, 108
      %v4061 = vpop.permute.xlu0 %4060
      %4062 = vrot.lane.b32.xlu0 %v4046, 108
      %v4063 = vpop.permute.xlu0 %4062
      %4064 = vrot.lane.b32.xlu0 %v4047, 108
      %v4065 = vpop.permute.xlu0 %4064
      %v4066 = vrot.slane %v4055, 4
      %v4067 = vrot.slane %v4057, 4
      %v4068 = vrot.slane %v4059, 4
      %v4069 = vrot.slane %v4061, 4
      %v4070 = vrot.slane %v4063, 4
      %v4071 = vrot.slane %v4065, 4
      %v4072 = vsel %vm402, %v4066, %v4067
      %v4073 = vsel %vm911, %v4055, %v4072
      %v4074 = vsel %vm402, %v4067, %v4068
      %v4075 = vsel %vm911, %v4057, %v4074
      %v4076 = vsel %vm402, %v4068, %v4069
      %v4077 = vsel %vm911, %v4059, %v4076
      %v4078 = vsel %vm402, %v4069, %v4070
      %v4079 = vsel %vm911, %v4061, %v4078
      %v4080 = vsel %vm402, %v4070, %v4071
      %v4081 = vsel %vm911, %v4063, %v4080
      %4087 = vst [vmem:[#allocation4 + $0xf0] sm:$0xff] %v4073
      %4088 = vst [vmem:[#allocation4 + $0xf8] sm:$0xff] %v4075
      %4089 = vst [vmem:[#allocation4 + $0x100] sm:$0xff] %v4077
      %4090 = vst [vmem:[#allocation4 + $0x108] sm:$0xff] %v4079
      %4091 = vst [vmem:[#allocation4 + $0x110] sm:$0xff] %v4081
      %v4092 = vld [vmem:[#allocation3] sm:$0xff]
      %v4093 = vld [vmem:[#allocation3 + $0x8] sm:$0xff]
      %v4094 = vld [vmem:[#allocation3 + $0x10] sm:$0xff]
      %v4095 = vld [vmem:[#allocation3 + $0x18] sm:$0xff]
      %v4096 = vld [vmem:[#allocation3 + $0x20] sm:$0xff]
      %v4097 = vld [vmem:[#allocation3 + $0x28] sm:$0xf]
      %4104 = vrot.lane.b32.xlu0 %v4092, 107
      %v4105 = vpop.permute.xlu0 %4104
      %4106 = vrot.lane.b32.xlu0 %v4093, 107
      %v4107 = vpop.permute.xlu0 %4106
      %4108 = vrot.lane.b32.xlu0 %v4094, 107
      %v4109 = vpop.permute.xlu0 %4108
      %4110 = vrot.lane.b32.xlu0 %v4095, 107
      %v4111 = vpop.permute.xlu0 %4110
      %4112 = vrot.lane.b32.xlu0 %v4096, 107
      %v4113 = vpop.permute.xlu0 %4112
      %4114 = vrot.lane.b32.xlu0 %v4097, 107
      %v4115 = vpop.permute.xlu0 %4114
      %v4116 = vrot.slane %v4105, 4
      %v4117 = vrot.slane %v4107, 4
      %v4118 = vrot.slane %v4109, 4
      %v4119 = vrot.slane %v4111, 4
      %v4120 = vrot.slane %v4113, 4
      %v4121 = vrot.slane %v4115, 4
      %v4122 = vsel %vm402, %v4116, %v4117
      %v4123 = vsel %vm1016, %v4105, %v4122
      %v4124 = vsel %vm402, %v4117, %v4118
      %v4125 = vsel %vm1016, %v4107, %v4124
      %v4126 = vsel %vm402, %v4118, %v4119
      %v4127 = vsel %vm1016, %v4109, %v4126
      %v4128 = vsel %vm402, %v4119, %v4120
      %v4129 = vsel %vm1016, %v4111, %v4128
      %v4130 = vsel %vm402, %v4120, %v4121
      %v4131 = vsel %vm1016, %v4113, %v4130
      %4137 = vst [vmem:[#allocation4 + $0x118] sm:$0xff] %v4123
      %4138 = vst [vmem:[#allocation4 + $0x120] sm:$0xff] %v4125
      %4139 = vst [vmem:[#allocation4 + $0x128] sm:$0xff] %v4127
      %4140 = vst [vmem:[#allocation4 + $0x130] sm:$0xff] %v4129
      %4141 = vst [vmem:[#allocation4 + $0x138] sm:$0xff] %v4131
      %v4142 = vld [vmem:[#allocation3] sm:$0xff]
      %v4143 = vld [vmem:[#allocation3 + $0x8] sm:$0xff]
      %v4144 = vld [vmem:[#allocation3 + $0x10] sm:$0xff]
      %v4145 = vld [vmem:[#allocation3 + $0x18] sm:$0xff]
      %v4146 = vld [vmem:[#allocation3 + $0x20] sm:$0xff]
      %v4147 = vld [vmem:[#allocation3 + $0x28] sm:$0xf]
      %4154 = vrot.lane.b32.xlu0 %v4142, 106
      %v4155 = vpop.permute.xlu0 %4154
      %4156 = vrot.lane.b32.xlu0 %v4143, 106
      %v4157 = vpop.permute.xlu0 %4156
      %4158 = vrot.lane.b32.xlu0 %v4144, 106
      %v4159 = vpop.permute.xlu0 %4158
      %4160 = vrot.lane.b32.xlu0 %v4145, 106
      %v4161 = vpop.permute.xlu0 %4160
      %4162 = vrot.lane.b32.xlu0 %v4146, 106
      %v4163 = vpop.permute.xlu0 %4162
      %4164 = vrot.lane.b32.xlu0 %v4147, 106
      %v4165 = vpop.permute.xlu0 %4164
      %v4166 = vrot.slane %v4155, 4
      %v4167 = vrot.slane %v4157, 4
      %v4168 = vrot.slane %v4159, 4
      %v4169 = vrot.slane %v4161, 4
      %v4170 = vrot.slane %v4163, 4
      %v4171 = vrot.slane %v4165, 4
      %v4172 = vsel %vm402, %v4166, %v4167
      %v4173 = vsel %vm1115, %v4155, %v4172
      %v4174 = vsel %vm402, %v4167, %v4168
      %v4175 = vsel %vm1115, %v4157, %v4174
      %v4176 = vsel %vm402, %v4168, %v4169
      %v4177 = vsel %vm1115, %v4159, %v4176
      %v4178 = vsel %vm402, %v4169, %v4170
      %v4179 = vsel %vm1115, %v4161, %v4178
      %v4180 = vsel %vm402, %v4170, %v4171
      %v4181 = vsel %vm1115, %v4163, %v4180
      %4187 = vst [vmem:[#allocation4 + $0x140] sm:$0xff] %v4173
      %4188 = vst [vmem:[#allocation4 + $0x148] sm:$0xff] %v4175
      %4189 = vst [vmem:[#allocation4 + $0x150] sm:$0xff] %v4177
      %4190 = vst [vmem:[#allocation4 + $0x158] sm:$0xff] %v4179
      %4191 = vst [vmem:[#allocation4 + $0x160] sm:$0xff] %v4181
      %v4192 = vld [vmem:[#allocation3 + $0x4] sm:$0xff]
      %v4193 = vld [vmem:[#allocation3 + $0xc] sm:$0xff]
      %v4194 = vld [vmem:[#allocation3 + $0x14] sm:$0xff]
      %v4195 = vld [vmem:[#allocation3 + $0x1c] sm:$0xff]
      %v4196 = vld [vmem:[#allocation3 + $0x24] sm:$0xff]
      %v4197 = vld [vmem:[#allocation3 + $0x2c] sm:$0xf]
      %4204 = vrot.lane.b32.xlu0 %v4192, 96
      %v4205 = vpop.permute.xlu0 %4204
      %4206 = vrot.lane.b32.xlu0 %v4193, 96
      %v4207 = vpop.permute.xlu0 %4206
      %4208 = vrot.lane.b32.xlu0 %v4194, 96
      %v4209 = vpop.permute.xlu0 %4208
      %4210 = vrot.lane.b32.xlu0 %v4195, 96
      %v4211 = vpop.permute.xlu0 %4210
      %4212 = vrot.lane.b32.xlu0 %v4196, 96
      %v4213 = vpop.permute.xlu0 %4212
      %4214 = vrot.lane.b32.xlu0 %v4197, 96
      %v4215 = vpop.permute.xlu0 %4214
      %v4216 = vrot.slane %v4205, 4
      %v4217 = vrot.slane %v4207, 4
      %v4218 = vrot.slane %v4209, 4
      %v4219 = vrot.slane %v4211, 4
      %v4220 = vrot.slane %v4213, 4
      %v4221 = vrot.slane %v4215, 4
      %v4222 = vsel %vm402, %v4216, %v4217
      %v4223 = vsel %vm1220, %v4205, %v4222
      %v4224 = vsel %vm402, %v4217, %v4218
      %v4225 = vsel %vm1220, %v4207, %v4224
      %v4226 = vsel %vm402, %v4218, %v4219
      %v4227 = vsel %vm1220, %v4209, %v4226
      %v4228 = vsel %vm402, %v4219, %v4220
      %v4229 = vsel %vm1220, %v4211, %v4228
      %v4230 = vsel %vm402, %v4220, %v4221
      %v4231 = vsel %vm1220, %v4213, %v4230
      %4237 = vst [vmem:[#allocation4 + $0x168] sm:$0xff] %v4223
      %4238 = vst [vmem:[#allocation4 + $0x170] sm:$0xff] %v4225
      %4239 = vst [vmem:[#allocation4 + $0x178] sm:$0xff] %v4227
      %4240 = vst [vmem:[#allocation4 + $0x180] sm:$0xff] %v4229
      %4241 = vst [vmem:[#allocation4 + $0x188] sm:$0xff] %v4231
      %v4242 = vld [vmem:[#allocation3 + $0x4] sm:$0xff]
      %v4243 = vld [vmem:[#allocation3 + $0xc] sm:$0xff]
      %v4244 = vld [vmem:[#allocation3 + $0x14] sm:$0xff]
      %v4245 = vld [vmem:[#allocation3 + $0x1c] sm:$0xff]
      %v4246 = vld [vmem:[#allocation3 + $0x24] sm:$0xff]
      %v4247 = vld [vmem:[#allocation3 + $0x2c] sm:$0xf]
      %4254 = vrot.lane.b32.xlu0 %v4242, 95
      %v4255 = vpop.permute.xlu0 %4254
      %4256 = vrot.lane.b32.xlu0 %v4243, 95
      %v4257 = vpop.permute.xlu0 %4256
      %4258 = vrot.lane.b32.xlu0 %v4244, 95
      %v4259 = vpop.permute.xlu0 %4258
      %4260 = vrot.lane.b32.xlu0 %v4245, 95
      %v4261 = vpop.permute.xlu0 %4260
      %4262 = vrot.lane.b32.xlu0 %v4246, 95
      %v4263 = vpop.permute.xlu0 %4262
      %4264 = vrot.lane.b32.xlu0 %v4247, 95
      %v4265 = vpop.permute.xlu0 %4264
      %v4266 = vrot.slane %v4255, 4
      %v4267 = vrot.slane %v4257, 4
      %v4268 = vrot.slane %v4259, 4
      %v4269 = vrot.slane %v4261, 4
      %v4270 = vrot.slane %v4263, 4
      %v4271 = vrot.slane %v4265, 4
      %v4272 = vsel %vm402, %v4266, %v4267
      %v4273 = vsel %vm1319, %v4255, %v4272
      %v4274 = vsel %vm402, %v4267, %v4268
      %v4275 = vsel %vm1319, %v4257, %v4274
      %v4276 = vsel %vm402, %v4268, %v4269
      %v4277 = vsel %vm1319, %v4259, %v4276
      %v4278 = vsel %vm402, %v4269, %v4270
      %v4279 = vsel %vm1319, %v4261, %v4278
      %v4280 = vsel %vm402, %v4270, %v4271
      %v4281 = vsel %vm1319, %v4263, %v4280
      %4287 = vst [vmem:[#allocation4 + $0x190] sm:$0xff] %v4273
      %4288 = vst [vmem:[#allocation4 + $0x198] sm:$0xff] %v4275
      %4289 = vst [vmem:[#allocation4 + $0x1a0] sm:$0xff] %v4277
      %4290 = vst [vmem:[#allocation4 + $0x1a8] sm:$0xff] %v4279
      %4291 = vst [vmem:[#allocation4 + $0x1b0] sm:$0xff] %v4281
      %v4292 = vld [vmem:[#allocation3 + $0x4] sm:$0xff]
      %v4293 = vld [vmem:[#allocation3 + $0xc] sm:$0xff]
      %v4294 = vld [vmem:[#allocation3 + $0x14] sm:$0xff]
      %v4295 = vld [vmem:[#allocation3 + $0x1c] sm:$0xff]
      %v4296 = vld [vmem:[#allocation3 + $0x24] sm:$0xff]
      %v4297 = vld [vmem:[#allocation3 + $0x2c] sm:$0xf]
      %4304 = vrot.lane.b32.xlu0 %v4292, 94
      %v4305 = vpop.permute.xlu0 %4304
      %4306 = vrot.lane.b32.xlu0 %v4293, 94
      %v4307 = vpop.permute.xlu0 %4306
      %4308 = vrot.lane.b32.xlu0 %v4294, 94
      %v4309 = vpop.permute.xlu0 %4308
      %4310 = vrot.lane.b32.xlu0 %v4295, 94
      %v4311 = vpop.permute.xlu0 %4310
      %4312 = vrot.lane.b32.xlu0 %v4296, 94
      %v4313 = vpop.permute.xlu0 %4312
      %4314 = vrot.lane.b32.xlu0 %v4297, 94
      %v4315 = vpop.permute.xlu0 %4314
      %v4316 = vrot.slane %v4305, 4
      %v4317 = vrot.slane %v4307, 4
      %v4318 = vrot.slane %v4309, 4
      %v4319 = vrot.slane %v4311, 4
      %v4320 = vrot.slane %v4313, 4
      %v4321 = vrot.slane %v4315, 4
      %v4322 = vsel %vm402, %v4316, %v4317
      %v4323 = vsel %vm1424, %v4305, %v4322
      %v4324 = vsel %vm402, %v4317, %v4318
      %v4325 = vsel %vm1424, %v4307, %v4324
      %v4326 = vsel %vm402, %v4318, %v4319
      %v4327 = vsel %vm1424, %v4309, %v4326
      %v4328 = vsel %vm402, %v4319, %v4320
      %v4329 = vsel %vm1424, %v4311, %v4328
      %v4330 = vsel %vm402, %v4320, %v4321
      %v4331 = vsel %vm1424, %v4313, %v4330
      %4337 = vst [vmem:[#allocation4 + $0x1b8] sm:$0xff] %v4323
      %4338 = vst [vmem:[#allocation4 + $0x1c0] sm:$0xff] %v4325
      %4339 = vst [vmem:[#allocation4 + $0x1c8] sm:$0xff] %v4327
      %4340 = vst [vmem:[#allocation4 + $0x1d0] sm:$0xff] %v4329
      %4341 = vst [vmem:[#allocation4 + $0x1d8] sm:$0xff] %v4331
      %v4342 = vld [vmem:[#allocation3 + $0x4] sm:$0xff]
      %v4343 = vld [vmem:[#allocation3 + $0xc] sm:$0xff]
      %v4344 = vld [vmem:[#allocation3 + $0x14] sm:$0xff]
      %v4345 = vld [vmem:[#allocation3 + $0x1c] sm:$0xff]
      %v4346 = vld [vmem:[#allocation3 + $0x24] sm:$0xff]
      %v4347 = vld [vmem:[#allocation3 + $0x2c] sm:$0xf]
      %4354 = vrot.lane.b32.xlu0 %v4342, 86
      %v4355 = vpop.permute.xlu0 %4354
      %4356 = vrot.lane.b32.xlu0 %v4343, 86
      %v4357 = vpop.permute.xlu0 %4356
      %4358 = vrot.lane.b32.xlu0 %v4344, 86
      %v4359 = vpop.permute.xlu0 %4358
      %4360 = vrot.lane.b32.xlu0 %v4345, 86
      %v4361 = vpop.permute.xlu0 %4360
      %4362 = vrot.lane.b32.xlu0 %v4346, 86
      %v4363 = vpop.permute.xlu0 %4362
      %4364 = vrot.lane.b32.xlu0 %v4347, 86
      %v4365 = vpop.permute.xlu0 %4364
      %v4366 = vrot.slane %v4355, 4
      %v4367 = vrot.slane %v4357, 4
      %v4368 = vrot.slane %v4359, 4
      %v4369 = vrot.slane %v4361, 4
      %v4370 = vrot.slane %v4363, 4
      %v4371 = vrot.slane %v4365, 4
      %v4372 = vsel %vm402, %v4366, %v4367
      %v4373 = vsel %vm1523, %v4355, %v4372
      %v4374 = vsel %vm402, %v4367, %v4368
      %v4375 = vsel %vm1523, %v4357, %v4374
      %v4376 = vsel %vm402, %v4368, %v4369
      %v4377 = vsel %vm1523, %v4359, %v4376
      %v4378 = vsel %vm402, %v4369, %v4370
      %v4379 = vsel %vm1523, %v4361, %v4378
      %v4380 = vsel %vm402, %v4370, %v4371
      %v4381 = vsel %vm1523, %v4363, %v4380
      %4387 = vst [vmem:[#allocation4 + $0x1e0] sm:$0xff] %v4373
      %4388 = vst [vmem:[#allocation4 + $0x1e8] sm:$0xff] %v4375
      %4389 = vst [vmem:[#allocation4 + $0x1f0] sm:$0xff] %v4377
      %4390 = vst [vmem:[#allocation4 + $0x1f8] sm:$0xff] %v4379
      %4391 = vst [vmem:[#allocation4 + $0x200] sm:$0xff] %v4381
      %v4392 = vld [vmem:[#allocation3 + $0x4] sm:$0xff]
      %v4393 = vld [vmem:[#allocation3 + $0xc] sm:$0xff]
      %v4394 = vld [vmem:[#allocation3 + $0x14] sm:$0xff]
      %v4395 = vld [vmem:[#allocation3 + $0x1c] sm:$0xff]
      %v4396 = vld [vmem:[#allocation3 + $0x24] sm:$0xff]
      %v4397 = vld [vmem:[#allocation3 + $0x2c] sm:$0xf]
      %4404 = vrot.lane.b32.xlu0 %v4392, 85
      %v4405 = vpop.permute.xlu0 %4404
      %4406 = vrot.lane.b32.xlu0 %v4393, 85
      %v4407 = vpop.permute.xlu0 %4406
      %4408 = vrot.lane.b32.xlu0 %v4394, 85
      %v4409 = vpop.permute.xlu0 %4408
      %4410 = vrot.lane.b32.xlu0 %v4395, 85
      %v4411 = vpop.permute.xlu0 %4410
      %4412 = vrot.lane.b32.xlu0 %v4396, 85
      %v4413 = vpop.permute.xlu0 %4412
      %4414 = vrot.lane.b32.xlu0 %v4397, 85
      %v4415 = vpop.permute.xlu0 %4414
      %v4416 = vrot.slane %v4405, 4
      %v4417 = vrot.slane %v4407, 4
      %v4418 = vrot.slane %v4409, 4
      %v4419 = vrot.slane %v4411, 4
      %v4420 = vrot.slane %v4413, 4
      %v4421 = vrot.slane %v4415, 4
      %v4422 = vsel %vm402, %v4416, %v4417
      %v4423 = vsel %vm1628, %v4405, %v4422
      %v4424 = vsel %vm402, %v4417, %v4418
      %v4425 = vsel %vm1628, %v4407, %v4424
      %v4426 = vsel %vm402, %v4418, %v4419
      %v4427 = vsel %vm1628, %v4409, %v4426
      %v4428 = vsel %vm402, %v4419, %v4420
      %v4429 = vsel %vm1628, %v4411, %v4428
      %v4430 = vsel %vm402, %v4420, %v4421
      %v4431 = vsel %vm1628, %v4413, %v4430
      %4437 = vst [vmem:[#allocation4 + $0x208] sm:$0xff] %v4423
      %4438 = vst [vmem:[#allocation4 + $0x210] sm:$0xff] %v4425
      %4439 = vst [vmem:[#allocation4 + $0x218] sm:$0xff] %v4427
      %4440 = vst [vmem:[#allocation4 + $0x220] sm:$0xff] %v4429
      %4441 = vst [vmem:[#allocation4 + $0x228] sm:$0xff] %v4431
      %v4442 = vld [vmem:[#allocation3 + $0x4] sm:$0xff]
      %v4443 = vld [vmem:[#allocation3 + $0xc] sm:$0xff]
      %v4444 = vld [vmem:[#allocation3 + $0x14] sm:$0xff]
      %v4445 = vld [vmem:[#allocation3 + $0x1c] sm:$0xff]
      %v4446 = vld [vmem:[#allocation3 + $0x24] sm:$0xff]
      %v4447 = vld [vmem:[#allocation3 + $0x2c] sm:$0xf]
      %4454 = vrot.lane.b32.xlu0 %v4442, 84
      %v4455 = vpop.permute.xlu0 %4454
      %4456 = vrot.lane.b32.xlu0 %v4443, 84
      %v4457 = vpop.permute.xlu0 %4456
      %4458 = vrot.lane.b32.xlu0 %v4444, 84
      %v4459 = vpop.permute.xlu0 %4458
      %4460 = vrot.lane.b32.xlu0 %v4445, 84
      %v4461 = vpop.permute.xlu0 %4460
      %4462 = vrot.lane.b32.xlu0 %v4446, 84
      %v4463 = vpop.permute.xlu0 %4462
      %4464 = vrot.lane.b32.xlu0 %v4447, 84
      %v4465 = vpop.permute.xlu0 %4464
      %v4466 = vrot.slane %v4455, 4
      %v4467 = vrot.slane %v4457, 4
      %v4468 = vrot.slane %v4459, 4
      %v4469 = vrot.slane %v4461, 4
      %v4470 = vrot.slane %v4463, 4
      %v4471 = vrot.slane %v4465, 4
      %v4472 = vsel %vm402, %v4466, %v4467
      %v4473 = vsel %vm1727, %v4455, %v4472
      %v4474 = vsel %vm402, %v4467, %v4468
      %v4475 = vsel %vm1727, %v4457, %v4474
      %v4476 = vsel %vm402, %v4468, %v4469
      %v4477 = vsel %vm1727, %v4459, %v4476
      %v4478 = vsel %vm402, %v4469, %v4470
      %v4479 = vsel %vm1727, %v4461, %v4478
      %v4480 = vsel %vm402, %v4470, %v4471
      %v4481 = vsel %vm1727, %v4463, %v4480
      %4487 = vst [vmem:[#allocation4 + $0x230] sm:$0xff] %v4473
      %4488 = vst [vmem:[#allocation4 + $0x238] sm:$0xff] %v4475
      %4489 = vst [vmem:[#allocation4 + $0x240] sm:$0xff] %v4477
      %4490 = vst [vmem:[#allocation4 + $0x248] sm:$0xff] %v4479
      %4491 = vst [vmem:[#allocation4 + $0x250] sm:$0xff] %v4481
      %v4492 = vld [vmem:[#allocation3 + $0x4] sm:$0xff]
      %v4493 = vld [vmem:[#allocation3 + $0xc] sm:$0xff]
      %v4494 = vld [vmem:[#allocation3 + $0x14] sm:$0xff]
      %v4495 = vld [vmem:[#allocation3 + $0x1c] sm:$0xff]
      %v4496 = vld [vmem:[#allocation3 + $0x24] sm:$0xff]
      %v4497 = vld [vmem:[#allocation3 + $0x2c] sm:$0xf]
      %4504 = vrot.lane.b32.xlu0 %v4492, 76
      %v4505 = vpop.permute.xlu0 %4504
      %4506 = vrot.lane.b32.xlu0 %v4493, 76
      %v4507 = vpop.permute.xlu0 %4506
      %4508 = vrot.lane.b32.xlu0 %v4494, 76
      %v4509 = vpop.permute.xlu0 %4508
      %4510 = vrot.lane.b32.xlu0 %v4495, 76
      %v4511 = vpop.permute.xlu0 %4510
      %4512 = vrot.lane.b32.xlu0 %v4496, 76
      %v4513 = vpop.permute.xlu0 %4512
      %4514 = vrot.lane.b32.xlu0 %v4497, 76
      %v4515 = vpop.permute.xlu0 %4514
      %v4516 = vrot.slane %v4505, 4
      %v4517 = vrot.slane %v4507, 4
      %v4518 = vrot.slane %v4509, 4
      %v4519 = vrot.slane %v4511, 4
      %v4520 = vrot.slane %v4513, 4
      %v4521 = vrot.slane %v4515, 4
      %v4522 = vsel %vm402, %v4516, %v4517
      %v4523 = vsel %vm1832, %v4505, %v4522
      %v4524 = vsel %vm402, %v4517, %v4518
      %v4525 = vsel %vm1832, %v4507, %v4524
      %v4526 = vsel %vm402, %v4518, %v4519
      %v4527 = vsel %vm1832, %v4509, %v4526
      %v4528 = vsel %vm402, %v4519, %v4520
      %v4529 = vsel %vm1832, %v4511, %v4528
      %v4530 = vsel %vm402, %v4520, %v4521
      %v4531 = vsel %vm1832, %v4513, %v4530
      %4537 = vst [vmem:[#allocation4 + $0x258] sm:$0xff] %v4523
      %4538 = vst [vmem:[#allocation4 + $0x260] sm:$0xff] %v4525
      %4539 = vst [vmem:[#allocation4 + $0x268] sm:$0xff] %v4527
      %4540 = vst [vmem:[#allocation4 + $0x270] sm:$0xff] %v4529
      %4541 = vst [vmem:[#allocation4 + $0x278] sm:$0xff] %v4531
      %v4542 = vld [vmem:[#allocation3 + $0x4] sm:$0xff]
      %v4543 = vld [vmem:[#allocation3 + $0xc] sm:$0xff]
      %v4544 = vld [vmem:[#allocation3 + $0x14] sm:$0xff]
      %v4545 = vld [vmem:[#allocation3 + $0x1c] sm:$0xff]
      %v4546 = vld [vmem:[#allocation3 + $0x24] sm:$0xff]
      %v4547 = vld [vmem:[#allocation3 + $0x2c] sm:$0xf]
      %4554 = vrot.lane.b32.xlu0 %v4542, 75
      %v4555 = vpop.permute.xlu0 %4554
      %4556 = vrot.lane.b32.xlu0 %v4543, 75
      %v4557 = vpop.permute.xlu0 %4556
      %4558 = vrot.lane.b32.xlu0 %v4544, 75
      %v4559 = vpop.permute.xlu0 %4558
      %4560 = vrot.lane.b32.xlu0 %v4545, 75
      %v4561 = vpop.permute.xlu0 %4560
      %4562 = vrot.lane.b32.xlu0 %v4546, 75
      %v4563 = vpop.permute.xlu0 %4562
      %4564 = vrot.lane.b32.xlu0 %v4547, 75
      %v4565 = vpop.permute.xlu0 %4564
      %v4566 = vrot.slane %v4555, 4
      %v4567 = vrot.slane %v4557, 4
      %v4568 = vrot.slane %v4559, 4
      %v4569 = vrot.slane %v4561, 4
      %v4570 = vrot.slane %v4563, 4
      %v4571 = vrot.slane %v4565, 4
      %v4572 = vsel %vm402, %v4566, %v4567
      %v4573 = vsel %vm1931, %v4555, %v4572
      %v4574 = vsel %vm402, %v4567, %v4568
      %v4575 = vsel %vm1931, %v4557, %v4574
      %v4576 = vsel %vm402, %v4568, %v4569
      %v4577 = vsel %vm1931, %v4559, %v4576
      %v4578 = vsel %vm402, %v4569, %v4570
      %v4579 = vsel %vm1931, %v4561, %v4578
      %v4580 = vsel %vm402, %v4570, %v4571
      %v4581 = vsel %vm1931, %v4563, %v4580
      %4587 = vst [vmem:[#allocation4 + $0x280] sm:$0xff] %v4573
      %4588 = vst [vmem:[#allocation4 + $0x288] sm:$0xff] %v4575
      %4589 = vst [vmem:[#allocation4 + $0x290] sm:$0xff] %v4577
      %4590 = vst [vmem:[#allocation4 + $0x298] sm:$0xff] %v4579
      %4591 = vst [vmem:[#allocation4 + $0x2a0] sm:$0xff] %v4581
      %v4592 = vld [vmem:[#allocation3 + $0x4] sm:$0xff]
      %v4593 = vld [vmem:[#allocation3 + $0xc] sm:$0xff]
      %v4594 = vld [vmem:[#allocation3 + $0x14] sm:$0xff]
      %v4595 = vld [vmem:[#allocation3 + $0x1c] sm:$0xff]
      %v4596 = vld [vmem:[#allocation3 + $0x24] sm:$0xff]
      %v4597 = vld [vmem:[#allocation3 + $0x2c] sm:$0xf]
      %4604 = vrot.lane.b32.xlu0 %v4592, 74
      %v4605 = vpop.permute.xlu0 %4604
      %4606 = vrot.lane.b32.xlu0 %v4593, 74
      %v4607 = vpop.permute.xlu0 %4606
      %4608 = vrot.lane.b32.xlu0 %v4594, 74
      %v4609 = vpop.permute.xlu0 %4608
      %4610 = vrot.lane.b32.xlu0 %v4595, 74
      %v4611 = vpop.permute.xlu0 %4610
      %4612 = vrot.lane.b32.xlu0 %v4596, 74
      %v4613 = vpop.permute.xlu0 %4612
      %4614 = vrot.lane.b32.xlu0 %v4597, 74
      %v4615 = vpop.permute.xlu0 %4614
      %v4616 = vrot.slane %v4605, 4
      %v4617 = vrot.slane %v4607, 4
      %v4618 = vrot.slane %v4609, 4
      %v4619 = vrot.slane %v4611, 4
      %v4620 = vrot.slane %v4613, 4
      %v4621 = vrot.slane %v4615, 4
      %v4622 = vsel %vm402, %v4616, %v4617
      %v4623 = vsel %vm2036, %v4605, %v4622
      %v4624 = vsel %vm402, %v4617, %v4618
      %v4625 = vsel %vm2036, %v4607, %v4624
      %v4626 = vsel %vm402, %v4618, %v4619
      %v4627 = vsel %vm2036, %v4609, %v4626
      %v4628 = vsel %vm402, %v4619, %v4620
      %v4629 = vsel %vm2036, %v4611, %v4628
      %v4630 = vsel %vm402, %v4620, %v4621
      %v4631 = vsel %vm2036, %v4613, %v4630
      %4637 = vst [vmem:[#allocation4 + $0x2a8] sm:$0xff] %v4623
      %4638 = vst [vmem:[#allocation4 + $0x2b0] sm:$0xff] %v4625
      %4639 = vst [vmem:[#allocation4 + $0x2b8] sm:$0xff] %v4627
      %4640 = vst [vmem:[#allocation4 + $0x2c0] sm:$0xff] %v4629
      %4641 = vst [vmem:[#allocation4 + $0x2c8] sm:$0xff] %v4631
      %v4642 = vld [vmem:[#allocation3 + $0x8] sm:$0xff]
      %v4643 = vld [vmem:[#allocation3 + $0x10] sm:$0xff]
      %v4644 = vld [vmem:[#allocation3 + $0x18] sm:$0xff]
      %v4645 = vld [vmem:[#allocation3 + $0x20] sm:$0xff]
      %v4646 = vld [vmem:[#allocation3 + $0x28] sm:$0xff]
      %v4647 = vld [vmem:[#allocation3 + $0x30] sm:$0xf]
      %4654 = vrot.lane.b32.xlu0 %v4642, 64
      %v4655 = vpop.permute.xlu0 %4654
      %4656 = vrot.lane.b32.xlu0 %v4643, 64
      %v4657 = vpop.permute.xlu0 %4656
      %4658 = vrot.lane.b32.xlu0 %v4644, 64
      %v4659 = vpop.permute.xlu0 %4658
      %4660 = vrot.lane.b32.xlu0 %v4645, 64
      %v4661 = vpop.permute.xlu0 %4660
      %4662 = vrot.lane.b32.xlu0 %v4646, 64
      %v4663 = vpop.permute.xlu0 %4662
      %4664 = vrot.lane.b32.xlu0 %v4647, 64
      %v4665 = vpop.permute.xlu0 %4664
      %v4666 = vrot.slane %v4655, 4
      %v4667 = vrot.slane %v4657, 4
      %v4668 = vrot.slane %v4659, 4
      %v4669 = vrot.slane %v4661, 4
      %v4670 = vrot.slane %v4663, 4
      %v4671 = vrot.slane %v4665, 4
      %v4672 = vsel %vm402, %v4666, %v4667
      %v4673 = vsel %vm2135, %v4655, %v4672
      %v4674 = vsel %vm402, %v4667, %v4668
      %v4675 = vsel %vm2135, %v4657, %v4674
      %v4676 = vsel %vm402, %v4668, %v4669
      %v4677 = vsel %vm2135, %v4659, %v4676
      %v4678 = vsel %vm402, %v4669, %v4670
      %v4679 = vsel %vm2135, %v4661, %v4678
      %v4680 = vsel %vm402, %v4670, %v4671
      %v4681 = vsel %vm2135, %v4663, %v4680
      %4687 = vst [vmem:[#allocation4 + $0x2d0] sm:$0xff] %v4673
      %4688 = vst [vmem:[#allocation4 + $0x2d8] sm:$0xff] %v4675
      %4689 = vst [vmem:[#allocation4 + $0x2e0] sm:$0xff] %v4677
      %4690 = vst [vmem:[#allocation4 + $0x2e8] sm:$0xff] %v4679
      %4691 = vst [vmem:[#allocation4 + $0x2f0] sm:$0xff] %v4681
      %v4692 = vld [vmem:[#allocation3 + $0x8] sm:$0xff]
      %v4693 = vld [vmem:[#allocation3 + $0x10] sm:$0xff]
      %v4694 = vld [vmem:[#allocation3 + $0x18] sm:$0xff]
      %v4695 = vld [vmem:[#allocation3 + $0x20] sm:$0xff]
      %v4696 = vld [vmem:[#allocation3 + $0x28] sm:$0xff]
      %v4697 = vld [vmem:[#allocation3 + $0x30] sm:$0xf]
      %4704 = vrot.lane.b32.xlu0 %v4692, 63
      %v4705 = vpop.permute.xlu0 %4704
      %4706 = vrot.lane.b32.xlu0 %v4693, 63
      %v4707 = vpop.permute.xlu0 %4706
      %4708 = vrot.lane.b32.xlu0 %v4694, 63
      %v4709 = vpop.permute.xlu0 %4708
      %4710 = vrot.lane.b32.xlu0 %v4695, 63
      %v4711 = vpop.permute.xlu0 %4710
      %4712 = vrot.lane.b32.xlu0 %v4696, 63
      %v4713 = vpop.permute.xlu0 %4712
      %4714 = vrot.lane.b32.xlu0 %v4697, 63
      %v4715 = vpop.permute.xlu0 %4714
      %v4716 = vrot.slane %v4705, 4
      %v4717 = vrot.slane %v4707, 4
      %v4718 = vrot.slane %v4709, 4
      %v4719 = vrot.slane %v4711, 4
      %v4720 = vrot.slane %v4713, 4
      %v4721 = vrot.slane %v4715, 4
      %v4722 = vsel %vm402, %v4716, %v4717
      %v4723 = vsel %vm2240, %v4705, %v4722
      %v4724 = vsel %vm402, %v4717, %v4718
      %v4725 = vsel %vm2240, %v4707, %v4724
      %v4726 = vsel %vm402, %v4718, %v4719
      %v4727 = vsel %vm2240, %v4709, %v4726
      %v4728 = vsel %vm402, %v4719, %v4720
      %v4729 = vsel %vm2240, %v4711, %v4728
      %v4730 = vsel %vm402, %v4720, %v4721
      %v4731 = vsel %vm2240, %v4713, %v4730
      %4737 = vst [vmem:[#allocation4 + $0x2f8] sm:$0xff] %v4723
      %4738 = vst [vmem:[#allocation4 + $0x300] sm:$0xff] %v4725
      %4739 = vst [vmem:[#allocation4 + $0x308] sm:$0xff] %v4727
      %4740 = vst [vmem:[#allocation4 + $0x310] sm:$0xff] %v4729
      %4741 = vst [vmem:[#allocation4 + $0x318] sm:$0xff] %v4731
      %v4742 = vld [vmem:[#allocation3 + $0x8] sm:$0xff]
      %v4743 = vld [vmem:[#allocation3 + $0x10] sm:$0xff]
      %v4744 = vld [vmem:[#allocation3 + $0x18] sm:$0xff]
      %v4745 = vld [vmem:[#allocation3 + $0x20] sm:$0xff]
      %v4746 = vld [vmem:[#allocation3 + $0x28] sm:$0xff]
      %v4747 = vld [vmem:[#allocation3 + $0x30] sm:$0xf]
      %4754 = vrot.lane.b32.xlu0 %v4742, 62
      %v4755 = vpop.permute.xlu0 %4754
      %4756 = vrot.lane.b32.xlu0 %v4743, 62
      %v4757 = vpop.permute.xlu0 %4756
      %4758 = vrot.lane.b32.xlu0 %v4744, 62
      %v4759 = vpop.permute.xlu0 %4758
      %4760 = vrot.lane.b32.xlu0 %v4745, 62
      %v4761 = vpop.permute.xlu0 %4760
      %4762 = vrot.lane.b32.xlu0 %v4746, 62
      %v4763 = vpop.permute.xlu0 %4762
      %4764 = vrot.lane.b32.xlu0 %v4747, 62
      %v4765 = vpop.permute.xlu0 %4764
      %v4766 = vrot.slane %v4755, 4
      %v4767 = vrot.slane %v4757, 4
      %v4768 = vrot.slane %v4759, 4
      %v4769 = vrot.slane %v4761, 4
      %v4770 = vrot.slane %v4763, 4
      %v4771 = vrot.slane %v4765, 4
      %v4772 = vsel %vm402, %v4766, %v4767
      %v4773 = vsel %vm2339, %v4755, %v4772
      %v4774 = vsel %vm402, %v4767, %v4768
      %v4775 = vsel %vm2339, %v4757, %v4774
      %v4776 = vsel %vm402, %v4768, %v4769
      %v4777 = vsel %vm2339, %v4759, %v4776
      %v4778 = vsel %vm402, %v4769, %v4770
      %v4779 = vsel %vm2339, %v4761, %v4778
      %v4780 = vsel %vm402, %v4770, %v4771
      %v4781 = vsel %vm2339, %v4763, %v4780
      %4787 = vst [vmem:[#allocation4 + $0x320] sm:$0xff] %v4773
      %4788 = vst [vmem:[#allocation4 + $0x328] sm:$0xff] %v4775
      %4789 = vst [vmem:[#allocation4 + $0x330] sm:$0xff] %v4777
      %4790 = vst [vmem:[#allocation4 + $0x338] sm:$0xff] %v4779
      %4791 = vst [vmem:[#allocation4 + $0x340] sm:$0xff] %v4781
      %v4792 = vld [vmem:[#allocation3 + $0x8] sm:$0xff]
      %v4793 = vld [vmem:[#allocation3 + $0x10] sm:$0xff]
      %v4794 = vld [vmem:[#allocation3 + $0x18] sm:$0xff]
      %v4795 = vld [vmem:[#allocation3 + $0x20] sm:$0xff]
      %v4796 = vld [vmem:[#allocation3 + $0x28] sm:$0xff]
      %v4797 = vld [vmem:[#allocation3 + $0x30] sm:$0xf]
      %4804 = vrot.lane.b32.xlu0 %v4792, 54
      %v4805 = vpop.permute.xlu0 %4804
      %4806 = vrot.lane.b32.xlu0 %v4793, 54
      %v4807 = vpop.permute.xlu0 %4806
      %4808 = vrot.lane.b32.xlu0 %v4794, 54
      %v4809 = vpop.permute.xlu0 %4808
      %4810 = vrot.lane.b32.xlu0 %v4795, 54
      %v4811 = vpop.permute.xlu0 %4810
      %4812 = vrot.lane.b32.xlu0 %v4796, 54
      %v4813 = vpop.permute.xlu0 %4812
      %4814 = vrot.lane.b32.xlu0 %v4797, 54
      %v4815 = vpop.permute.xlu0 %4814
      %v4816 = vrot.slane %v4805, 4
      %v4817 = vrot.slane %v4807, 4
      %v4818 = vrot.slane %v4809, 4
      %v4819 = vrot.slane %v4811, 4
      %v4820 = vrot.slane %v4813, 4
      %v4821 = vrot.slane %v4815, 4
      %v4822 = vsel %vm402, %v4816, %v4817
      %v4823 = vsel %vm2444, %v4805, %v4822
      %v4824 = vsel %vm402, %v4817, %v4818
      %v4825 = vsel %vm2444, %v4807, %v4824
      %v4826 = vsel %vm402, %v4818, %v4819
      %v4827 = vsel %vm2444, %v4809, %v4826
      %v4828 = vsel %vm402, %v4819, %v4820
      %v4829 = vsel %vm2444, %v4811, %v4828
      %v4830 = vsel %vm402, %v4820, %v4821
      %v4831 = vsel %vm2444, %v4813, %v4830
      %4837 = vst [vmem:[#allocation4 + $0x348] sm:$0xff] %v4823
      %4838 = vst [vmem:[#allocation4 + $0x350] sm:$0xff] %v4825
      %4839 = vst [vmem:[#allocation4 + $0x358] sm:$0xff] %v4827
      %4840 = vst [vmem:[#allocation4 + $0x360] sm:$0xff] %v4829
      %4841 = vst [vmem:[#allocation4 + $0x368] sm:$0xff] %v4831
      %v4842 = vld [vmem:[#allocation3 + $0x8] sm:$0xff]
      %v4843 = vld [vmem:[#allocation3 + $0x10] sm:$0xff]
      %v4844 = vld [vmem:[#allocation3 + $0x18] sm:$0xff]
      %v4845 = vld [vmem:[#allocation3 + $0x20] sm:$0xff]
      %v4846 = vld [vmem:[#allocation3 + $0x28] sm:$0xff]
      %v4847 = vld [vmem:[#allocation3 + $0x30] sm:$0xf]
      %4854 = vrot.lane.b32.xlu0 %v4842, 53
      %v4855 = vpop.permute.xlu0 %4854
      %4856 = vrot.lane.b32.xlu0 %v4843, 53
      %v4857 = vpop.permute.xlu0 %4856
      %4858 = vrot.lane.b32.xlu0 %v4844, 53
      %v4859 = vpop.permute.xlu0 %4858
      %4860 = vrot.lane.b32.xlu0 %v4845, 53
      %v4861 = vpop.permute.xlu0 %4860
      %4862 = vrot.lane.b32.xlu0 %v4846, 53
      %v4863 = vpop.permute.xlu0 %4862
      %4864 = vrot.lane.b32.xlu0 %v4847, 53
      %v4865 = vpop.permute.xlu0 %4864
      %v4866 = vrot.slane %v4855, 4
      %v4867 = vrot.slane %v4857, 4
      %v4868 = vrot.slane %v4859, 4
      %v4869 = vrot.slane %v4861, 4
      %v4870 = vrot.slane %v4863, 4
      %v4871 = vrot.slane %v4865, 4
      %v4872 = vsel %vm402, %v4866, %v4867
      %v4873 = vsel %vm2543, %v4855, %v4872
      %v4874 = vsel %vm402, %v4867, %v4868
      %v4875 = vsel %vm2543, %v4857, %v4874
      %v4876 = vsel %vm402, %v4868, %v4869
      %v4877 = vsel %vm2543, %v4859, %v4876
      %v4878 = vsel %vm402, %v4869, %v4870
      %v4879 = vsel %vm2543, %v4861, %v4878
      %v4880 = vsel %vm402, %v4870, %v4871
      %v4881 = vsel %vm2543, %v4863, %v4880
      %4887 = vst [vmem:[#allocation4 + $0x370] sm:$0xff] %v4873
      %4888 = vst [vmem:[#allocation4 + $0x378] sm:$0xff] %v4875
      %4889 = vst [vmem:[#allocation4 + $0x380] sm:$0xff] %v4877
      %4890 = vst [vmem:[#allocation4 + $0x388] sm:$0xff] %v4879
      %4891 = vst [vmem:[#allocation4 + $0x390] sm:$0xff] %v4881
      %v4892 = vld [vmem:[#allocation3 + $0x8] sm:$0xff]
      %v4893 = vld [vmem:[#allocation3 + $0x10] sm:$0xff]
      %v4894 = vld [vmem:[#allocation3 + $0x18] sm:$0xff]
      %v4895 = vld [vmem:[#allocation3 + $0x20] sm:$0xff]
      %v4896 = vld [vmem:[#allocation3 + $0x28] sm:$0xff]
      %v4897 = vld [vmem:[#allocation3 + $0x30] sm:$0xf]
      %4904 = vrot.lane.b32.xlu0 %v4892, 52
      %v4905 = vpop.permute.xlu0 %4904
      %4906 = vrot.lane.b32.xlu0 %v4893, 52
      %v4907 = vpop.permute.xlu0 %4906
      %4908 = vrot.lane.b32.xlu0 %v4894, 52
      %v4909 = vpop.permute.xlu0 %4908
      %4910 = vrot.lane.b32.xlu0 %v4895, 52
      %v4911 = vpop.permute.xlu0 %4910
      %4912 = vrot.lane.b32.xlu0 %v4896, 52
      %v4913 = vpop.permute.xlu0 %4912
      %4914 = vrot.lane.b32.xlu0 %v4897, 52
      %v4915 = vpop.permute.xlu0 %4914
      %v4916 = vrot.slane %v4905, 4
      %v4917 = vrot.slane %v4907, 4
      %v4918 = vrot.slane %v4909, 4
      %v4919 = vrot.slane %v4911, 4
      %v4920 = vrot.slane %v4913, 4
      %v4921 = vrot.slane %v4915, 4
      %v4922 = vsel %vm402, %v4916, %v4917
      %v4923 = vsel %vm2648, %v4905, %v4922
      %v4924 = vsel %vm402, %v4917, %v4918
      %v4925 = vsel %vm2648, %v4907, %v4924
      %v4926 = vsel %vm402, %v4918, %v4919
      %v4927 = vsel %vm2648, %v4909, %v4926
      %v4928 = vsel %vm402, %v4919, %v4920
      %v4929 = vsel %vm2648, %v4911, %v4928
      %v4930 = vsel %vm402, %v4920, %v4921
      %v4931 = vsel %vm2648, %v4913, %v4930
      %4937 = vst [vmem:[#allocation4 + $0x398] sm:$0xff] %v4923
      %4938 = vst [vmem:[#allocation4 + $0x3a0] sm:$0xff] %v4925
      %4939 = vst [vmem:[#allocation4 + $0x3a8] sm:$0xff] %v4927
      %4940 = vst [vmem:[#allocation4 + $0x3b0] sm:$0xff] %v4929
      %4941 = vst [vmem:[#allocation4 + $0x3b8] sm:$0xff] %v4931
      %v4942 = vld [vmem:[#allocation3 + $0x8] sm:$0xff]
      %v4943 = vld [vmem:[#allocation3 + $0x10] sm:$0xff]
      %v4944 = vld [vmem:[#allocation3 + $0x18] sm:$0xff]
      %v4945 = vld [vmem:[#allocation3 + $0x20] sm:$0xff]
      %v4946 = vld [vmem:[#allocation3 + $0x28] sm:$0xff]
      %v4947 = vld [vmem:[#allocation3 + $0x30] sm:$0xf]
      %4954 = vrot.lane.b32.xlu0 %v4942, 44
      %v4955 = vpop.permute.xlu0 %4954
      %4956 = vrot.lane.b32.xlu0 %v4943, 44
      %v4957 = vpop.permute.xlu0 %4956
      %4958 = vrot.lane.b32.xlu0 %v4944, 44
      %v4959 = vpop.permute.xlu0 %4958
      %4960 = vrot.lane.b32.xlu0 %v4945, 44
      %v4961 = vpop.permute.xlu0 %4960
      %4962 = vrot.lane.b32.xlu0 %v4946, 44
      %v4963 = vpop.permute.xlu0 %4962
      %4964 = vrot.lane.b32.xlu0 %v4947, 44
      %v4965 = vpop.permute.xlu0 %4964
      %v4966 = vrot.slane %v4955, 4
      %v4967 = vrot.slane %v4957, 4
      %v4968 = vrot.slane %v4959, 4
      %v4969 = vrot.slane %v4961, 4
      %v4970 = vrot.slane %v4963, 4
      %v4971 = vrot.slane %v4965, 4
      %v4972 = vsel %vm402, %v4966, %v4967
      %v4973 = vsel %vm2747, %v4955, %v4972
      %v4974 = vsel %vm402, %v4967, %v4968
      %v4975 = vsel %vm2747, %v4957, %v4974
      %v4976 = vsel %vm402, %v4968, %v4969
      %v4977 = vsel %vm2747, %v4959, %v4976
      %v4978 = vsel %vm402, %v4969, %v4970
      %v4979 = vsel %vm2747, %v4961, %v4978
      %v4980 = vsel %vm402, %v4970, %v4971
      %v4981 = vsel %vm2747, %v4963, %v4980
      %4987 = vst [vmem:[#allocation4 + $0x3c0] sm:$0xff] %v4973
      %4988 = vst [vmem:[#allocation4 + $0x3c8] sm:$0xff] %v4975
      %4989 = vst [vmem:[#allocation4 + $0x3d0] sm:$0xff] %v4977
      %4990 = vst [vmem:[#allocation4 + $0x3d8] sm:$0xff] %v4979
      %4991 = vst [vmem:[#allocation4 + $0x3e0] sm:$0xff] %v4981
      %v4992 = vld [vmem:[#allocation3 + $0x8] sm:$0xff]
      %v4993 = vld [vmem:[#allocation3 + $0x10] sm:$0xff]
      %v4994 = vld [vmem:[#allocation3 + $0x18] sm:$0xff]
      %v4995 = vld [vmem:[#allocation3 + $0x20] sm:$0xff]
      %v4996 = vld [vmem:[#allocation3 + $0x28] sm:$0xff]
      %v4997 = vld [vmem:[#allocation3 + $0x30] sm:$0xf]
      %5004 = vrot.lane.b32.xlu0 %v4992, 43
      %v5005 = vpop.permute.xlu0 %5004
      %5006 = vrot.lane.b32.xlu0 %v4993, 43
      %v5007 = vpop.permute.xlu0 %5006
      %5008 = vrot.lane.b32.xlu0 %v4994, 43
      %v5009 = vpop.permute.xlu0 %5008
      %5010 = vrot.lane.b32.xlu0 %v4995, 43
      %v5011 = vpop.permute.xlu0 %5010
      %5012 = vrot.lane.b32.xlu0 %v4996, 43
      %v5013 = vpop.permute.xlu0 %5012
      %5014 = vrot.lane.b32.xlu0 %v4997, 43
      %v5015 = vpop.permute.xlu0 %5014
      %v5016 = vrot.slane %v5005, 4
      %v5017 = vrot.slane %v5007, 4
      %v5018 = vrot.slane %v5009, 4
      %v5019 = vrot.slane %v5011, 4
      %v5020 = vrot.slane %v5013, 4
      %v5021 = vrot.slane %v5015, 4
      %v5022 = vsel %vm402, %v5016, %v5017
      %v5023 = vsel %vm2852, %v5005, %v5022
      %v5024 = vsel %vm402, %v5017, %v5018
      %v5025 = vsel %vm2852, %v5007, %v5024
      %v5026 = vsel %vm402, %v5018, %v5019
      %v5027 = vsel %vm2852, %v5009, %v5026
      %v5028 = vsel %vm402, %v5019, %v5020
      %v5029 = vsel %vm2852, %v5011, %v5028
      %v5030 = vsel %vm402, %v5020, %v5021
      %v5031 = vsel %vm2852, %v5013, %v5030
      %5037 = vst [vmem:[#allocation4 + $0x3e8] sm:$0xff] %v5023
      %5038 = vst [vmem:[#allocation4 + $0x3f0] sm:$0xff] %v5025
      %5039 = vst [vmem:[#allocation4 + $0x3f8] sm:$0xff] %v5027
      %5040 = vst [vmem:[#allocation4 + $0x400] sm:$0xff] %v5029
      %5041 = vst [vmem:[#allocation4 + $0x408] sm:$0xff] %v5031
      %v5042 = vld [vmem:[#allocation3 + $0x8] sm:$0xff]
      %v5043 = vld [vmem:[#allocation3 + $0x10] sm:$0xff]
      %v5044 = vld [vmem:[#allocation3 + $0x18] sm:$0xff]
      %v5045 = vld [vmem:[#allocation3 + $0x20] sm:$0xff]
      %v5046 = vld [vmem:[#allocation3 + $0x28] sm:$0xff]
      %v5047 = vld [vmem:[#allocation3 + $0x30] sm:$0xf]
      %5054 = vrot.lane.b32.xlu0 %v5042, 42
      %v5055 = vpop.permute.xlu0 %5054
      %5056 = vrot.lane.b32.xlu0 %v5043, 42
      %v5057 = vpop.permute.xlu0 %5056
      %5058 = vrot.lane.b32.xlu0 %v5044, 42
      %v5059 = vpop.permute.xlu0 %5058
      %5060 = vrot.lane.b32.xlu0 %v5045, 42
      %v5061 = vpop.permute.xlu0 %5060
      %5062 = vrot.lane.b32.xlu0 %v5046, 42
      %v5063 = vpop.permute.xlu0 %5062
      %5064 = vrot.lane.b32.xlu0 %v5047, 42
      %v5065 = vpop.permute.xlu0 %5064
      %v5066 = vrot.slane %v5055, 4
      %v5067 = vrot.slane %v5057, 4
      %v5068 = vrot.slane %v5059, 4
      %v5069 = vrot.slane %v5061, 4
      %v5070 = vrot.slane %v5063, 4
      %v5071 = vrot.slane %v5065, 4
      %v5072 = vsel %vm402, %v5066, %v5067
      %v5073 = vsel %vm2951, %v5055, %v5072
      %v5074 = vsel %vm402, %v5067, %v5068
      %v5075 = vsel %vm2951, %v5057, %v5074
      %v5076 = vsel %vm402, %v5068, %v5069
      %v5077 = vsel %vm2951, %v5059, %v5076
      %v5078 = vsel %vm402, %v5069, %v5070
      %v5079 = vsel %vm2951, %v5061, %v5078
      %v5080 = vsel %vm402, %v5070, %v5071
      %v5081 = vsel %vm2951, %v5063, %v5080
      %5087 = vst [vmem:[#allocation4 + $0x410] sm:$0xff] %v5073
      %5088 = vst [vmem:[#allocation4 + $0x418] sm:$0xff] %v5075
      %5089 = vst [vmem:[#allocation4 + $0x420] sm:$0xff] %v5077
      %5090 = vst [vmem:[#allocation4 + $0x428] sm:$0xff] %v5079
      %5091 = vst [vmem:[#allocation4 + $0x430] sm:$0xff] %v5081
      %v5092 = vld [vmem:[%s3] sm:$0xf]
      %v5093 = vld [vmem:[#allocation4] sm:$0xff]
      %v5094 = vld [vmem:[#allocation4 + $0x8] sm:$0xff]
      %v5095 = vld [vmem:[#allocation4 + $0x10] sm:$0xff]
      %v5096 = vld [vmem:[#allocation4 + $0x18] sm:$0xff]
      %v5097 = vld [vmem:[#allocation4 + $0x20] sm:$0xff]
      %v5098 = vld [vmem:[#allocation4 + $0x28] sm:$0xff]
      %v5099 = vld [vmem:[#allocation4 + $0x30] sm:$0xff]
      %v5100 = vld [vmem:[#allocation4 + $0x38] sm:$0xff]
      %v5101 = vld [vmem:[#allocation4 + $0x40] sm:$0xff]
      %v5102 = vld [vmem:[#allocation4 + $0x48] sm:$0xff]
      %v5103 = vld [vmem:[#allocation4 + $0x50] sm:$0xff]
      %v5104 = vld [vmem:[#allocation4 + $0x58] sm:$0xff]
      %v5105 = vld [vmem:[#allocation4 + $0x60] sm:$0xff]
      %v5106 = vld [vmem:[#allocation4 + $0x68] sm:$0xff]
      %v5107 = vld [vmem:[#allocation4 + $0x70] sm:$0xff]
      %v5108 = vld [vmem:[#allocation4 + $0x78] sm:$0xff]
      %v5109 = vld [vmem:[#allocation4 + $0x80] sm:$0xff]
      %v5110 = vld [vmem:[#allocation4 + $0x88] sm:$0xff]
      %v5111 = vld [vmem:[#allocation4 + $0x90] sm:$0xff]
      %v5112 = vld [vmem:[#allocation4 + $0x98] sm:$0xff]
      %v5113 = vld [vmem:[#allocation4 + $0xa0] sm:$0xff]
      %v5114 = vld [vmem:[#allocation4 + $0xa8] sm:$0xff]
      %v5115 = vld [vmem:[#allocation4 + $0xb0] sm:$0xff]
      %v5116 = vld [vmem:[#allocation4 + $0xb8] sm:$0xff]
      %v5117 = vld [vmem:[#allocation4 + $0xc0] sm:$0xff]
      %v5118 = vld [vmem:[#allocation4 + $0xc8] sm:$0xff]
      %v5119 = vld [vmem:[#allocation4 + $0xd0] sm:$0xff]
      %v5120 = vld [vmem:[#allocation4 + $0xd8] sm:$0xff]
      %v5121 = vld [vmem:[#allocation4 + $0xe0] sm:$0xff]
      %v5122 = vld [vmem:[#allocation4 + $0xe8] sm:$0xff]
      %v5123 = vld [vmem:[#allocation4 + $0xf0] sm:$0xff]
      %v5124 = vld [vmem:[#allocation4 + $0xf8] sm:$0xff]
      %v5125 = vld [vmem:[#allocation4 + $0x100] sm:$0xff]
      %v5126 = vld [vmem:[#allocation4 + $0x108] sm:$0xff]
      %v5127 = vld [vmem:[#allocation4 + $0x110] sm:$0xff]
      %v5128 = vld [vmem:[#allocation4 + $0x118] sm:$0xff]
      %v5129 = vld [vmem:[#allocation4 + $0x120] sm:$0xff]
      %v5130 = vld [vmem:[#allocation4 + $0x128] sm:$0xff]
      %v5131 = vld [vmem:[#allocation4 + $0x130] sm:$0xff]
      %v5132 = vld [vmem:[#allocation4 + $0x138] sm:$0xff]
      %v5133 = vld [vmem:[#allocation4 + $0x140] sm:$0xff]
      %v5134 = vld [vmem:[#allocation4 + $0x148] sm:$0xff]
      %v5135 = vld [vmem:[#allocation4 + $0x150] sm:$0xff]
      %v5136 = vld [vmem:[#allocation4 + $0x158] sm:$0xff]
      %v5137 = vld [vmem:[#allocation4 + $0x160] sm:$0xff]
      %v5138 = vld [vmem:[#allocation4 + $0x168] sm:$0xff]
      %v5139 = vld [vmem:[#allocation4 + $0x170] sm:$0xff]
      %v5140 = vld [vmem:[#allocation4 + $0x178] sm:$0xff]
      %v5141 = vld [vmem:[#allocation4 + $0x180] sm:$0xff]
      %v5142 = vld [vmem:[#allocation4 + $0x188] sm:$0xff]
      %v5143 = vld [vmem:[#allocation4 + $0x190] sm:$0xff]
      %v5144 = vld [vmem:[#allocation4 + $0x198] sm:$0xff]
      %v5145 = vld [vmem:[#allocation4 + $0x1a0] sm:$0xff]
      %v5146 = vld [vmem:[#allocation4 + $0x1a8] sm:$0xff]
      %v5147 = vld [vmem:[#allocation4 + $0x1b0] sm:$0xff]
      %v5148 = vld [vmem:[#allocation4 + $0x1b8] sm:$0xff]
      %v5149 = vld [vmem:[#allocation4 + $0x1c0] sm:$0xff]
      %v5150 = vld [vmem:[#allocation4 + $0x1c8] sm:$0xff]
      %v5151 = vld [vmem:[#allocation4 + $0x1d0] sm:$0xff]
      %v5152 = vld [vmem:[#allocation4 + $0x1d8] sm:$0xff]
      %v5153 = vld [vmem:[#allocation4 + $0x1e0] sm:$0xff]
      %v5154 = vld [vmem:[#allocation4 + $0x1e8] sm:$0xff]
      %v5155 = vld [vmem:[#allocation4 + $0x1f0] sm:$0xff]
      %v5156 = vld [vmem:[#allocation4 + $0x1f8] sm:$0xff]
      %v5157 = vld [vmem:[#allocation4 + $0x200] sm:$0xff]
      %v5158 = vld [vmem:[#allocation4 + $0x208] sm:$0xff]
      %v5159 = vld [vmem:[#allocation4 + $0x210] sm:$0xff]
      %v5160 = vld [vmem:[#allocation4 + $0x218] sm:$0xff]
      %v5161 = vld [vmem:[#allocation4 + $0x220] sm:$0xff]
      %v5162 = vld [vmem:[#allocation4 + $0x228] sm:$0xff]
      %v5163 = vld [vmem:[#allocation4 + $0x230] sm:$0xff]
      %v5164 = vld [vmem:[#allocation4 + $0x238] sm:$0xff]
      %v5165 = vld [vmem:[#allocation4 + $0x240] sm:$0xff]
      %v5166 = vld [vmem:[#allocation4 + $0x248] sm:$0xff]
      %v5167 = vld [vmem:[#allocation4 + $0x250] sm:$0xff]
      %v5168 = vld [vmem:[#allocation4 + $0x258] sm:$0xff]
      %v5169 = vld [vmem:[#allocation4 + $0x260] sm:$0xff]
      %v5170 = vld [vmem:[#allocation4 + $0x268] sm:$0xff]
      %v5171 = vld [vmem:[#allocation4 + $0x270] sm:$0xff]
      %v5172 = vld [vmem:[#allocation4 + $0x278] sm:$0xff]
      %v5173 = vld [vmem:[#allocation4 + $0x280] sm:$0xff]
      %v5174 = vld [vmem:[#allocation4 + $0x288] sm:$0xff]
      %v5175 = vld [vmem:[#allocation4 + $0x290] sm:$0xff]
      %v5176 = vld [vmem:[#allocation4 + $0x298] sm:$0xff]
      %v5177 = vld [vmem:[#allocation4 + $0x2a0] sm:$0xff]
      %v5178 = vld [vmem:[#allocation4 + $0x2a8] sm:$0xff]
      %v5179 = vld [vmem:[#allocation4 + $0x2b0] sm:$0xff]
      %v5180 = vld [vmem:[#allocation4 + $0x2b8] sm:$0xff]
      %v5181 = vld [vmem:[#allocation4 + $0x2c0] sm:$0xff]
      %v5182 = vld [vmem:[#allocation4 + $0x2c8] sm:$0xff]
      %v5183 = vld [vmem:[#allocation4 + $0x2d0] sm:$0xff]
      %v5184 = vld [vmem:[#allocation4 + $0x2d8] sm:$0xff]
      %v5185 = vld [vmem:[#allocation4 + $0x2e0] sm:$0xff]
      %v5186 = vld [vmem:[#allocation4 + $0x2e8] sm:$0xff]
      %v5187 = vld [vmem:[#allocation4 + $0x2f0] sm:$0xff]
      %v5188 = vld [vmem:[#allocation4 + $0x2f8] sm:$0xff]
      %v5189 = vld [vmem:[#allocation4 + $0x300] sm:$0xff]
      %v5190 = vld [vmem:[#allocation4 + $0x308] sm:$0xff]
      %v5191 = vld [vmem:[#allocation4 + $0x310] sm:$0xff]
      %v5192 = vld [vmem:[#allocation4 + $0x318] sm:$0xff]
      %v5193 = vld [vmem:[#allocation4 + $0x320] sm:$0xff]
      %v5194 = vld [vmem:[#allocation4 + $0x328] sm:$0xff]
      %v5195 = vld [vmem:[#allocation4 + $0x330] sm:$0xff]
      %v5196 = vld [vmem:[#allocation4 + $0x338] sm:$0xff]
      %v5197 = vld [vmem:[#allocation4 + $0x340] sm:$0xff]
      %v5198 = vld [vmem:[#allocation4 + $0x348] sm:$0xff]
      %v5199 = vld [vmem:[#allocation4 + $0x350] sm:$0xff]
      %v5200 = vld [vmem:[#allocation4 + $0x358] sm:$0xff]
      %v5201 = vld [vmem:[#allocation4 + $0x360] sm:$0xff]
      %v5202 = vld [vmem:[#allocation4 + $0x368] sm:$0xff]
      %v5203 = vld [vmem:[#allocation4 + $0x370] sm:$0xff]
      %v5204 = vld [vmem:[#allocation4 + $0x378] sm:$0xff]
      %v5205 = vld [vmem:[#allocation4 + $0x380] sm:$0xff]
      %v5206 = vld [vmem:[#allocation4 + $0x388] sm:$0xff]
      %v5207 = vld [vmem:[#allocation4 + $0x390] sm:$0xff]
      %v5208 = vld [vmem:[#allocation4 + $0x398] sm:$0xff]
      %v5209 = vld [vmem:[#allocation4 + $0x3a0] sm:$0xff]
      %v5210 = vld [vmem:[#allocation4 + $0x3a8] sm:$0xff]
      %v5211 = vld [vmem:[#allocation4 + $0x3b0] sm:$0xff]
      %v5212 = vld [vmem:[#allocation4 + $0x3b8] sm:$0xff]
      %v5213 = vld [vmem:[#allocation4 + $0x3c0] sm:$0xff]
      %v5214 = vld [vmem:[#allocation4 + $0x3c8] sm:$0xff]
      %v5215 = vld [vmem:[#allocation4 + $0x3d0] sm:$0xff]
      %v5216 = vld [vmem:[#allocation4 + $0x3d8] sm:$0xff]
      %v5217 = vld [vmem:[#allocation4 + $0x3e0] sm:$0xff]
      %v5218 = vld [vmem:[#allocation4 + $0x3e8] sm:$0xff]
      %v5219 = vld [vmem:[#allocation4 + $0x3f0] sm:$0xff]
      %v5220 = vld [vmem:[#allocation4 + $0x3f8] sm:$0xff]
      %v5221 = vld [vmem:[#allocation4 + $0x400] sm:$0xff]
      %v5222 = vld [vmem:[#allocation4 + $0x408] sm:$0xff]
      %v5223 = vld [vmem:[#allocation4 + $0x410] sm:$0xff]
      %v5224 = vld [vmem:[#allocation4 + $0x418] sm:$0xff]
      %v5225 = vld [vmem:[#allocation4 + $0x420] sm:$0xff]
      %v5226 = vld [vmem:[#allocation4 + $0x428] sm:$0xff]
      %v5227 = vld [vmem:[#allocation4 + $0x430] sm:$0xff]
      %v5228 = vld [vmem:[%s246 + $0x4] sm:$0xff]
      %v5229 = vld [vmem:[%s246 + $0xc] sm:$0xff]
      %v5230 = vld [vmem:[%s246 + $0x14] sm:$0xff]
      %v5231 = vld [vmem:[%s246 + $0x1c] sm:$0xff]
      %v5232 = vld [vmem:[%s246 + $0x24] sm:$0xff]
      %v5233 = vld [vmem:[%s246 + $0x2c] sm:$0xf]
      %v5234 = vld [vmem:[%s4] sm:$0xf]
      %5236 = vset.pattern.permute.xlu0 0
      %5237 = vperm.xlu0 %5236, %v5234
      %v5238 = vpop.permute.xlu0 %5237
      %v5242 = vunpack.c.l.s4 1983009808
      %v5243 = vunpack.c.0.s8 %v5242
      %v5244 = vlaneseq
      %v5245 = vshrl.u32 %v5244, 7
      %v5246 = vsub.s32 %v5243, %v5245
      %v5247 = vrot.slane %v5092, %v5246
      %v5248 = vcombine.high %v5247, %v5247
      %v5385 = vunpack.c.l.b16 %v5093
      %v5386 = vunpack.c.h.b16 %v5093
      %v5387 = vunpack.c.l.b16 %v5094
      %v5388 = vunpack.c.h.b16 %v5094
      %v5389 = vunpack.c.l.b16 %v5095
      %v5390 = vunpack.c.h.b16 %v5095
      %v5391 = vunpack.c.l.b16 %v5096
      %v5392 = vunpack.c.h.b16 %v5096
      %v5393 = vunpack.c.l.b16 %v5097
      %v5394 = vunpack.c.h.b16 %v5097
      %v5395 = vunpack.c.l.b16 %v5098
      %v5396 = vunpack.c.h.b16 %v5098
      %v5397 = vunpack.c.l.b16 %v5099
      %v5398 = vunpack.c.h.b16 %v5099
      %v5399 = vunpack.c.l.b16 %v5100
      %v5400 = vunpack.c.h.b16 %v5100
      %v5401 = vunpack.c.l.b16 %v5101
      %v5402 = vunpack.c.h.b16 %v5101
      %v5403 = vunpack.c.l.b16 %v5102
      %v5404 = vunpack.c.h.b16 %v5102
      %v5405 = vunpack.c.l.b16 %v5103
      %v5406 = vunpack.c.h.b16 %v5103
      %v5407 = vunpack.c.l.b16 %v5104
      %v5408 = vunpack.c.h.b16 %v5104
      %v5409 = vunpack.c.l.b16 %v5105
      %v5410 = vunpack.c.h.b16 %v5105
      %v5411 = vunpack.c.l.b16 %v5106
      %v5412 = vunpack.c.h.b16 %v5106
      %v5413 = vunpack.c.l.b16 %v5107
      %v5414 = vunpack.c.h.b16 %v5107
      %v5415 = vunpack.c.l.b16 %v5108
      %v5416 = vunpack.c.h.b16 %v5108
      %v5417 = vunpack.c.l.b16 %v5109
      %v5418 = vunpack.c.h.b16 %v5109
      %v5419 = vunpack.c.l.b16 %v5110
      %v5420 = vunpack.c.h.b16 %v5110
      %v5421 = vunpack.c.l.b16 %v5111
      %v5422 = vunpack.c.h.b16 %v5111
      %v5423 = vunpack.c.l.b16 %v5112
      %v5424 = vunpack.c.h.b16 %v5112
      %v5425 = vunpack.c.l.b16 %v5113
      %v5426 = vunpack.c.h.b16 %v5113
      %v5427 = vunpack.c.l.b16 %v5114
      %v5428 = vunpack.c.h.b16 %v5114
      %v5429 = vunpack.c.l.b16 %v5115
      %v5430 = vunpack.c.h.b16 %v5115
      %v5431 = vunpack.c.l.b16 %v5116
      %v5432 = vunpack.c.h.b16 %v5116
      %v5433 = vunpack.c.l.b16 %v5117
      %v5434 = vunpack.c.h.b16 %v5117
      %v5435 = vunpack.c.l.b16 %v5118
      %v5436 = vunpack.c.h.b16 %v5118
      %v5437 = vunpack.c.l.b16 %v5119
      %v5438 = vunpack.c.h.b16 %v5119
      %v5439 = vunpack.c.l.b16 %v5120
      %v5440 = vunpack.c.h.b16 %v5120
      %v5441 = vunpack.c.l.b16 %v5121
      %v5442 = vunpack.c.h.b16 %v5121
      %v5443 = vunpack.c.l.b16 %v5122
      %v5444 = vunpack.c.h.b16 %v5122
      %v5445 = vunpack.c.l.b16 %v5123
      %v5446 = vunpack.c.h.b16 %v5123
      %v5447 = vunpack.c.l.b16 %v5124
      %v5448 = vunpack.c.h.b16 %v5124
      %v5449 = vunpack.c.l.b16 %v5125
      %v5450 = vunpack.c.h.b16 %v5125
      %v5451 = vunpack.c.l.b16 %v5126
      %v5452 = vunpack.c.h.b16 %v5126
      %v5453 = vunpack.c.l.b16 %v5127
      %v5454 = vunpack.c.h.b16 %v5127
      %v5455 = vunpack.c.l.b16 %v5128
      %v5456 = vunpack.c.h.b16 %v5128
      %v5457 = vunpack.c.l.b16 %v5129
      %v5458 = vunpack.c.h.b16 %v5129
      %v5459 = vunpack.c.l.b16 %v5130
      %v5460 = vunpack.c.h.b16 %v5130
      %v5461 = vunpack.c.l.b16 %v5131
      %v5462 = vunpack.c.h.b16 %v5131
      %v5463 = vunpack.c.l.b16 %v5132
      %v5464 = vunpack.c.h.b16 %v5132
      %v5465 = vunpack.c.l.b16 %v5133
      %v5466 = vunpack.c.h.b16 %v5133
      %v5467 = vunpack.c.l.b16 %v5134
      %v5468 = vunpack.c.h.b16 %v5134
      %v5469 = vunpack.c.l.b16 %v5135
      %v5470 = vunpack.c.h.b16 %v5135
      %v5471 = vunpack.c.l.b16 %v5136
      %v5472 = vunpack.c.h.b16 %v5136
      %v5473 = vunpack.c.l.b16 %v5137
      %v5474 = vunpack.c.h.b16 %v5137
      %v5475 = vunpack.c.l.b16 %v5138
      %v5476 = vunpack.c.h.b16 %v5138
      %v5477 = vunpack.c.l.b16 %v5139
      %v5478 = vunpack.c.h.b16 %v5139
      %v5479 = vunpack.c.l.b16 %v5140
      %v5480 = vunpack.c.h.b16 %v5140
      %v5481 = vunpack.c.l.b16 %v5141
      %v5482 = vunpack.c.h.b16 %v5141
      %v5483 = vunpack.c.l.b16 %v5142
      %v5484 = vunpack.c.h.b16 %v5142
      %v5485 = vunpack.c.l.b16 %v5143
      %v5486 = vunpack.c.h.b16 %v5143
      %v5487 = vunpack.c.l.b16 %v5144
      %v5488 = vunpack.c.h.b16 %v5144
      %v5489 = vunpack.c.l.b16 %v5145
      %v5490 = vunpack.c.h.b16 %v5145
      %v5491 = vunpack.c.l.b16 %v5146
      %v5492 = vunpack.c.h.b16 %v5146
      %v5493 = vunpack.c.l.b16 %v5147
      %v5494 = vunpack.c.h.b16 %v5147
      %v5495 = vunpack.c.l.b16 %v5148
      %v5496 = vunpack.c.h.b16 %v5148
      %v5497 = vunpack.c.l.b16 %v5149
      %v5498 = vunpack.c.h.b16 %v5149
      %v5499 = vunpack.c.l.b16 %v5150
      %v5500 = vunpack.c.h.b16 %v5150
      %v5501 = vunpack.c.l.b16 %v5151
      %v5502 = vunpack.c.h.b16 %v5151
      %v5503 = vunpack.c.l.b16 %v5152
      %v5504 = vunpack.c.h.b16 %v5152
      %v5505 = vunpack.c.l.b16 %v5153
      %v5506 = vunpack.c.h.b16 %v5153
      %v5507 = vunpack.c.l.b16 %v5154
      %v5508 = vunpack.c.h.b16 %v5154
      %v5509 = vunpack.c.l.b16 %v5155
      %v5510 = vunpack.c.h.b16 %v5155
      %v5511 = vunpack.c.l.b16 %v5156
      %v5512 = vunpack.c.h.b16 %v5156
      %v5513 = vunpack.c.l.b16 %v5157
      %v5514 = vunpack.c.h.b16 %v5157
      %v5515 = vunpack.c.l.b16 %v5158
      %v5516 = vunpack.c.h.b16 %v5158
      %v5517 = vunpack.c.l.b16 %v5159
      %v5518 = vunpack.c.h.b16 %v5159
      %v5519 = vunpack.c.l.b16 %v5160
      %v5520 = vunpack.c.h.b16 %v5160
      %v5521 = vunpack.c.l.b16 %v5161
      %v5522 = vunpack.c.h.b16 %v5161
      %v5523 = vunpack.c.l.b16 %v5162
      %v5524 = vunpack.c.h.b16 %v5162
      %v5525 = vunpack.c.l.b16 %v5163
      %v5526 = vunpack.c.h.b16 %v5163
      %v5527 = vunpack.c.l.b16 %v5164
      %v5528 = vunpack.c.h.b16 %v5164
      %v5529 = vunpack.c.l.b16 %v5165
      %v5530 = vunpack.c.h.b16 %v5165
      %v5531 = vunpack.c.l.b16 %v5166
      %v5532 = vunpack.c.h.b16 %v5166
      %v5533 = vunpack.c.l.b16 %v5167
      %v5534 = vunpack.c.h.b16 %v5167
      %v5535 = vunpack.c.l.b16 %v5168
      %v5536 = vunpack.c.h.b16 %v5168
      %v5537 = vunpack.c.l.b16 %v5169
      %v5538 = vunpack.c.h.b16 %v5169
      %v5539 = vunpack.c.l.b16 %v5170
      %v5540 = vunpack.c.h.b16 %v5170
      %v5541 = vunpack.c.l.b16 %v5171
      %v5542 = vunpack.c.h.b16 %v5171
      %v5543 = vunpack.c.l.b16 %v5172
      %v5544 = vunpack.c.h.b16 %v5172
      %v5545 = vunpack.c.l.b16 %v5173
      %v5546 = vunpack.c.h.b16 %v5173
      %v5547 = vunpack.c.l.b16 %v5174
      %v5548 = vunpack.c.h.b16 %v5174
      %v5549 = vunpack.c.l.b16 %v5175
      %v5550 = vunpack.c.h.b16 %v5175
      %v5551 = vunpack.c.l.b16 %v5176
      %v5552 = vunpack.c.h.b16 %v5176
      %v5553 = vunpack.c.l.b16 %v5177
      %v5554 = vunpack.c.h.b16 %v5177
      %v5555 = vunpack.c.l.b16 %v5178
      %v5556 = vunpack.c.h.b16 %v5178
      %v5557 = vunpack.c.l.b16 %v5179
      %v5558 = vunpack.c.h.b16 %v5179
      %v5559 = vunpack.c.l.b16 %v5180
      %v5560 = vunpack.c.h.b16 %v5180
      %v5561 = vunpack.c.l.b16 %v5181
      %v5562 = vunpack.c.h.b16 %v5181
      %v5563 = vunpack.c.l.b16 %v5182
      %v5564 = vunpack.c.h.b16 %v5182
      %v5565 = vunpack.c.l.b16 %v5183
      %v5566 = vunpack.c.h.b16 %v5183
      %v5567 = vunpack.c.l.b16 %v5184
      %v5568 = vunpack.c.h.b16 %v5184
      %v5569 = vunpack.c.l.b16 %v5185
      %v5570 = vunpack.c.h.b16 %v5185
      %v5571 = vunpack.c.l.b16 %v5186
      %v5572 = vunpack.c.h.b16 %v5186
      %v5573 = vunpack.c.l.b16 %v5187
      %v5574 = vunpack.c.h.b16 %v5187
      %v5575 = vunpack.c.l.b16 %v5188
      %v5576 = vunpack.c.h.b16 %v5188
      %v5577 = vunpack.c.l.b16 %v5189
      %v5578 = vunpack.c.h.b16 %v5189
      %v5579 = vunpack.c.l.b16 %v5190
      %v5580 = vunpack.c.h.b16 %v5190
      %v5581 = vunpack.c.l.b16 %v5191
      %v5582 = vunpack.c.h.b16 %v5191
      %v5583 = vunpack.c.l.b16 %v5192
      %v5584 = vunpack.c.h.b16 %v5192
      %v5585 = vunpack.c.l.b16 %v5193
      %v5586 = vunpack.c.h.b16 %v5193
      %v5587 = vunpack.c.l.b16 %v5194
      %v5588 = vunpack.c.h.b16 %v5194
      %v5589 = vunpack.c.l.b16 %v5195
      %v5590 = vunpack.c.h.b16 %v5195
      %v5591 = vunpack.c.l.b16 %v5196
      %v5592 = vunpack.c.h.b16 %v5196
      %v5593 = vunpack.c.l.b16 %v5197
      %v5594 = vunpack.c.h.b16 %v5197
      %v5595 = vunpack.c.l.b16 %v5198
      %v5596 = vunpack.c.h.b16 %v5198
      %v5597 = vunpack.c.l.b16 %v5199
      %v5598 = vunpack.c.h.b16 %v5199
      %v5599 = vunpack.c.l.b16 %v5200
      %v5600 = vunpack.c.h.b16 %v5200
      %v5601 = vunpack.c.l.b16 %v5201
      %v5602 = vunpack.c.h.b16 %v5201
      %v5603 = vunpack.c.l.b16 %v5202
      %v5604 = vunpack.c.h.b16 %v5202
      %v5605 = vunpack.c.l.b16 %v5203
      %v5606 = vunpack.c.h.b16 %v5203
      %v5607 = vunpack.c.l.b16 %v5204
      %v5608 = vunpack.c.h.b16 %v5204
      %v5609 = vunpack.c.l.b16 %v5205
      %v5610 = vunpack.c.h.b16 %v5205
      %v5611 = vunpack.c.l.b16 %v5206
      %v5612 = vunpack.c.h.b16 %v5206
      %v5613 = vunpack.c.l.b16 %v5207
      %v5614 = vunpack.c.h.b16 %v5207
      %v5615 = vunpack.c.l.b16 %v5208
      %v5616 = vunpack.c.h.b16 %v5208
      %v5617 = vunpack.c.l.b16 %v5209
      %v5618 = vunpack.c.h.b16 %v5209
      %v5619 = vunpack.c.l.b16 %v5210
      %v5620 = vunpack.c.h.b16 %v5210
      %v5621 = vunpack.c.l.b16 %v5211
      %v5622 = vunpack.c.h.b16 %v5211
      %v5623 = vunpack.c.l.b16 %v5212
      %v5624 = vunpack.c.h.b16 %v5212
      %v5625 = vunpack.c.l.b16 %v5213
      %v5626 = vunpack.c.h.b16 %v5213
      %v5627 = vunpack.c.l.b16 %v5214
      %v5628 = vunpack.c.h.b16 %v5214
      %v5629 = vunpack.c.l.b16 %v5215
      %v5630 = vunpack.c.h.b16 %v5215
      %v5631 = vunpack.c.l.b16 %v5216
      %v5632 = vunpack.c.h.b16 %v5216
      %v5633 = vunpack.c.l.b16 %v5217
      %v5634 = vunpack.c.h.b16 %v5217
      %v5635 = vunpack.c.l.b16 %v5218
      %v5636 = vunpack.c.h.b16 %v5218
      %v5637 = vunpack.c.l.b16 %v5219
      %v5638 = vunpack.c.h.b16 %v5219
      %v5639 = vunpack.c.l.b16 %v5220
      %v5640 = vunpack.c.h.b16 %v5220
      %v5641 = vunpack.c.l.b16 %v5221
      %v5642 = vunpack.c.h.b16 %v5221
      %v5643 = vunpack.c.l.b16 %v5222
      %v5644 = vunpack.c.h.b16 %v5222
      %v5645 = vunpack.c.l.b16 %v5223
      %v5646 = vunpack.c.h.b16 %v5223
      %v5647 = vunpack.c.l.b16 %v5224
      %v5648 = vunpack.c.h.b16 %v5224
      %v5649 = vunpack.c.l.b16 %v5225
      %v5650 = vunpack.c.h.b16 %v5225
      %v5651 = vunpack.c.l.b16 %v5226
      %v5652 = vunpack.c.h.b16 %v5226
      %v5653 = vunpack.c.l.b16 %v5227
      %v5654 = vunpack.c.h.b16 %v5227
      %v5655 = vpack.c.b16 %v5395, %v5385
      %v5656 = vpack.c.b16 %v5396, %v5386
      %v5657 = vpack.c.b16 %v5397, %v5387
      %v5658 = vpack.c.b16 %v5398, %v5388
      %v5659 = vpack.c.b16 %v5399, %v5389
      %v5660 = vpack.c.b16 %v5400, %v5390
      %v5661 = vpack.c.b16 %v5401, %v5391
      %v5662 = vpack.c.b16 %v5402, %v5392
      %v5663 = vpack.c.b16 %v5403, %v5393
      %v5664 = vpack.c.b16 %v5404, %v5394
      %v5665 = vpack.c.b16 %v5415, %v5405
      %v5666 = vpack.c.b16 %v5416, %v5406
      %v5667 = vpack.c.b16 %v5417, %v5407
      %v5668 = vpack.c.b16 %v5418, %v5408
      %v5669 = vpack.c.b16 %v5419, %v5409
      %v5670 = vpack.c.b16 %v5420, %v5410
      %v5671 = vpack.c.b16 %v5421, %v5411
      %v5672 = vpack.c.b16 %v5422, %v5412
      %v5673 = vpack.c.b16 %v5423, %v5413
      %v5674 = vpack.c.b16 %v5424, %v5414
      %v5675 = vpack.c.b16 %v5435, %v5425
      %v5676 = vpack.c.b16 %v5436, %v5426
      %v5677 = vpack.c.b16 %v5437, %v5427
      %v5678 = vpack.c.b16 %v5438, %v5428
      %v5679 = vpack.c.b16 %v5439, %v5429
      %v5680 = vpack.c.b16 %v5440, %v5430
      %v5681 = vpack.c.b16 %v5441, %v5431
      %v5682 = vpack.c.b16 %v5442, %v5432
      %v5683 = vpack.c.b16 %v5443, %v5433
      %v5684 = vpack.c.b16 %v5444, %v5434
      %v5685 = vpack.c.b16 %v5455, %v5445
      %v5686 = vpack.c.b16 %v5456, %v5446
      %v5687 = vpack.c.b16 %v5457, %v5447
      %v5688 = vpack.c.b16 %v5458, %v5448
      %v5689 = vpack.c.b16 %v5459, %v5449
      %v5690 = vpack.c.b16 %v5460, %v5450
      %v5691 = vpack.c.b16 %v5461, %v5451
      %v5692 = vpack.c.b16 %v5462, %v5452
      %v5693 = vpack.c.b16 %v5463, %v5453
      %v5694 = vpack.c.b16 %v5464, %v5454
      %v5695 = vpack.c.b16 %v5475, %v5465
      %v5696 = vpack.c.b16 %v5476, %v5466
      %v5697 = vpack.c.b16 %v5477, %v5467
      %v5698 = vpack.c.b16 %v5478, %v5468
      %v5699 = vpack.c.b16 %v5479, %v5469
      %v5700 = vpack.c.b16 %v5480, %v5470
      %v5701 = vpack.c.b16 %v5481, %v5471
      %v5702 = vpack.c.b16 %v5482, %v5472
      %v5703 = vpack.c.b16 %v5483, %v5473
      %v5704 = vpack.c.b16 %v5484, %v5474
      %v5705 = vpack.c.b16 %v5495, %v5485
      %v5706 = vpack.c.b16 %v5496, %v5486
      %v5707 = vpack.c.b16 %v5497, %v5487
      %v5708 = vpack.c.b16 %v5498, %v5488
      %v5709 = vpack.c.b16 %v5499, %v5489
      %v5710 = vpack.c.b16 %v5500, %v5490
      %v5711 = vpack.c.b16 %v5501, %v5491
      %v5712 = vpack.c.b16 %v5502, %v5492
      %v5713 = vpack.c.b16 %v5503, %v5493
      %v5714 = vpack.c.b16 %v5504, %v5494
      %v5715 = vpack.c.b16 %v5515, %v5505
      %v5716 = vpack.c.b16 %v5516, %v5506
      %v5717 = vpack.c.b16 %v5517, %v5507
      %v5718 = vpack.c.b16 %v5518, %v5508
      %v5719 = vpack.c.b16 %v5519, %v5509
      %v5720 = vpack.c.b16 %v5520, %v5510
      %v5721 = vpack.c.b16 %v5521, %v5511
      %v5722 = vpack.c.b16 %v5522, %v5512
      %v5723 = vpack.c.b16 %v5523, %v5513
      %v5724 = vpack.c.b16 %v5524, %v5514
      %v5725 = vpack.c.b16 %v5535, %v5525
      %v5726 = vpack.c.b16 %v5536, %v5526
      %v5727 = vpack.c.b16 %v5537, %v5527
      %v5728 = vpack.c.b16 %v5538, %v5528
      %v5729 = vpack.c.b16 %v5539, %v5529
      %v5730 = vpack.c.b16 %v5540, %v5530
      %v5731 = vpack.c.b16 %v5541, %v5531
      %v5732 = vpack.c.b16 %v5542, %v5532
      %v5733 = vpack.c.b16 %v5543, %v5533
      %v5734 = vpack.c.b16 %v5544, %v5534
      %v5735 = vpack.c.b16 %v5555, %v5545
      %v5736 = vpack.c.b16 %v5556, %v5546
      %v5737 = vpack.c.b16 %v5557, %v5547
      %v5738 = vpack.c.b16 %v5558, %v5548
      %v5739 = vpack.c.b16 %v5559, %v5549
      %v5740 = vpack.c.b16 %v5560, %v5550
      %v5741 = vpack.c.b16 %v5561, %v5551
      %v5742 = vpack.c.b16 %v5562, %v5552
      %v5743 = vpack.c.b16 %v5563, %v5553
      %v5744 = vpack.c.b16 %v5564, %v5554
      %v5745 = vpack.c.b16 %v5575, %v5565
      %v5746 = vpack.c.b16 %v5576, %v5566
      %v5747 = vpack.c.b16 %v5577, %v5567
      %v5748 = vpack.c.b16 %v5578, %v5568
      %v5749 = vpack.c.b16 %v5579, %v5569
      %v5750 = vpack.c.b16 %v5580, %v5570
      %v5751 = vpack.c.b16 %v5581, %v5571
      %v5752 = vpack.c.b16 %v5582, %v5572
      %v5753 = vpack.c.b16 %v5583, %v5573
      %v5754 = vpack.c.b16 %v5584, %v5574
      %v5755 = vpack.c.b16 %v5595, %v5585
      %v5756 = vpack.c.b16 %v5596, %v5586
      %v5757 = vpack.c.b16 %v5597, %v5587
      %v5758 = vpack.c.b16 %v5598, %v5588
      %v5759 = vpack.c.b16 %v5599, %v5589
      %v5760 = vpack.c.b16 %v5600, %v5590
      %v5761 = vpack.c.b16 %v5601, %v5591
      %v5762 = vpack.c.b16 %v5602, %v5592
      %v5763 = vpack.c.b16 %v5603, %v5593
      %v5764 = vpack.c.b16 %v5604, %v5594
      %v5765 = vpack.c.b16 %v5615, %v5605
      %v5766 = vpack.c.b16 %v5616, %v5606
      %v5767 = vpack.c.b16 %v5617, %v5607
      %v5768 = vpack.c.b16 %v5618, %v5608
      %v5769 = vpack.c.b16 %v5619, %v5609
      %v5770 = vpack.c.b16 %v5620, %v5610
      %v5771 = vpack.c.b16 %v5621, %v5611
      %v5772 = vpack.c.b16 %v5622, %v5612
      %v5773 = vpack.c.b16 %v5623, %v5613
      %v5774 = vpack.c.b16 %v5624, %v5614
      %v5775 = vpack.c.b16 %v5635, %v5625
      %v5776 = vpack.c.b16 %v5636, %v5626
      %v5777 = vpack.c.b16 %v5637, %v5627
      %v5778 = vpack.c.b16 %v5638, %v5628
      %v5779 = vpack.c.b16 %v5639, %v5629
      %v5780 = vpack.c.b16 %v5640, %v5630
      %v5781 = vpack.c.b16 %v5641, %v5631
      %v5782 = vpack.c.b16 %v5642, %v5632
      %v5783 = vpack.c.b16 %v5643, %v5633
      %v5784 = vpack.c.b16 %v5644, %v5634
      %v5785 = vpack.c.b16 %v5645, %v5645
      %v5786 = vpack.c.b16 %v5646, %v5646
      %v5787 = vpack.c.b16 %v5647, %v5647
      %v5788 = vpack.c.b16 %v5648, %v5648
      %v5789 = vpack.c.b16 %v5649, %v5649
      %v5790 = vpack.c.b16 %v5650, %v5650
      %v5791 = vpack.c.b16 %v5651, %v5651
      %v5792 = vpack.c.b16 %v5652, %v5652
      %v5793 = vpack.c.b16 %v5653, %v5653
      %v5794 = vpack.c.b16 %v5654, %v5654
      %vm5925 = vcmask 719872
      %v5927 = vsel %vm5925, %v5248, 0
      %v5930 = vsel %vm3702, %v5785, 0
      %v5933 = vsel %vm3702, %v5786, 0
      %v5936 = vsel %vm3702, %v5787, 0
      %v5939 = vsel %vm3702, %v5788, 0
      %v5942 = vsel %vm3702, %v5789, 0
      %v5945 = vsel %vm3702, %v5790, 0
      %v5948 = vsel %vm3702, %v5791, 0
      %v5951 = vsel %vm3702, %v5792, 0
      %v5954 = vsel %vm3702, %v5793, 0
      %v5957 = vsel %vm3702, %v5794, 0
      %5959 = vmatprep.subr.bf16.mxu0 %v5656
      %5960 = vmatpush1.bf16.msra.mxu0 %v5655
      %5961 = vmatprep.subr.bf16.mxu0 %v5666
      %5962 = vmatpush1.bf16.msra.mxu0 %v5665
      %5963 = vmatprep.subr.bf16.mxu0 %v5676
      %5964 = vmatpush1.bf16.msra.mxu0 %v5675
      %5965 = vmatprep.subr.bf16.mxu0 %v5686
      %5966 = vmatpush1.bf16.msra.mxu0 %v5685
      %5967 = vmatprep.subr.bf16.mxu0 %v5696
      %5968 = vmatpush1.bf16.msra.mxu0 %v5695
      %5969 = vmatprep.subr.bf16.mxu0 %v5706
      %5970 = vmatpush1.bf16.msra.mxu0 %v5705
      %5971 = vmatprep.subr.bf16.mxu0 %v5716
      %5972 = vmatpush1.bf16.msra.mxu0 %v5715
      %5973 = vmatprep.subr.bf16.mxu0 %v5726
      %5974 = vmatpush1.bf16.msra.mxu0 %v5725
      %5975 = vmatprep.subr.bf16.mxu0 %v5736
      %5976 = vmatpush1.bf16.msra.mxu0 %v5735
      %5977 = vmatprep.subr.bf16.mxu0 %v5746
      %5978 = vmatpush1.bf16.msra.mxu0 %v5745
      %5979 = vmatprep.subr.bf16.mxu0 %v5756
      %5980 = vmatpush1.bf16.msra.mxu0 %v5755
      %5981 = vmatprep.subr.bf16.mxu0 %v5766
      %5982 = vmatpush1.bf16.msra.mxu0 %v5765
      %5983 = vmatprep.subr.bf16.mxu0 %v5776
      %5984 = vmatpush1.bf16.msra.mxu0 %v5775
      %5985 = vmatprep.subr.bf16.mxu0 %v5933
      %5986 = vmatpush1.bf16.msra.mxu0 %v5930
      %5987 = vmatprep.subr.bf16.mxu0 0
      %5988 = vmatpush1.bf16.msra.mxu0 0
      %5989 = vmatprep.subr.bf16.mxu0 0
      %5990 = vmatpush1.bf16.msra.mxu0 0
      %5991 = vmatprep.mubr.bf16.mxu0 %v5927
      %5992 = vmatmul.mubr.bf16.gmra.mrb[0].mxu0 %v5247
      %v5993 = vpop.f32.mrb[0].mxu0
      %v5994 = vadd.f32 %v5238, %v5993
      %v5995 = vpop.f32.mrb[0].mxu0
      %v5996 = vadd.f32 %v5238, %v5995
      %v5997 = vpop.f32.mrb[0].mxu0
      %v5998 = vpop.f32.mrb[0].mxu0
      %5999 = vdwg.mxu0
      %6000 = vmatprep.subr.bf16.mxu0 %v5658
      %6001 = vmatpush1.bf16.msra.mxu0 %v5657
      %6002 = vmatprep.subr.bf16.mxu0 %v5668
      %6003 = vmatpush1.bf16.msra.mxu0 %v5667
      %6004 = vmatprep.subr.bf16.mxu0 %v5678
      %6005 = vmatpush1.bf16.msra.mxu0 %v5677
      %6006 = vmatprep.subr.bf16.mxu0 %v5688
      %6007 = vmatpush1.bf16.msra.mxu0 %v5687
      %6008 = vmatprep.subr.bf16.mxu0 %v5698
      %6009 = vmatpush1.bf16.msra.mxu0 %v5697
      %6010 = vmatprep.subr.bf16.mxu0 %v5708
      %6011 = vmatpush1.bf16.msra.mxu0 %v5707
      %6012 = vmatprep.subr.bf16.mxu0 %v5718
      %6013 = vmatpush1.bf16.msra.mxu0 %v5717
      %6014 = vmatprep.subr.bf16.mxu0 %v5728
      %6015 = vmatpush1.bf16.msra.mxu0 %v5727
      %6016 = vmatprep.subr.bf16.mxu0 %v5738
      %6017 = vmatpush1.bf16.msra.mxu0 %v5737
      %6018 = vmatprep.subr.bf16.mxu0 %v5748
      %6019 = vmatpush1.bf16.msra.mxu0 %v5747
      %6020 = vmatprep.subr.bf16.mxu0 %v5758
      %6021 = vmatpush1.bf16.msra.mxu0 %v5757
      %6022 = vmatprep.subr.bf16.mxu0 %v5768
      %6023 = vmatpush1.bf16.msra.mxu0 %v5767
      %6024 = vmatprep.subr.bf16.mxu0 %v5778
      %6025 = vmatpush1.bf16.msra.mxu0 %v5777
      %6026 = vmatprep.subr.bf16.mxu0 %v5939
      %6027 = vmatpush1.bf16.msra.mxu0 %v5936
      %6028 = vmatprep.subr.bf16.mxu0 0
      %6029 = vmatpush1.bf16.msra.mxu0 0
      %6030 = vmatprep.subr.bf16.mxu0 0
      %6031 = vmatpush1.bf16.msra.mxu0 0
      %6032 = vmatprep.mubr.bf16.mxu0 %v5927
      %6033 = vmatmul.mubr.bf16.gmra.mrb[0].mxu0 %v5247
      %v6034 = vpop.f32.mrb[0].mxu0
      %v6035 = vadd.f32 %v5238, %v6034
      %v6036 = vpop.f32.mrb[0].mxu0
      %v6037 = vadd.f32 %v5238, %v6036
      %v6038 = vpop.f32.mrb[0].mxu0
      %v6039 = vpop.f32.mrb[0].mxu0
      %6040 = vdwg.mxu0
      %6041 = vmatprep.subr.bf16.mxu0 %v5660
      %6042 = vmatpush1.bf16.msra.mxu0 %v5659
      %6043 = vmatprep.subr.bf16.mxu0 %v5670
      %6044 = vmatpush1.bf16.msra.mxu0 %v5669
      %6045 = vmatprep.subr.bf16.mxu0 %v5680
      %6046 = vmatpush1.bf16.msra.mxu0 %v5679
      %6047 = vmatprep.subr.bf16.mxu0 %v5690
      %6048 = vmatpush1.bf16.msra.mxu0 %v5689
      %6049 = vmatprep.subr.bf16.mxu0 %v5700
      %6050 = vmatpush1.bf16.msra.mxu0 %v5699
      %6051 = vmatprep.subr.bf16.mxu0 %v5710
      %6052 = vmatpush1.bf16.msra.mxu0 %v5709
      %6053 = vmatprep.subr.bf16.mxu0 %v5720
      %6054 = vmatpush1.bf16.msra.mxu0 %v5719
      %6055 = vmatprep.subr.bf16.mxu0 %v5730
      %6056 = vmatpush1.bf16.msra.mxu0 %v5729
      %6057 = vmatprep.subr.bf16.mxu0 %v5740
      %6058 = vmatpush1.bf16.msra.mxu0 %v5739
      %6059 = vmatprep.subr.bf16.mxu0 %v5750
      %6060 = vmatpush1.bf16.msra.mxu0 %v5749
      %6061 = vmatprep.subr.bf16.mxu0 %v5760
      %6062 = vmatpush1.bf16.msra.mxu0 %v5759
      %6063 = vmatprep.subr.bf16.mxu0 %v5770
      %6064 = vmatpush1.bf16.msra.mxu0 %v5769
      %6065 = vmatprep.subr.bf16.mxu0 %v5780
      %6066 = vmatpush1.bf16.msra.mxu0 %v5779
      %6067 = vmatprep.subr.bf16.mxu0 %v5945
      %6068 = vmatpush1.bf16.msra.mxu0 %v5942
      %6069 = vmatprep.subr.bf16.mxu0 0
      %6070 = vmatpush1.bf16.msra.mxu0 0
      %6071 = vmatprep.subr.bf16.mxu0 0
      %6072 = vmatpush1.bf16.msra.mxu0 0
      %6073 = vmatprep.mubr.bf16.mxu0 %v5927
      %6074 = vmatmul.mubr.bf16.gmra.mrb[0].mxu0 %v5247
      %v6075 = vpop.f32.mrb[0].mxu0
      %v6076 = vadd.f32 %v5238, %v6075
      %v6077 = vpop.f32.mrb[0].mxu0
      %v6078 = vadd.f32 %v5238, %v6077
      %v6079 = vpop.f32.mrb[0].mxu0
      %v6080 = vpop.f32.mrb[0].mxu0
      %6081 = vdwg.mxu0
      %6082 = vmatprep.subr.bf16.mxu0 %v5662
      %6083 = vmatpush1.bf16.msra.mxu0 %v5661
      %6084 = vmatprep.subr.bf16.mxu0 %v5672
      %6085 = vmatpush1.bf16.msra.mxu0 %v5671
      %6086 = vmatprep.subr.bf16.mxu0 %v5682
      %6087 = vmatpush1.bf16.msra.mxu0 %v5681
      %6088 = vmatprep.subr.bf16.mxu0 %v5692
      %6089 = vmatpush1.bf16.msra.mxu0 %v5691
      %6090 = vmatprep.subr.bf16.mxu0 %v5702
      %6091 = vmatpush1.bf16.msra.mxu0 %v5701
      %6092 = vmatprep.subr.bf16.mxu0 %v5712
      %6093 = vmatpush1.bf16.msra.mxu0 %v5711
      %6094 = vmatprep.subr.bf16.mxu0 %v5722
      %6095 = vmatpush1.bf16.msra.mxu0 %v5721
      %6096 = vmatprep.subr.bf16.mxu0 %v5732
      %6097 = vmatpush1.bf16.msra.mxu0 %v5731
      %6098 = vmatprep.subr.bf16.mxu0 %v5742
      %6099 = vmatpush1.bf16.msra.mxu0 %v5741
      %6100 = vmatprep.subr.bf16.mxu0 %v5752
      %6101 = vmatpush1.bf16.msra.mxu0 %v5751
      %6102 = vmatprep.subr.bf16.mxu0 %v5762
      %6103 = vmatpush1.bf16.msra.mxu0 %v5761
      %6104 = vmatprep.subr.bf16.mxu0 %v5772
      %6105 = vmatpush1.bf16.msra.mxu0 %v5771
      %6106 = vmatprep.subr.bf16.mxu0 %v5782
      %6107 = vmatpush1.bf16.msra.mxu0 %v5781
      %6108 = vmatprep.subr.bf16.mxu0 %v5951
      %6109 = vmatpush1.bf16.msra.mxu0 %v5948
      %6110 = vmatprep.subr.bf16.mxu0 0
      %6111 = vmatpush1.bf16.msra.mxu0 0
      %6112 = vmatprep.subr.bf16.mxu0 0
      %6113 = vmatpush1.bf16.msra.mxu0 0
      %6114 = vmatprep.mubr.bf16.mxu0 %v5927
      %6115 = vmatmul.mubr.bf16.gmra.mrb[0].mxu0 %v5247
      %v6116 = vpop.f32.mrb[0].mxu0
      %v6117 = vadd.f32 %v5238, %v6116
      %v6118 = vpop.f32.mrb[0].mxu0
      %v6119 = vadd.f32 %v5238, %v6118
      %v6120 = vpop.f32.mrb[0].mxu0
      %v6121 = vpop.f32.mrb[0].mxu0
      %6122 = vdwg.mxu0
      %6123 = vmatprep.subr.bf16.mxu0 %v5664
      %6124 = vmatpush1.bf16.msra.mxu0 %v5663
      %6125 = vmatprep.subr.bf16.mxu0 %v5674
      %6126 = vmatpush1.bf16.msra.mxu0 %v5673
      %6127 = vmatprep.subr.bf16.mxu0 %v5684
      %6128 = vmatpush1.bf16.msra.mxu0 %v5683
      %6129 = vmatprep.subr.bf16.mxu0 %v5694
      %6130 = vmatpush1.bf16.msra.mxu0 %v5693
      %6131 = vmatprep.subr.bf16.mxu0 %v5704
      %6132 = vmatpush1.bf16.msra.mxu0 %v5703
      %6133 = vmatprep.subr.bf16.mxu0 %v5714
      %6134 = vmatpush1.bf16.msra.mxu0 %v5713
      %6135 = vmatprep.subr.bf16.mxu0 %v5724
      %6136 = vmatpush1.bf16.msra.mxu0 %v5723
      %6137 = vmatprep.subr.bf16.mxu0 %v5734
      %6138 = vmatpush1.bf16.msra.mxu0 %v5733
      %6139 = vmatprep.subr.bf16.mxu0 %v5744
      %6140 = vmatpush1.bf16.msra.mxu0 %v5743
      %6141 = vmatprep.subr.bf16.mxu0 %v5754
      %6142 = vmatpush1.bf16.msra.mxu0 %v5753
      %6143 = vmatprep.subr.bf16.mxu0 %v5764
      %6144 = vmatpush1.bf16.msra.mxu0 %v5763
      %6145 = vmatprep.subr.bf16.mxu0 %v5774
      %6146 = vmatpush1.bf16.msra.mxu0 %v5773
      %6147 = vmatprep.subr.bf16.mxu0 %v5784
      %6148 = vmatpush1.bf16.msra.mxu0 %v5783
      %6149 = vmatprep.subr.bf16.mxu0 %v5957
      %6150 = vmatpush1.bf16.msra.mxu0 %v5954
      %6151 = vmatprep.subr.bf16.mxu0 0
      %6152 = vmatpush1.bf16.msra.mxu0 0
      %6153 = vmatprep.subr.bf16.mxu0 0
      %6154 = vmatpush1.bf16.msra.mxu0 0
      %6155 = vmatprep.mubr.bf16.mxu0 %v5927
      %6156 = vmatmul.mubr.bf16.gmra.mrb[0].mxu0 %v5247
      %v6157 = vpop.f32.mrb[0].mxu0
      %v6158 = vadd.f32 %v5238, %v6157
      %v6159 = vpop.f32.mrb[0].mxu0
      %v6160 = vadd.f32 %v5238, %v6159
      %v6161 = vpop.f32.mrb[0].mxu0
      %v6162 = vpop.f32.mrb[0].mxu0
      %6163 = vdwg.mxu0
      %v6170 = vcombine.high %v5228, %v5228
      %v6171 = vcombine.high %v5229, %v5229
      %v6172 = vcombine.high %v5230, %v5230
      %v6173 = vcombine.high %v5231, %v5231
      %v6174 = vcombine.high %v5232, %v5232
      %6175 = vrot.lane.b32.xlu0 %v5228, 85
      %v6176 = vpop.permute.xlu0 %6175
      %6177 = vrot.lane.b32.xlu0 %v6170, 85
      %v6178 = vpop.permute.xlu0 %6177
      %6179 = vrot.lane.b32.xlu0 %v5229, 85
      %v6180 = vpop.permute.xlu0 %6179
      %6181 = vrot.lane.b32.xlu0 %v6171, 85
      %v6182 = vpop.permute.xlu0 %6181
      %6183 = vrot.lane.b32.xlu0 %v5230, 85
      %v6184 = vpop.permute.xlu0 %6183
      %6185 = vrot.lane.b32.xlu0 %v6172, 85
      %v6186 = vpop.permute.xlu0 %6185
      %6187 = vrot.lane.b32.xlu0 %v5231, 85
      %v6188 = vpop.permute.xlu0 %6187
      %6189 = vrot.lane.b32.xlu0 %v6173, 85
      %v6190 = vpop.permute.xlu0 %6189
      %6191 = vrot.lane.b32.xlu0 %v5232, 85
      %v6192 = vpop.permute.xlu0 %6191
      %6193 = vrot.lane.b32.xlu0 %v6174, 85
      %v6194 = vpop.permute.xlu0 %6193
      %6195 = vrot.lane.b32.xlu0 %v5233, 85
      %v6196 = vpop.permute.xlu0 %6195
      %vm6197 = vcmask 695296
      %v6198 = vsel %vm6197, %v6176, %v6178
      %v6199 = vsel %vm6197, %v6178, %v6180
      %v6200 = vsel %vm6197, %v6180, %v6182
      %v6201 = vsel %vm6197, %v6182, %v6184
      %v6202 = vsel %vm6197, %v6184, %v6186
      %v6203 = vsel %vm6197, %v6186, %v6188
      %v6204 = vsel %vm6197, %v6188, %v6190
      %v6205 = vsel %vm6197, %v6190, %v6192
      %v6206 = vsel %vm6197, %v6192, %v6194
      %v6207 = vsel %vm6197, %v6194, %v6196
      %v6218 = vadd.f32 %v5994, %v6198
      %v6219 = vadd.f32 %v5996, %v6199
      %v6220 = vadd.f32 %v6035, %v6200
      %v6221 = vadd.f32 %v6037, %v6201
      %v6222 = vadd.f32 %v6076, %v6202
      %v6223 = vadd.f32 %v6078, %v6203
      %v6224 = vadd.f32 %v6117, %v6204
      %v6225 = vadd.f32 %v6119, %v6205
      %v6226 = vadd.f32 %v6158, %v6206
      %v6227 = vadd.f32 %v6160, %v6207
      %v6238 = vcombine.low %v6218, %v6219
      %v6239 = vcombine.low %v6220, %v6221
      %v6240 = vcombine.low %v6222, %v6223
      %v6241 = vcombine.low %v6224, %v6225
      %v6242 = vcombine.low %v6226, %v6227
      %6248 = vst [vmem:[%s251] sm:$0xff] %v6238
      %6249 = vst [vmem:[%s251 + $0x8] sm:$0xff] %v6239
      %6250 = vst [vmem:[%s251 + $0x10] sm:$0xff] %v6240
      %6251 = vst [vmem:[%s251 + $0x18] sm:$0xff] %v6241
      %6252 = vst [vmem:[%s251 + $0x20] sm:$0xff] %v6242
      %p6253 = scmp.lt.s32.totalorder %s17, 1
      %s6254 = scalar_select %p6253, %s17, 1
      %s6255 = smul.addr %s6254, 10
      %s6256 = smul.addr %s6255, 4
      %s6257 = scalar_lea.vmem %s6, %s6256
      // Predicated region
      $region45: #{resnet_forward_pallas.1} parent=43 // pred_check
        %p6258 = pneg %p166
      $region46: #{resnet_forward_pallas.1} parent=43 // pred_check_branch
        %6260 = sbr.rel (%p6258) target = $region48
      $region47: #{resnet_forward_pallas.1} parent=43 // pred_region
        _
      $region48: #{resnet_forward_pallas.1} parent=43 // pred_fallthru
        _
    $region44: #{resnet_forward_pallas.1} parent=5 // pred_fallthru
      _
    %p6261 = scmp.le.s32.totalorder 2, %s12
    // Predicated region
    $region49: #{resnet_forward_pallas.1} parent=5 // pred_check
      %p6262 = pneg %p6261
    $region50: #{resnet_forward_pallas.1} parent=5 // pred_check_branch
      %6264 = sbr.rel (%p6262) target = $region52
    $region51: #{resnet_forward_pallas.1} parent=5 // pred_region
      %s6265 = ssub.s32 %s12, 2
      // Predicated region
      $region53: #{resnet_forward_pallas.1} parent=51 // pred_check
        %p6266 = pneg %p172
      $region54: #{resnet_forward_pallas.1} parent=51 // pred_check_branch
        %6268 = sbr.rel (%p6266) target = $region56
      $region55: #{resnet_forward_pallas.1} parent=51 // pred_region
        %p6269 = scmp.lt.s32.totalorder %s18, 1
        %s6270 = scalar_select %p6269, %s18, 1
        %s6271 = smul.addr %s6270, 10
        %s6272 = smul.addr %s6271, 4
        %s6273 = scalar_lea.vmem %s6, %s6272
      $region56: #{resnet_forward_pallas.1} parent=51 // pred_fallthru
        _
    $region52: #{resnet_forward_pallas.1} parent=5 // pred_fallthru
      _
  $region6: #{resnet_forward_pallas.1} parent=0 // loop_footer
    %s16 = sadd.s32 1, %s12
  $region7: #{resnet_forward_pallas.1} parent=0 // loop_footer_branch
    %11 = sbr.rel target = $region3
  $region8: #{resnet_forward_pallas.1} parent=0 // loop_exit
    _

</llo_original>
